<compile_context>
chip_gen: v5e
topology: v5e:2x2
jax: 0.10.0
libtpu: 0.0.40
codegen_flags: <defaults>
</compile_context>

<pallas_src>
import functools

import jax
import jax.numpy as jnp
from jax.experimental import pallas as pl
from jax.experimental.pallas import tpu as pltpu


def _round_up(x, m):
    return ((x + m - 1) // m) * m


# ----------------------------------------------------------------------------
# Fused Pallas kernel: all LSTM layers + FC epilogue
# ----------------------------------------------------------------------------
def _fused_lstm_fc_kernel(L, T, Bp, Dp, Hp, x_ref, lstm_ref, fc_ref, out_ref,
                          gx_sc):
    """All LSTM layers over the full sequence + final Linear, fused.

    x_ref    : (T*Bp, Dp)            time-major input, row t*Bp+b = (t, b)
    lstm_ref : (L, Dmax+Hp+8, 4Hp)   per-layer slab: [w_ih; w_hh; bias row]
                                     gate column order (i, f, o, g), padded
    fc_ref   : (Hp+8, Op)            [fc_w; fc_b row], padded
    out_ref  : (Bp, Op)
    gx_sc    : (T*Bp, 4Hp)           VMEM scratch for the hoisted x-projection
    """
    Dmax = lstm_ref.shape[1] - Hp - 8            # w_ih row span in the slab

    x_all = x_ref[...]                           # (T*Bp, Dp)
    h = None
    for l in range(L):
        din = Dp if l == 0 else Hp

        # ---- Hoisted input projection: ONE (T*Bp, din) @ (din, 4Hp) --------
        bias = lstm_ref[l, Dmax + Hp:Dmax + Hp + 1, :]          # (1, 4Hp)
        gx_sc[...] = (
            jnp.dot(x_all, lstm_ref[l, 0:din, :],
                    preferred_element_type=jnp.float32)
            + bias
        )                                                        # (T*Bp, 4Hp)

        h = jnp.zeros((Bp, Hp), jnp.float32)
        c = jnp.zeros((Bp, Hp), jnp.float32)
        hs = []
        collect = l < L - 1                      # last layer: only final h

        # ---- Recurrence: only h @ W_hh on the serial critical path ---------
        for t in range(T):                       # static -> fully unrolled
            gates = gx_sc[t * Bp:(t + 1) * Bp, :] + jnp.dot(
                h, lstm_ref[l, Dmax:Dmax + Hp, :],
                preferred_element_type=jnp.float32)              # (Bp, 4Hp)
            # Gates packed (i, f, o | g): one sigmoid over 3Hp, one tanh.
            sig = 1.0 / (1.0 + jnp.exp(-gates[:, 0:3 * Hp]))
            g_g = jnp.tanh(gates[:, 3 * Hp:4 * Hp])
            i_g = sig[:, 0:Hp]
            f_g = sig[:, Hp:2 * Hp]
            o_g = sig[:, 2 * Hp:3 * Hp]
            c = f_g * c + i_g * g_g
            h = o_g * jnp.tanh(c)
            if collect:
                hs.append(h)

        if collect:
            x_all = jnp.concatenate(hs, axis=0)  # (T*Bp, Hp), stays in vregs

    # ---- FC epilogue on the top layer's last hidden state -------------------
    out_ref[...] = (
        jnp.dot(h, fc_ref[0:Hp, :], preferred_element_type=jnp.float32)
        + fc_ref[Hp:Hp + 1, :]
    ).astype(out_ref.dtype)


# ----------------------------------------------------------------------------
# One-time parameter prep: transpose, gate-reorder (i,f,o,g), zero-pad, pack
# ----------------------------------------------------------------------------
def prepare_params(params, input_dim, hidden_dim, num_layers, output_dim):
    H = hidden_dim
    Hp = _round_up(H, 128)
    Dp = _round_up(input_dim, 128)
    Dmax = max(Dp, Hp)
    Op = _round_up(output_dim, 128)

    def reorder_pad_cols(w):
        # w: (rows, 4H), PyTorch gate order (i, f, g, o) -> (rows, 4Hp),
        # order (i, f, o, g), each gate block zero-padded H -> Hp columns.
        i = w[:, 0 * H:1 * H]
        f = w[:, 1 * H:2 * H]
        g = w[:, 2 * H:3 * H]
        o = w[:, 3 * H:4 * H]
        pad = lambda blk: jnp.pad(blk, ((0, 0), (0, Hp - H)))
        return jnp.concatenate([pad(i), pad(f), pad(o), pad(g)], axis=1)

    slabs = []
    for l in range(num_layers):
        p = params["lstm"][l]
        d_in = input_dim if l == 0 else hidden_dim
        w_ih = reorder_pad_cols(jnp.asarray(p["w_ih"]).T)        # (d_in, 4Hp)
        w_ih = jnp.pad(w_ih, ((0, Dmax - d_in), (0, 0)))         # (Dmax, 4Hp)
        w_hh = reorder_pad_cols(jnp.asarray(p["w_hh"]).T)        # (H, 4Hp)
        w_hh = jnp.pad(w_hh, ((0, Hp - H), (0, 0)))              # (Hp, 4Hp)
        bias = reorder_pad_cols((p["b_ih"] + p["b_hh"])[None, :])
        bias = jnp.pad(bias, ((0, 7), (0, 0)))                   # (8, 4Hp)
        slabs.append(jnp.concatenate([w_ih, w_hh, bias], axis=0))
    lstm_slab = jnp.stack(slabs, axis=0)         # (L, Dmax+Hp+8, 4Hp)

    fc_w = jnp.pad(jnp.asarray(params["fc_w"]).T,
                   ((0, Hp - H), (0, Op - output_dim)))          # (Hp, Op)
    fc_b = jnp.pad(params["fc_b"][None, :],
                   ((0, 7), (0, Op - output_dim)))               # (8, Op)
    fc_slab = jnp.concatenate([fc_w, fc_b], axis=0)              # (Hp+8, Op)

    dims = (num_layers, hidden_dim, Hp, input_dim, Dp, Dmax, output_dim, Op)
    return lstm_slab, fc_slab, dims


# ----------------------------------------------------------------------------
# Forward wrapper
# ----------------------------------------------------------------------------
@functools.partial(jax.jit, static_argnums=(3,))
def model_forward(x, lstm_slab, fc_slab, dims):
    """x: (B, T, input_dim) float32 (batch_first, like the PyTorch module)."""
    L, H, Hp, D, Dp, Dmax, O, Op = dims
    B, T, _ = x.shape
    Bp = _round_up(B, 8)

    # (B, T, D) -> time-major, pad batch to Bp and features to Dp, flatten.
    xt = jnp.transpose(x, (1, 0, 2))                             # (T, B, D)
    xt = jnp.pad(xt, ((0, 0), (0, Bp - B), (0, Dp - D)))         # (T, Bp, Dp)
    seq = xt.reshape(T * Bp, Dp)

    kernel = functools.partial(_fused_lstm_fc_kernel, L, T, Bp, Dp, Hp)
    out_p = pl.pallas_call(
        kernel,
        out_shape=jax.ShapeDtypeStruct((Bp, Op), jnp.float32),
        in_specs=[pl.BlockSpec(memory_space=pltpu.MemorySpace.VMEM)] * 3,
        out_specs=pl.BlockSpec(memory_space=pltpu.MemorySpace.VMEM),
        scratch_shapes=[pltpu.VMEM((T * Bp, 4 * Hp), jnp.float32)],
    )(seq, lstm_slab, fc_slab)
    return out_p[:B, :O]


# ----------------------------------------------------------------------------
# Reference (pure JAX) for correctness check
# ----------------------------------------------------------------------------
def reference_forward(x, params, num_layers):
    B = x.shape[0]
    seq = x
    for l in range(num_layers):
        p = params["lstm"][l]
        H = p["w_hh"].shape[1]
        h = jnp.zeros((B, H), jnp.float32)
        c = jnp.zeros((B, H), jnp.float32)
        outs = []
        for t in range(seq.shape[1]):
            g = seq[:, t, :] @ p["w_ih"].T + h @ p["w_hh"].T + p["b_ih"] + p["b_hh"]
            i_g = jax.nn.sigmoid(g[:, 0 * H:1 * H])
            f_g = jax.nn.sigmoid(g[:, 1 * H:2 * H])
            g_g = jnp.tanh(g[:, 2 * H:3 * H])
            o_g = jax.nn.sigmoid(g[:, 3 * H:4 * H])
            c = f_g * c + i_g * g_g
            h = o_g * jnp.tanh(c)
            outs.append(h)
        seq = jnp.stack(outs, axis=1)
    return seq[:, -1, :] @ params["fc_w"].T + params["fc_b"]


# ----------------------------------------------------------------------------
# Deterministic parameter init (PyTorch-style U(-1/sqrt(H), 1/sqrt(H)))
# ----------------------------------------------------------------------------
def init_params(key, input_dim, hidden_dim, num_layers, output_dim):
    bound = 1.0 / jnp.sqrt(hidden_dim)
    params = {"lstm": []}
    for l in range(num_layers):
        d_in = input_dim if l == 0 else hidden_dim
        key, k1, k2, k3, k4 = jax.random.split(key, 5)
        params["lstm"].append({
            "w_ih": jax.random.uniform(k1, (4 * hidden_dim, d_in), jnp.float32, -bound, bound),
            "w_hh": jax.random.uniform(k2, (4 * hidden_dim, hidden_dim), jnp.float32, -bound, bound),
            "b_ih": jax.random.uniform(k3, (4 * hidden_dim,), jnp.float32, -bound, bound),
            "b_hh": jax.random.uniform(k4, (4 * hidden_dim,), jnp.float32, -bound, bound),
        })
    key, k5, k6 = jax.random.split(key, 3)
    fc_bound = 1.0 / jnp.sqrt(hidden_dim)
    params["fc_w"] = jax.random.uniform(k5, (output_dim, hidden_dim), jnp.float32, -fc_bound, fc_bound)
    params["fc_b"] = jax.random.uniform(k6, (output_dim,), jnp.float32, -fc_bound, fc_bound)
    return params


# ----------------------------------------------------------------------------
if __name__ == "__main__":
    B, T = 2, 8
    input_dim, hidden_dim, num_layers, output_dim = 16, 32, 2, 4

    key = jax.random.PRNGKey(0)
    key, xk, pk = jax.random.split(key, 3)
    x = jax.random.normal(xk, (B, T, input_dim), jnp.float32)
    params = init_params(pk, input_dim, hidden_dim, num_layers, output_dim)
    lstm_slab, fc_slab, dims = prepare_params(
        params, input_dim, hidden_dim, num_layers, output_dim)

    out = model_forward(x, lstm_slab, fc_slab, dims)
    out = jax.block_until_ready(out)

    ref = reference_forward(x, params, num_layers)
    assert out.shape == (B, output_dim), out.shape
    assert jnp.allclose(out, ref, atol=1e-4, rtol=1e-4), (out, ref)

    print("KERNEL_OK")
</pallas_src>

<mosaic_0001>
module attributes {stable_mosaic.version = 11 : i64} {
  func.func @_fused_lstm_fc_kernel(%arg0: memref<64x128xf32, #tpu.memory_space<vmem>>, %arg1: memref<2x264x512xf32, #tpu.memory_space<vmem>>, %arg2: memref<136x128xf32, #tpu.memory_space<vmem>>, %arg3: memref<8x128xf32, #tpu.memory_space<vmem>>, %arg4: memref<64x512xf32, #tpu.memory_space<vmem>>) attributes {dimension_semantics = [], scalar_prefetch = 0 : i64, scratch_operands = 1 : i64, tpu.core_type = #tpu.core_type<tc>} {
    %c0 = arith.constant 0 : index
    %c0_0 = arith.constant 0 : index
    %0 = vector.load %arg0[%c0, %c0_0] : memref<64x128xf32, #tpu.memory_space<vmem>>, vector<64x128xf32>
    %c0_1 = arith.constant 0 : index
    %c256 = arith.constant 256 : index
    %c0_2 = arith.constant 0 : index
    %1 = vector.load %arg1[%c0_1, %c256, %c0_2] : memref<2x264x512xf32, #tpu.memory_space<vmem>>, vector<1x1x512xf32>
    %2 = vector.shape_cast %1 : vector<1x1x512xf32> to vector<1x512xf32>
    %c0_3 = arith.constant 0 : index
    %c0_4 = arith.constant 0 : index
    %c0_5 = arith.constant 0 : index
    %3 = vector.load %arg1[%c0_3, %c0_4, %c0_5] : memref<2x264x512xf32, #tpu.memory_space<vmem>>, vector<1x128x512xf32>
    %4 = vector.shape_cast %3 : vector<1x128x512xf32> to vector<128x512xf32>
    %cst = arith.constant dense<0.000000e+00> : vector<64x512xf32>
    %5 = tpu.matmul %0, %4, %cst {dimension_numbers = #tpu.dot_dimension_numbers<[1], [0], [0], [1], [0, 0, 1, 1], [], []>} : vector<64x128xf32>, vector<128x512xf32>, vector<64x512xf32> -> vector<64x512xf32>
    %6 = vector.broadcast %2 : vector<1x512xf32> to vector<64x512xf32>
    %7 = arith.addf %5, %6 : vector<64x512xf32>
    %c0_6 = arith.constant 0 : index
    %c0_7 = arith.constant 0 : index
    %8 = vector.load %arg4[%c0_6, %c0_7] : memref<64x512xf32, #tpu.memory_space<vmem>>, vector<64x512xf32>
    tpu.vector_store %arg4[%c0_6, %c0_7], %7 {strides = array<i32>} : memref<64x512xf32, #tpu.memory_space<vmem>>, vector<64x512xf32>,
    %cst_8 = arith.constant 0.000000e+00 : f32
    %9 = vector.broadcast %cst_8 : f32 to vector<8x128xf32>
    %cst_9 = arith.constant 0.000000e+00 : f32
    %10 = vector.broadcast %cst_9 : f32 to vector<8x128xf32>
    %c0_10 = arith.constant 0 : index
    %c0_11 = arith.constant 0 : index
    %11 = vector.load %arg4[%c0_10, %c0_11] : memref<64x512xf32, #tpu.memory_space<vmem>>, vector<8x512xf32>
    %c0_12 = arith.constant 0 : index
    %c128 = arith.constant 128 : index
    %c0_13 = arith.constant 0 : index
    %12 = vector.load %arg1[%c0_12, %c128, %c0_13] : memref<2x264x512xf32, #tpu.memory_space<vmem>>, vector<1x128x512xf32>
    %13 = vector.shape_cast %12 : vector<1x128x512xf32> to vector<128x512xf32>
    %cst_14 = arith.constant dense<0.000000e+00> : vector<8x512xf32>
    %14 = tpu.matmul %9, %13, %cst_14 {dimension_numbers = #tpu.dot_dimension_numbers<[1], [0], [0], [1], [0, 0, 1, 1], [], []>} : vector<8x128xf32>, vector<128x512xf32>, vector<8x512xf32> -> vector<8x512xf32>
    %15 = arith.addf %11, %14 : vector<8x512xf32>
    %16 = vector.extract_strided_slice %15 {offsets = [0, 0], sizes = [8, 384], strides = [1, 1]} : vector<8x512xf32> to vector<8x384xf32>
    %cst_15 = arith.constant 0.000000e+00 : f32
    %17 = vector.broadcast %cst_15 : f32 to vector<8x384xf32>
    %18 = arith.subf %17, %16 : vector<8x384xf32>
    %19 = math.exp %18 : vector<8x384xf32>
    %cst_16 = arith.constant 1.000000e+00 : f32
    %20 = vector.broadcast %cst_16 : f32 to vector<8x384xf32>
    %21 = arith.addf %20, %19 : vector<8x384xf32>
    %cst_17 = arith.constant 1.000000e+00 : f32
    %22 = vector.broadcast %cst_17 : f32 to vector<8x384xf32>
    %23 = arith.divf %22, %21 : vector<8x384xf32>
    %24 = vector.extract_strided_slice %15 {offsets = [0, 384], sizes = [8, 128], strides = [1, 1]} : vector<8x512xf32> to vector<8x128xf32>
    %25 = math.tanh %24 : vector<8x128xf32>
    %26 = vector.extract_strided_slice %23 {offsets = [0, 0], sizes = [8, 128], strides = [1, 1]} : vector<8x384xf32> to vector<8x128xf32>
    %27 = vector.extract_strided_slice %23 {offsets = [0, 128], sizes = [8, 128], strides = [1, 1]} : vector<8x384xf32> to vector<8x128xf32>
    %28 = vector.extract_strided_slice %23 {offsets = [0, 256], sizes = [8, 128], strides = [1, 1]} : vector<8x384xf32> to vector<8x128xf32>
    %29 = arith.mulf %27, %10 : vector<8x128xf32>
    %30 = arith.mulf %26, %25 : vector<8x128xf32>
    %31 = arith.addf %29, %30 : vector<8x128xf32>
    %32 = math.tanh %31 : vector<8x128xf32>
    %33 = arith.mulf %28, %32 : vector<8x128xf32>
    %c8 = arith.constant 8 : index
    %c0_18 = arith.constant 0 : index
    %34 = vector.load %arg4[%c8, %c0_18] : memref<64x512xf32, #tpu.memory_space<vmem>>, vector<8x512xf32>
    %c0_19 = arith.constant 0 : index
    %c128_20 = arith.constant 128 : index
    %c0_21 = arith.constant 0 : index
    %35 = vector.load %arg1[%c0_19, %c128_20, %c0_21] : memref<2x264x512xf32, #tpu.memory_space<vmem>>, vector<1x128x512xf32>
    %36 = vector.shape_cast %35 : vector<1x128x512xf32> to vector<128x512xf32>
    %cst_22 = arith.constant dense<0.000000e+00> : vector<8x512xf32>
    %37 = tpu.matmul %33, %36, %cst_22 {dimension_numbers = #tpu.dot_dimension_numbers<[1], [0], [0], [1], [0, 0, 1, 1], [], []>} : vector<8x128xf32>, vector<128x512xf32>, vector<8x512xf32> -> vector<8x512xf32>
    %38 = arith.addf %34, %37 : vector<8x512xf32>
    %39 = vector.extract_strided_slice %38 {offsets = [0, 0], sizes = [8, 384], strides = [1, 1]} : vector<8x512xf32> to vector<8x384xf32>
    %cst_23 = arith.constant 0.000000e+00 : f32
    %40 = vector.broadcast %cst_23 : f32 to vector<8x384xf32>
    %41 = arith.subf %40, %39 : vector<8x384xf32>
    %42 = math.exp %41 : vector<8x384xf32>
    %cst_24 = arith.constant 1.000000e+00 : f32
    %43 = vector.broadcast %cst_24 : f32 to vector<8x384xf32>
    %44 = arith.addf %43, %42 : vector<8x384xf32>
    %cst_25 = arith.constant 1.000000e+00 : f32
    %45 = vector.broadcast %cst_25 : f32 to vector<8x384xf32>
    %46 = arith.divf %45, %44 : vector<8x384xf32>
    %47 = vector.extract_strided_slice %38 {offsets = [0, 384], sizes = [8, 128], strides = [1, 1]} : vector<8x512xf32> to vector<8x128xf32>
    %48 = math.tanh %47 : vector<8x128xf32>
    %49 = vector.extract_strided_slice %46 {offsets = [0, 0], sizes = [8, 128], strides = [1, 1]} : vector<8x384xf32> to vector<8x128xf32>
    %50 = vector.extract_strided_slice %46 {offsets = [0, 128], sizes = [8, 128], strides = [1, 1]} : vector<8x384xf32> to vector<8x128xf32>
    %51 = vector.extract_strided_slice %46 {offsets = [0, 256], sizes = [8, 128], strides = [1, 1]} : vector<8x384xf32> to vector<8x128xf32>
    %52 = arith.mulf %50, %31 : vector<8x128xf32>
    %53 = arith.mulf %49, %48 : vector<8x128xf32>
    %54 = arith.addf %52, %53 : vector<8x128xf32>
    %55 = math.tanh %54 : vector<8x128xf32>
    %56 = arith.mulf %51, %55 : vector<8x128xf32>
    %c16 = arith.constant 16 : index
    %c0_26 = arith.constant 0 : index
    %57 = vector.load %arg4[%c16, %c0_26] : memref<64x512xf32, #tpu.memory_space<vmem>>, vector<8x512xf32>
    %c0_27 = arith.constant 0 : index
    %c128_28 = arith.constant 128 : index
    %c0_29 = arith.constant 0 : index
    %58 = vector.load %arg1[%c0_27, %c128_28, %c0_29] : memref<2x264x512xf32, #tpu.memory_space<vmem>>, vector<1x128x512xf32>
    %59 = vector.shape_cast %58 : vector<1x128x512xf32> to vector<128x512xf32>
    %cst_30 = arith.constant dense<0.000000e+00> : vector<8x512xf32>
    %60 = tpu.matmul %56, %59, %cst_30 {dimension_numbers = #tpu.dot_dimension_numbers<[1], [0], [0], [1], [0, 0, 1, 1], [], []>} : vector<8x128xf32>, vector<128x512xf32>, vector<8x512xf32> -> vector<8x512xf32>
    %61 = arith.addf %57, %60 : vector<8x512xf32>
    %62 = vector.extract_strided_slice %61 {offsets = [0, 0], sizes = [8, 384], strides = [1, 1]} : vector<8x512xf32> to vector<8x384xf32>
    %cst_31 = arith.constant 0.000000e+00 : f32
    %63 = vector.broadcast %cst_31 : f32 to vector<8x384xf32>
    %64 = arith.subf %63, %62 : vector<8x384xf32>
    %65 = math.exp %64 : vector<8x384xf32>
    %cst_32 = arith.constant 1.000000e+00 : f32
    %66 = vector.broadcast %cst_32 : f32 to vector<8x384xf32>
    %67 = arith.addf %66, %65 : vector<8x384xf32>
    %cst_33 = arith.constant 1.000000e+00 : f32
    %68 = vector.broadcast %cst_33 : f32 to vector<8x384xf32>
    %69 = arith.divf %68, %67 : vector<8x384xf32>
    %70 = vector.extract_strided_slice %61 {offsets = [0, 384], sizes = [8, 128], strides = [1, 1]} : vector<8x512xf32> to vector<8x128xf32>
    %71 = math.tanh %70 : vector<8x128xf32>
    %72 = vector.extract_strided_slice %69 {offsets = [0, 0], sizes = [8, 128], strides = [1, 1]} : vector<8x384xf32> to vector<8x128xf32>
    %73 = vector.extract_strided_slice %69 {offsets = [0, 128], sizes = [8, 128], strides = [1, 1]} : vector<8x384xf32> to vector<8x128xf32>
    %74 = vector.extract_strided_slice %69 {offsets = [0, 256], sizes = [8, 128], strides = [1, 1]} : vector<8x384xf32> to vector<8x128xf32>
    %75 = arith.mulf %73, %54 : vector<8x128xf32>
    %76 = arith.mulf %72, %71 : vector<8x128xf32>
    %77 = arith.addf %75, %76 : vector<8x128xf32>
    %78 = math.tanh %77 : vector<8x128xf32>
    %79 = arith.mulf %74, %78 : vector<8x128xf32>
    %c24 = arith.constant 24 : index
    %c0_34 = arith.constant 0 : index
    %80 = vector.load %arg4[%c24, %c0_34] : memref<64x512xf32, #tpu.memory_space<vmem>>, vector<8x512xf32>
    %c0_35 = arith.constant 0 : index
    %c128_36 = arith.constant 128 : index
    %c0_37 = arith.constant 0 : index
    %81 = vector.load %arg1[%c0_35, %c128_36, %c0_37] : memref<2x264x512xf32, #tpu.memory_space<vmem>>, vector<1x128x512xf32>
    %82 = vector.shape_cast %81 : vector<1x128x512xf32> to vector<128x512xf32>
    %cst_38 = arith.constant dense<0.000000e+00> : vector<8x512xf32>
    %83 = tpu.matmul %79, %82, %cst_38 {dimension_numbers = #tpu.dot_dimension_numbers<[1], [0], [0], [1], [0, 0, 1, 1], [], []>} : vector<8x128xf32>, vector<128x512xf32>, vector<8x512xf32> -> vector<8x512xf32>
    %84 = arith.addf %80, %83 : vector<8x512xf32>
    %85 = vector.extract_strided_slice %84 {offsets = [0, 0], sizes = [8, 384], strides = [1, 1]} : vector<8x512xf32> to vector<8x384xf32>
    %cst_39 = arith.constant 0.000000e+00 : f32
    %86 = vector.broadcast %cst_39 : f32 to vector<8x384xf32>
    %87 = arith.subf %86, %85 : vector<8x384xf32>
    %88 = math.exp %87 : vector<8x384xf32>
    %cst_40 = arith.constant 1.000000e+00 : f32
    %89 = vector.broadcast %cst_40 : f32 to vector<8x384xf32>
    %90 = arith.addf %89, %88 : vector<8x384xf32>
    %cst_41 = arith.constant 1.000000e+00 : f32
    %91 = vector.broadcast %cst_41 : f32 to vector<8x384xf32>
    %92 = arith.divf %91, %90 : vector<8x384xf32>
    %93 = vector.extract_strided_slice %84 {offsets = [0, 384], sizes = [8, 128], strides = [1, 1]} : vector<8x512xf32> to vector<8x128xf32>
    %94 = math.tanh %93 : vector<8x128xf32>
    %95 = vector.extract_strided_slice %92 {offsets = [0, 0], sizes = [8, 128], strides = [1, 1]} : vector<8x384xf32> to vector<8x128xf32>
    %96 = vector.extract_strided_slice %92 {offsets = [0, 128], sizes = [8, 128], strides = [1, 1]} : vector<8x384xf32> to vector<8x128xf32>
    %97 = vector.extract_strided_slice %92 {offsets = [0, 256], sizes = [8, 128], strides = [1, 1]} : vector<8x384xf32> to vector<8x128xf32>
    %98 = arith.mulf %96, %77 : vector<8x128xf32>
    %99 = arith.mulf %95, %94 : vector<8x128xf32>
    %100 = arith.addf %98, %99 : vector<8x128xf32>
    %101 = math.tanh %100 : vector<8x128xf32>
    %102 = arith.mulf %97, %101 : vector<8x128xf32>
    %c32 = arith.constant 32 : index
    %c0_42 = arith.constant 0 : index
    %103 = vector.load %arg4[%c32, %c0_42] : memref<64x512xf32, #tpu.memory_space<vmem>>, vector<8x512xf32>
    %c0_43 = arith.constant 0 : index
    %c128_44 = arith.constant 128 : index
    %c0_45 = arith.constant 0 : index
    %104 = vector.load %arg1[%c0_43, %c128_44, %c0_45] : memref<2x264x512xf32, #tpu.memory_space<vmem>>, vector<1x128x512xf32>
    %105 = vector.shape_cast %104 : vector<1x128x512xf32> to vector<128x512xf32>
    %cst_46 = arith.constant dense<0.000000e+00> : vector<8x512xf32>
    %106 = tpu.matmul %102, %105, %cst_46 {dimension_numbers = #tpu.dot_dimension_numbers<[1], [0], [0], [1], [0, 0, 1, 1], [], []>} : vector<8x128xf32>, vector<128x512xf32>, vector<8x512xf32> -> vector<8x512xf32>
    %107 = arith.addf %103, %106 : vector<8x512xf32>
    %108 = vector.extract_strided_slice %107 {offsets = [0, 0], sizes = [8, 384], strides = [1, 1]} : vector<8x512xf32> to vector<8x384xf32>
    %cst_47 = arith.constant 0.000000e+00 : f32
    %109 = vector.broadcast %cst_47 : f32 to vector<8x384xf32>
    %110 = arith.subf %109, %108 : vector<8x384xf32>
    %111 = math.exp %110 : vector<8x384xf32>
    %cst_48 = arith.constant 1.000000e+00 : f32
    %112 = vector.broadcast %cst_48 : f32 to vector<8x384xf32>
    %113 = arith.addf %112, %111 : vector<8x384xf32>
    %cst_49 = arith.constant 1.000000e+00 : f32
    %114 = vector.broadcast %cst_49 : f32 to vector<8x384xf32>
    %115 = arith.divf %114, %113 : vector<8x384xf32>
    %116 = vector.extract_strided_slice %107 {offsets = [0, 384], sizes = [8, 128], strides = [1, 1]} : vector<8x512xf32> to vector<8x128xf32>
    %117 = math.tanh %116 : vector<8x128xf32>
    %118 = vector.extract_strided_slice %115 {offsets = [0, 0], sizes = [8, 128], strides = [1, 1]} : vector<8x384xf32> to vector<8x128xf32>
    %119 = vector.extract_strided_slice %115 {offsets = [0, 128], sizes = [8, 128], strides = [1, 1]} : vector<8x384xf32> to vector<8x128xf32>
    %120 = vector.extract_strided_slice %115 {offsets = [0, 256], sizes = [8, 128], strides = [1, 1]} : vector<8x384xf32> to vector<8x128xf32>
    %121 = arith.mulf %119, %100 : vector<8x128xf32>
    %122 = arith.mulf %118, %117 : vector<8x128xf32>
    %123 = arith.addf %121, %122 : vector<8x128xf32>
    %124 = math.tanh %123 : vector<8x128xf32>
    %125 = arith.mulf %120, %124 : vector<8x128xf32>
    %c40 = arith.constant 40 : index
    %c0_50 = arith.constant 0 : index
    %126 = vector.load %arg4[%c40, %c0_50] : memref<64x512xf32, #tpu.memory_space<vmem>>, vector<8x512xf32>
    %c0_51 = arith.constant 0 : index
    %c128_52 = arith.constant 128 : index
    %c0_53 = arith.constant 0 : index
    %127 = vector.load %arg1[%c0_51, %c128_52, %c0_53] : memref<2x264x512xf32, #tpu.memory_space<vmem>>, vector<1x128x512xf32>
    %128 = vector.shape_cast %127 : vector<1x128x512xf32> to vector<128x512xf32>
    %cst_54 = arith.constant dense<0.000000e+00> : vector<8x512xf32>
    %129 = tpu.matmul %125, %128, %cst_54 {dimension_numbers = #tpu.dot_dimension_numbers<[1], [0], [0], [1], [0, 0, 1, 1], [], []>} : vector<8x128xf32>, vector<128x512xf32>, vector<8x512xf32> -> vector<8x512xf32>
    %130 = arith.addf %126, %129 : vector<8x512xf32>
    %131 = vector.extract_strided_slice %130 {offsets = [0, 0], sizes = [8, 384], strides = [1, 1]} : vector<8x512xf32> to vector<8x384xf32>
    %cst_55 = arith.constant 0.000000e+00 : f32
    %132 = vector.broadcast %cst_55 : f32 to vector<8x384xf32>
    %133 = arith.subf %132, %131 : vector<8x384xf32>
    %134 = math.exp %133 : vector<8x384xf32>
    %cst_56 = arith.constant 1.000000e+00 : f32
    %135 = vector.broadcast %cst_56 : f32 to vector<8x384xf32>
    %136 = arith.addf %135, %134 : vector<8x384xf32>
    %cst_57 = arith.constant 1.000000e+00 : f32
    %137 = vector.broadcast %cst_57 : f32 to vector<8x384xf32>
    %138 = arith.divf %137, %136 : vector<8x384xf32>
    %139 = vector.extract_strided_slice %130 {offsets = [0, 384], sizes = [8, 128], strides = [1, 1]} : vector<8x512xf32> to vector<8x128xf32>
    %140 = math.tanh %139 : vector<8x128xf32>
    %141 = vector.extract_strided_slice %138 {offsets = [0, 0], sizes = [8, 128], strides = [1, 1]} : vector<8x384xf32> to vector<8x128xf32>
    %142 = vector.extract_strided_slice %138 {offsets = [0, 128], sizes = [8, 128], strides = [1, 1]} : vector<8x384xf32> to vector<8x128xf32>
    %143 = vector.extract_strided_slice %138 {offsets = [0, 256], sizes = [8, 128], strides = [1, 1]} : vector<8x384xf32> to vector<8x128xf32>
    %144 = arith.mulf %142, %123 : vector<8x128xf32>
    %145 = arith.mulf %141, %140 : vector<8x128xf32>
    %146 = arith.addf %144, %145 : vector<8x128xf32>
    %147 = math.tanh %146 : vector<8x128xf32>
    %148 = arith.mulf %143, %147 : vector<8x128xf32>
    %c48 = arith.constant 48 : index
    %c0_58 = arith.constant 0 : index
    %149 = vector.load %arg4[%c48, %c0_58] : memref<64x512xf32, #tpu.memory_space<vmem>>, vector<8x512xf32>
    %c0_59 = arith.constant 0 : index
    %c128_60 = arith.constant 128 : index
    %c0_61 = arith.constant 0 : index
    %150 = vector.load %arg1[%c0_59, %c128_60, %c0_61] : memref<2x264x512xf32, #tpu.memory_space<vmem>>, vector<1x128x512xf32>
    %151 = vector.shape_cast %150 : vector<1x128x512xf32> to vector<128x512xf32>
    %cst_62 = arith.constant dense<0.000000e+00> : vector<8x512xf32>
    %152 = tpu.matmul %148, %151, %cst_62 {dimension_numbers = #tpu.dot_dimension_numbers<[1], [0], [0], [1], [0, 0, 1, 1], [], []>} : vector<8x128xf32>, vector<128x512xf32>, vector<8x512xf32> -> vector<8x512xf32>
    %153 = arith.addf %149, %152 : vector<8x512xf32>
    %154 = vector.extract_strided_slice %153 {offsets = [0, 0], sizes = [8, 384], strides = [1, 1]} : vector<8x512xf32> to vector<8x384xf32>
    %cst_63 = arith.constant 0.000000e+00 : f32
    %155 = vector.broadcast %cst_63 : f32 to vector<8x384xf32>
    %156 = arith.subf %155, %154 : vector<8x384xf32>
    %157 = math.exp %156 : vector<8x384xf32>
    %cst_64 = arith.constant 1.000000e+00 : f32
    %158 = vector.broadcast %cst_64 : f32 to vector<8x384xf32>
    %159 = arith.addf %158, %157 : vector<8x384xf32>
    %cst_65 = arith.constant 1.000000e+00 : f32
    %160 = vector.broadcast %cst_65 : f32 to vector<8x384xf32>
    %161 = arith.divf %160, %159 : vector<8x384xf32>
    %162 = vector.extract_strided_slice %153 {offsets = [0, 384], sizes = [8, 128], strides = [1, 1]} : vector<8x512xf32> to vector<8x128xf32>
    %163 = math.tanh %162 : vector<8x128xf32>
    %164 = vector.extract_strided_slice %161 {offsets = [0, 0], sizes = [8, 128], strides = [1, 1]} : vector<8x384xf32> to vector<8x128xf32>
    %165 = vector.extract_strided_slice %161 {offsets = [0, 128], sizes = [8, 128], strides = [1, 1]} : vector<8x384xf32> to vector<8x128xf32>
    %166 = vector.extract_strided_slice %161 {offsets = [0, 256], sizes = [8, 128], strides = [1, 1]} : vector<8x384xf32> to vector<8x128xf32>
    %167 = arith.mulf %165, %146 : vector<8x128xf32>
    %168 = arith.mulf %164, %163 : vector<8x128xf32>
    %169 = arith.addf %167, %168 : vector<8x128xf32>
    %170 = math.tanh %169 : vector<8x128xf32>
    %171 = arith.mulf %166, %170 : vector<8x128xf32>
    %c56 = arith.constant 56 : index
    %c0_66 = arith.constant 0 : index
    %172 = vector.load %arg4[%c56, %c0_66] : memref<64x512xf32, #tpu.memory_space<vmem>>, vector<8x512xf32>
    %c0_67 = arith.constant 0 : index
    %c128_68 = arith.constant 128 : index
    %c0_69 = arith.constant 0 : index
    %173 = vector.load %arg1[%c0_67, %c128_68, %c0_69] : memref<2x264x512xf32, #tpu.memory_space<vmem>>, vector<1x128x512xf32>
    %174 = vector.shape_cast %173 : vector<1x128x512xf32> to vector<128x512xf32>
    %cst_70 = arith.constant dense<0.000000e+00> : vector<8x512xf32>
    %175 = tpu.matmul %171, %174, %cst_70 {dimension_numbers = #tpu.dot_dimension_numbers<[1], [0], [0], [1], [0, 0, 1, 1], [], []>} : vector<8x128xf32>, vector<128x512xf32>, vector<8x512xf32> -> vector<8x512xf32>
    %176 = arith.addf %172, %175 : vector<8x512xf32>
    %177 = vector.extract_strided_slice %176 {offsets = [0, 0], sizes = [8, 384], strides = [1, 1]} : vector<8x512xf32> to vector<8x384xf32>
    %cst_71 = arith.constant 0.000000e+00 : f32
    %178 = vector.broadcast %cst_71 : f32 to vector<8x384xf32>
    %179 = arith.subf %178, %177 : vector<8x384xf32>
    %180 = math.exp %179 : vector<8x384xf32>
    %cst_72 = arith.constant 1.000000e+00 : f32
    %181 = vector.broadcast %cst_72 : f32 to vector<8x384xf32>
    %182 = arith.addf %181, %180 : vector<8x384xf32>
    %cst_73 = arith.constant 1.000000e+00 : f32
    %183 = vector.broadcast %cst_73 : f32 to vector<8x384xf32>
    %184 = arith.divf %183, %182 : vector<8x384xf32>
    %185 = vector.extract_strided_slice %176 {offsets = [0, 384], sizes = [8, 128], strides = [1, 1]} : vector<8x512xf32> to vector<8x128xf32>
    %186 = math.tanh %185 : vector<8x128xf32>
    %187 = vector.extract_strided_slice %184 {offsets = [0, 0], sizes = [8, 128], strides = [1, 1]} : vector<8x384xf32> to vector<8x128xf32>
    %188 = vector.extract_strided_slice %184 {offsets = [0, 128], sizes = [8, 128], strides = [1, 1]} : vector<8x384xf32> to vector<8x128xf32>
    %189 = vector.extract_strided_slice %184 {offsets = [0, 256], sizes = [8, 128], strides = [1, 1]} : vector<8x384xf32> to vector<8x128xf32>
    %190 = arith.mulf %188, %169 : vector<8x128xf32>
    %191 = arith.mulf %187, %186 : vector<8x128xf32>
    %192 = arith.addf %190, %191 : vector<8x128xf32>
    %193 = math.tanh %192 : vector<8x128xf32>
    %194 = arith.mulf %189, %193 : vector<8x128xf32>
    %195 = tpu.concatenate %33, %56, %79, %102, %125, %148, %171, %194 in 0 : vector<8x128xf32>, vector<8x128xf32>, vector<8x128xf32>, vector<8x128xf32>, vector<8x128xf32>, vector<8x128xf32>, vector<8x128xf32>, vector<8x128xf32> -> vector<64x128xf32>
    %c1 = arith.constant 1 : index
    %c256_74 = arith.constant 256 : index
    %c0_75 = arith.constant 0 : index
    %196 = vector.load %arg1[%c1, %c256_74, %c0_75] : memref<2x264x512xf32, #tpu.memory_space<vmem>>, vector<1x1x512xf32>
    %197 = vector.shape_cast %196 : vector<1x1x512xf32> to vector<1x512xf32>
    %c1_76 = arith.constant 1 : index
    %c0_77 = arith.constant 0 : index
    %c0_78 = arith.constant 0 : index
    %198 = vector.load %arg1[%c1_76, %c0_77, %c0_78] : memref<2x264x512xf32, #tpu.memory_space<vmem>>, vector<1x128x512xf32>
    %199 = vector.shape_cast %198 : vector<1x128x512xf32> to vector<128x512xf32>
    %cst_79 = arith.constant dense<0.000000e+00> : vector<64x512xf32>
    %200 = tpu.matmul %195, %199, %cst_79 {dimension_numbers = #tpu.dot_dimension_numbers<[1], [0], [0], [1], [0, 0, 1, 1], [], []>} : vector<64x128xf32>, vector<128x512xf32>, vector<64x512xf32> -> vector<64x512xf32>
    %201 = vector.broadcast %197 : vector<1x512xf32> to vector<64x512xf32>
    %202 = arith.addf %200, %201 : vector<64x512xf32>
    %c0_80 = arith.constant 0 : index
    %c0_81 = arith.constant 0 : index
    %203 = vector.load %arg4[%c0_80, %c0_81] : memref<64x512xf32, #tpu.memory_space<vmem>>, vector<64x512xf32>
    tpu.vector_store %arg4[%c0_80, %c0_81], %202 {strides = array<i32>} : memref<64x512xf32, #tpu.memory_space<vmem>>, vector<64x512xf32>,
    %cst_82 = arith.constant 0.000000e+00 : f32
    %204 = vector.broadcast %cst_82 : f32 to vector<8x128xf32>
    %cst_83 = arith.constant 0.000000e+00 : f32
    %205 = vector.broadcast %cst_83 : f32 to vector<8x128xf32>
    %c0_84 = arith.constant 0 : index
    %c0_85 = arith.constant 0 : index
    %206 = vector.load %arg4[%c0_84, %c0_85] : memref<64x512xf32, #tpu.memory_space<vmem>>, vector<8x512xf32>
    %c1_86 = arith.constant 1 : index
    %c128_87 = arith.constant 128 : index
    %c0_88 = arith.constant 0 : index
    %207 = vector.load %arg1[%c1_86, %c128_87, %c0_88] : memref<2x264x512xf32, #tpu.memory_space<vmem>>, vector<1x128x512xf32>
    %208 = vector.shape_cast %207 : vector<1x128x512xf32> to vector<128x512xf32>
    %cst_89 = arith.constant dense<0.000000e+00> : vector<8x512xf32>
    %209 = tpu.matmul %204, %208, %cst_89 {dimension_numbers = #tpu.dot_dimension_numbers<[1], [0], [0], [1], [0, 0, 1, 1], [], []>} : vector<8x128xf32>, vector<128x512xf32>, vector<8x512xf32> -> vector<8x512xf32>
    %210 = arith.addf %206, %209 : vector<8x512xf32>
    %211 = vector.extract_strided_slice %210 {offsets = [0, 0], sizes = [8, 384], strides = [1, 1]} : vector<8x512xf32> to vector<8x384xf32>
    %cst_90 = arith.constant 0.000000e+00 : f32
    %212 = vector.broadcast %cst_90 : f32 to vector<8x384xf32>
    %213 = arith.subf %212, %211 : vector<8x384xf32>
    %214 = math.exp %213 : vector<8x384xf32>
    %cst_91 = arith.constant 1.000000e+00 : f32
    %215 = vector.broadcast %cst_91 : f32 to vector<8x384xf32>
    %216 = arith.addf %215, %214 : vector<8x384xf32>
    %cst_92 = arith.constant 1.000000e+00 : f32
    %217 = vector.broadcast %cst_92 : f32 to vector<8x384xf32>
    %218 = arith.divf %217, %216 : vector<8x384xf32>
    %219 = vector.extract_strided_slice %210 {offsets = [0, 384], sizes = [8, 128], strides = [1, 1]} : vector<8x512xf32> to vector<8x128xf32>
    %220 = math.tanh %219 : vector<8x128xf32>
    %221 = vector.extract_strided_slice %218 {offsets = [0, 0], sizes = [8, 128], strides = [1, 1]} : vector<8x384xf32> to vector<8x128xf32>
    %222 = vector.extract_strided_slice %218 {offsets = [0, 128], sizes = [8, 128], strides = [1, 1]} : vector<8x384xf32> to vector<8x128xf32>
    %223 = vector.extract_strided_slice %218 {offsets = [0, 256], sizes = [8, 128], strides = [1, 1]} : vector<8x384xf32> to vector<8x128xf32>
    %224 = arith.mulf %222, %205 : vector<8x128xf32>
    %225 = arith.mulf %221, %220 : vector<8x128xf32>
    %226 = arith.addf %224, %225 : vector<8x128xf32>
    %227 = math.tanh %226 : vector<8x128xf32>
    %228 = arith.mulf %223, %227 : vector<8x128xf32>
    %c8_93 = arith.constant 8 : index
    %c0_94 = arith.constant 0 : index
    %229 = vector.load %arg4[%c8_93, %c0_94] : memref<64x512xf32, #tpu.memory_space<vmem>>, vector<8x512xf32>
    %c1_95 = arith.constant 1 : index
    %c128_96 = arith.constant 128 : index
    %c0_97 = arith.constant 0 : index
    %230 = vector.load %arg1[%c1_95, %c128_96, %c0_97] : memref<2x264x512xf32, #tpu.memory_space<vmem>>, vector<1x128x512xf32>
    %231 = vector.shape_cast %230 : vector<1x128x512xf32> to vector<128x512xf32>
    %cst_98 = arith.constant dense<0.000000e+00> : vector<8x512xf32>
    %232 = tpu.matmul %228, %231, %cst_98 {dimension_numbers = #tpu.dot_dimension_numbers<[1], [0], [0], [1], [0, 0, 1, 1], [], []>} : vector<8x128xf32>, vector<128x512xf32>, vector<8x512xf32> -> vector<8x512xf32>
    %233 = arith.addf %229, %232 : vector<8x512xf32>
    %234 = vector.extract_strided_slice %233 {offsets = [0, 0], sizes = [8, 384], strides = [1, 1]} : vector<8x512xf32> to vector<8x384xf32>
    %cst_99 = arith.constant 0.000000e+00 : f32
    %235 = vector.broadcast %cst_99 : f32 to vector<8x384xf32>
    %236 = arith.subf %235, %234 : vector<8x384xf32>
    %237 = math.exp %236 : vector<8x384xf32>
    %cst_100 = arith.constant 1.000000e+00 : f32
    %238 = vector.broadcast %cst_100 : f32 to vector<8x384xf32>
    %239 = arith.addf %238, %237 : vector<8x384xf32>
    %cst_101 = arith.constant 1.000000e+00 : f32
    %240 = vector.broadcast %cst_101 : f32 to vector<8x384xf32>
    %241 = arith.divf %240, %239 : vector<8x384xf32>
    %242 = vector.extract_strided_slice %233 {offsets = [0, 384], sizes = [8, 128], strides = [1, 1]} : vector<8x512xf32> to vector<8x128xf32>
    %243 = math.tanh %242 : vector<8x128xf32>
    %244 = vector.extract_strided_slice %241 {offsets = [0, 0], sizes = [8, 128], strides = [1, 1]} : vector<8x384xf32> to vector<8x128xf32>
    %245 = vector.extract_strided_slice %241 {offsets = [0, 128], sizes = [8, 128], strides = [1, 1]} : vector<8x384xf32> to vector<8x128xf32>
    %246 = vector.extract_strided_slice %241 {offsets = [0, 256], sizes = [8, 128], strides = [1, 1]} : vector<8x384xf32> to vector<8x128xf32>
    %247 = arith.mulf %245, %226 : vector<8x128xf32>
    %248 = arith.mulf %244, %243 : vector<8x128xf32>
    %249 = arith.addf %247, %248 : vector<8x128xf32>
    %250 = math.tanh %249 : vector<8x128xf32>
    %251 = arith.mulf %246, %250 : vector<8x128xf32>
    %c16_102 = arith.constant 16 : index
    %c0_103 = arith.constant 0 : index
    %252 = vector.load %arg4[%c16_102, %c0_103] : memref<64x512xf32, #tpu.memory_space<vmem>>, vector<8x512xf32>
    %c1_104 = arith.constant 1 : index
    %c128_105 = arith.constant 128 : index
    %c0_106 = arith.constant 0 : index
    %253 = vector.load %arg1[%c1_104, %c128_105, %c0_106] : memref<2x264x512xf32, #tpu.memory_space<vmem>>, vector<1x128x512xf32>
    %254 = vector.shape_cast %253 : vector<1x128x512xf32> to vector<128x512xf32>
    %cst_107 = arith.constant dense<0.000000e+00> : vector<8x512xf32>
    %255 = tpu.matmul %251, %254, %cst_107 {dimension_numbers = #tpu.dot_dimension_numbers<[1], [0], [0], [1], [0, 0, 1, 1], [], []>} : vector<8x128xf32>, vector<128x512xf32>, vector<8x512xf32> -> vector<8x512xf32>
    %256 = arith.addf %252, %255 : vector<8x512xf32>
    %257 = vector.extract_strided_slice %256 {offsets = [0, 0], sizes = [8, 384], strides = [1, 1]} : vector<8x512xf32> to vector<8x384xf32>
    %cst_108 = arith.constant 0.000000e+00 : f32
    %258 = vector.broadcast %cst_108 : f32 to vector<8x384xf32>
    %259 = arith.subf %258, %257 : vector<8x384xf32>
    %260 = math.exp %259 : vector<8x384xf32>
    %cst_109 = arith.constant 1.000000e+00 : f32
    %261 = vector.broadcast %cst_109 : f32 to vector<8x384xf32>
    %262 = arith.addf %261, %260 : vector<8x384xf32>
    %cst_110 = arith.constant 1.000000e+00 : f32
    %263 = vector.broadcast %cst_110 : f32 to vector<8x384xf32>
    %264 = arith.divf %263, %262 : vector<8x384xf32>
    %265 = vector.extract_strided_slice %256 {offsets = [0, 384], sizes = [8, 128], strides = [1, 1]} : vector<8x512xf32> to vector<8x128xf32>
    %266 = math.tanh %265 : vector<8x128xf32>
    %267 = vector.extract_strided_slice %264 {offsets = [0, 0], sizes = [8, 128], strides = [1, 1]} : vector<8x384xf32> to vector<8x128xf32>
    %268 = vector.extract_strided_slice %264 {offsets = [0, 128], sizes = [8, 128], strides = [1, 1]} : vector<8x384xf32> to vector<8x128xf32>
    %269 = vector.extract_strided_slice %264 {offsets = [0, 256], sizes = [8, 128], strides = [1, 1]} : vector<8x384xf32> to vector<8x128xf32>
    %270 = arith.mulf %268, %249 : vector<8x128xf32>
    %271 = arith.mulf %267, %266 : vector<8x128xf32>
    %272 = arith.addf %270, %271 : vector<8x128xf32>
    %273 = math.tanh %272 : vector<8x128xf32>
    %274 = arith.mulf %269, %273 : vector<8x128xf32>
    %c24_111 = arith.constant 24 : index
    %c0_112 = arith.constant 0 : index
    %275 = vector.load %arg4[%c24_111, %c0_112] : memref<64x512xf32, #tpu.memory_space<vmem>>, vector<8x512xf32>
    %c1_113 = arith.constant 1 : index
    %c128_114 = arith.constant 128 : index
    %c0_115 = arith.constant 0 : index
    %276 = vector.load %arg1[%c1_113, %c128_114, %c0_115] : memref<2x264x512xf32, #tpu.memory_space<vmem>>, vector<1x128x512xf32>
    %277 = vector.shape_cast %276 : vector<1x128x512xf32> to vector<128x512xf32>
    %cst_116 = arith.constant dense<0.000000e+00> : vector<8x512xf32>
    %278 = tpu.matmul %274, %277, %cst_116 {dimension_numbers = #tpu.dot_dimension_numbers<[1], [0], [0], [1], [0, 0, 1, 1], [], []>} : vector<8x128xf32>, vector<128x512xf32>, vector<8x512xf32> -> vector<8x512xf32>
    %279 = arith.addf %275, %278 : vector<8x512xf32>
    %280 = vector.extract_strided_slice %279 {offsets = [0, 0], sizes = [8, 384], strides = [1, 1]} : vector<8x512xf32> to vector<8x384xf32>
    %cst_117 = arith.constant 0.000000e+00 : f32
    %281 = vector.broadcast %cst_117 : f32 to vector<8x384xf32>
    %282 = arith.subf %281, %280 : vector<8x384xf32>
    %283 = math.exp %282 : vector<8x384xf32>
    %cst_118 = arith.constant 1.000000e+00 : f32
    %284 = vector.broadcast %cst_118 : f32 to vector<8x384xf32>
    %285 = arith.addf %284, %283 : vector<8x384xf32>
    %cst_119 = arith.constant 1.000000e+00 : f32
    %286 = vector.broadcast %cst_119 : f32 to vector<8x384xf32>
    %287 = arith.divf %286, %285 : vector<8x384xf32>
    %288 = vector.extract_strided_slice %279 {offsets = [0, 384], sizes = [8, 128], strides = [1, 1]} : vector<8x512xf32> to vector<8x128xf32>
    %289 = math.tanh %288 : vector<8x128xf32>
    %290 = vector.extract_strided_slice %287 {offsets = [0, 0], sizes = [8, 128], strides = [1, 1]} : vector<8x384xf32> to vector<8x128xf32>
    %291 = vector.extract_strided_slice %287 {offsets = [0, 128], sizes = [8, 128], strides = [1, 1]} : vector<8x384xf32> to vector<8x128xf32>
    %292 = vector.extract_strided_slice %287 {offsets = [0, 256], sizes = [8, 128], strides = [1, 1]} : vector<8x384xf32> to vector<8x128xf32>
    %293 = arith.mulf %291, %272 : vector<8x128xf32>
    %294 = arith.mulf %290, %289 : vector<8x128xf32>
    %295 = arith.addf %293, %294 : vector<8x128xf32>
    %296 = math.tanh %295 : vector<8x128xf32>
    %297 = arith.mulf %292, %296 : vector<8x128xf32>
    %c32_120 = arith.constant 32 : index
    %c0_121 = arith.constant 0 : index
    %298 = vector.load %arg4[%c32_120, %c0_121] : memref<64x512xf32, #tpu.memory_space<vmem>>, vector<8x512xf32>
    %c1_122 = arith.constant 1 : index
    %c128_123 = arith.constant 128 : index
    %c0_124 = arith.constant 0 : index
    %299 = vector.load %arg1[%c1_122, %c128_123, %c0_124] : memref<2x264x512xf32, #tpu.memory_space<vmem>>, vector<1x128x512xf32>
    %300 = vector.shape_cast %299 : vector<1x128x512xf32> to vector<128x512xf32>
    %cst_125 = arith.constant dense<0.000000e+00> : vector<8x512xf32>
    %301 = tpu.matmul %297, %300, %cst_125 {dimension_numbers = #tpu.dot_dimension_numbers<[1], [0], [0], [1], [0, 0, 1, 1], [], []>} : vector<8x128xf32>, vector<128x512xf32>, vector<8x512xf32> -> vector<8x512xf32>
    %302 = arith.addf %298, %301 : vector<8x512xf32>
    %303 = vector.extract_strided_slice %302 {offsets = [0, 0], sizes = [8, 384], strides = [1, 1]} : vector<8x512xf32> to vector<8x384xf32>
    %cst_126 = arith.constant 0.000000e+00 : f32
    %304 = vector.broadcast %cst_126 : f32 to vector<8x384xf32>
    %305 = arith.subf %304, %303 : vector<8x384xf32>
    %306 = math.exp %305 : vector<8x384xf32>
    %cst_127 = arith.constant 1.000000e+00 : f32
    %307 = vector.broadcast %cst_127 : f32 to vector<8x384xf32>
    %308 = arith.addf %307, %306 : vector<8x384xf32>
    %cst_128 = arith.constant 1.000000e+00 : f32
    %309 = vector.broadcast %cst_128 : f32 to vector<8x384xf32>
    %310 = arith.divf %309, %308 : vector<8x384xf32>
    %311 = vector.extract_strided_slice %302 {offsets = [0, 384], sizes = [8, 128], strides = [1, 1]} : vector<8x512xf32> to vector<8x128xf32>
    %312 = math.tanh %311 : vector<8x128xf32>
    %313 = vector.extract_strided_slice %310 {offsets = [0, 0], sizes = [8, 128], strides = [1, 1]} : vector<8x384xf32> to vector<8x128xf32>
    %314 = vector.extract_strided_slice %310 {offsets = [0, 128], sizes = [8, 128], strides = [1, 1]} : vector<8x384xf32> to vector<8x128xf32>
    %315 = vector.extract_strided_slice %310 {offsets = [0, 256], sizes = [8, 128], strides = [1, 1]} : vector<8x384xf32> to vector<8x128xf32>
    %316 = arith.mulf %314, %295 : vector<8x128xf32>
    %317 = arith.mulf %313, %312 : vector<8x128xf32>
    %318 = arith.addf %316, %317 : vector<8x128xf32>
    %319 = math.tanh %318 : vector<8x128xf32>
    %320 = arith.mulf %315, %319 : vector<8x128xf32>
    %c40_129 = arith.constant 40 : index
    %c0_130 = arith.constant 0 : index
    %321 = vector.load %arg4[%c40_129, %c0_130] : memref<64x512xf32, #tpu.memory_space<vmem>>, vector<8x512xf32>
    %c1_131 = arith.constant 1 : index
    %c128_132 = arith.constant 128 : index
    %c0_133 = arith.constant 0 : index
    %322 = vector.load %arg1[%c1_131, %c128_132, %c0_133] : memref<2x264x512xf32, #tpu.memory_space<vmem>>, vector<1x128x512xf32>
    %323 = vector.shape_cast %322 : vector<1x128x512xf32> to vector<128x512xf32>
    %cst_134 = arith.constant dense<0.000000e+00> : vector<8x512xf32>
    %324 = tpu.matmul %320, %323, %cst_134 {dimension_numbers = #tpu.dot_dimension_numbers<[1], [0], [0], [1], [0, 0, 1, 1], [], []>} : vector<8x128xf32>, vector<128x512xf32>, vector<8x512xf32> -> vector<8x512xf32>
    %325 = arith.addf %321, %324 : vector<8x512xf32>
    %326 = vector.extract_strided_slice %325 {offsets = [0, 0], sizes = [8, 384], strides = [1, 1]} : vector<8x512xf32> to vector<8x384xf32>
    %cst_135 = arith.constant 0.000000e+00 : f32
    %327 = vector.broadcast %cst_135 : f32 to vector<8x384xf32>
    %328 = arith.subf %327, %326 : vector<8x384xf32>
    %329 = math.exp %328 : vector<8x384xf32>
    %cst_136 = arith.constant 1.000000e+00 : f32
    %330 = vector.broadcast %cst_136 : f32 to vector<8x384xf32>
    %331 = arith.addf %330, %329 : vector<8x384xf32>
    %cst_137 = arith.constant 1.000000e+00 : f32
    %332 = vector.broadcast %cst_137 : f32 to vector<8x384xf32>
    %333 = arith.divf %332, %331 : vector<8x384xf32>
    %334 = vector.extract_strided_slice %325 {offsets = [0, 384], sizes = [8, 128], strides = [1, 1]} : vector<8x512xf32> to vector<8x128xf32>
    %335 = math.tanh %334 : vector<8x128xf32>
    %336 = vector.extract_strided_slice %333 {offsets = [0, 0], sizes = [8, 128], strides = [1, 1]} : vector<8x384xf32> to vector<8x128xf32>
    %337 = vector.extract_strided_slice %333 {offsets = [0, 128], sizes = [8, 128], strides = [1, 1]} : vector<8x384xf32> to vector<8x128xf32>
    %338 = vector.extract_strided_slice %333 {offsets = [0, 256], sizes = [8, 128], strides = [1, 1]} : vector<8x384xf32> to vector<8x128xf32>
    %339 = arith.mulf %337, %318 : vector<8x128xf32>
    %340 = arith.mulf %336, %335 : vector<8x128xf32>
    %341 = arith.addf %339, %340 : vector<8x128xf32>
    %342 = math.tanh %341 : vector<8x128xf32>
    %343 = arith.mulf %338, %342 : vector<8x128xf32>
    %c48_138 = arith.constant 48 : index
    %c0_139 = arith.constant 0 : index
    %344 = vector.load %arg4[%c48_138, %c0_139] : memref<64x512xf32, #tpu.memory_space<vmem>>, vector<8x512xf32>
    %c1_140 = arith.constant 1 : index
    %c128_141 = arith.constant 128 : index
    %c0_142 = arith.constant 0 : index
    %345 = vector.load %arg1[%c1_140, %c128_141, %c0_142] : memref<2x264x512xf32, #tpu.memory_space<vmem>>, vector<1x128x512xf32>
    %346 = vector.shape_cast %345 : vector<1x128x512xf32> to vector<128x512xf32>
    %cst_143 = arith.constant dense<0.000000e+00> : vector<8x512xf32>
    %347 = tpu.matmul %343, %346, %cst_143 {dimension_numbers = #tpu.dot_dimension_numbers<[1], [0], [0], [1], [0, 0, 1, 1], [], []>} : vector<8x128xf32>, vector<128x512xf32>, vector<8x512xf32> -> vector<8x512xf32>
    %348 = arith.addf %344, %347 : vector<8x512xf32>
    %349 = vector.extract_strided_slice %348 {offsets = [0, 0], sizes = [8, 384], strides = [1, 1]} : vector<8x512xf32> to vector<8x384xf32>
    %cst_144 = arith.constant 0.000000e+00 : f32
    %350 = vector.broadcast %cst_144 : f32 to vector<8x384xf32>
    %351 = arith.subf %350, %349 : vector<8x384xf32>
    %352 = math.exp %351 : vector<8x384xf32>
    %cst_145 = arith.constant 1.000000e+00 : f32
    %353 = vector.broadcast %cst_145 : f32 to vector<8x384xf32>
    %354 = arith.addf %353, %352 : vector<8x384xf32>
    %cst_146 = arith.constant 1.000000e+00 : f32
    %355 = vector.broadcast %cst_146 : f32 to vector<8x384xf32>
    %356 = arith.divf %355, %354 : vector<8x384xf32>
    %357 = vector.extract_strided_slice %348 {offsets = [0, 384], sizes = [8, 128], strides = [1, 1]} : vector<8x512xf32> to vector<8x128xf32>
    %358 = math.tanh %357 : vector<8x128xf32>
    %359 = vector.extract_strided_slice %356 {offsets = [0, 0], sizes = [8, 128], strides = [1, 1]} : vector<8x384xf32> to vector<8x128xf32>
    %360 = vector.extract_strided_slice %356 {offsets = [0, 128], sizes = [8, 128], strides = [1, 1]} : vector<8x384xf32> to vector<8x128xf32>
    %361 = vector.extract_strided_slice %356 {offsets = [0, 256], sizes = [8, 128], strides = [1, 1]} : vector<8x384xf32> to vector<8x128xf32>
    %362 = arith.mulf %360, %341 : vector<8x128xf32>
    %363 = arith.mulf %359, %358 : vector<8x128xf32>
    %364 = arith.addf %362, %363 : vector<8x128xf32>
    %365 = math.tanh %364 : vector<8x128xf32>
    %366 = arith.mulf %361, %365 : vector<8x128xf32>
    %c56_147 = arith.constant 56 : index
    %c0_148 = arith.constant 0 : index
    %367 = vector.load %arg4[%c56_147, %c0_148] : memref<64x512xf32, #tpu.memory_space<vmem>>, vector<8x512xf32>
    %c1_149 = arith.constant 1 : index
    %c128_150 = arith.constant 128 : index
    %c0_151 = arith.constant 0 : index
    %368 = vector.load %arg1[%c1_149, %c128_150, %c0_151] : memref<2x264x512xf32, #tpu.memory_space<vmem>>, vector<1x128x512xf32>
    %369 = vector.shape_cast %368 : vector<1x128x512xf32> to vector<128x512xf32>
    %cst_152 = arith.constant dense<0.000000e+00> : vector<8x512xf32>
    %370 = tpu.matmul %366, %369, %cst_152 {dimension_numbers = #tpu.dot_dimension_numbers<[1], [0], [0], [1], [0, 0, 1, 1], [], []>} : vector<8x128xf32>, vector<128x512xf32>, vector<8x512xf32> -> vector<8x512xf32>
    %371 = arith.addf %367, %370 : vector<8x512xf32>
    %372 = vector.extract_strided_slice %371 {offsets = [0, 0], sizes = [8, 384], strides = [1, 1]} : vector<8x512xf32> to vector<8x384xf32>
    %cst_153 = arith.constant 0.000000e+00 : f32
    %373 = vector.broadcast %cst_153 : f32 to vector<8x384xf32>
    %374 = arith.subf %373, %372 : vector<8x384xf32>
    %375 = math.exp %374 : vector<8x384xf32>
    %cst_154 = arith.constant 1.000000e+00 : f32
    %376 = vector.broadcast %cst_154 : f32 to vector<8x384xf32>
    %377 = arith.addf %376, %375 : vector<8x384xf32>
    %cst_155 = arith.constant 1.000000e+00 : f32
    %378 = vector.broadcast %cst_155 : f32 to vector<8x384xf32>
    %379 = arith.divf %378, %377 : vector<8x384xf32>
    %380 = vector.extract_strided_slice %371 {offsets = [0, 384], sizes = [8, 128], strides = [1, 1]} : vector<8x512xf32> to vector<8x128xf32>
    %381 = math.tanh %380 : vector<8x128xf32>
    %382 = vector.extract_strided_slice %379 {offsets = [0, 0], sizes = [8, 128], strides = [1, 1]} : vector<8x384xf32> to vector<8x128xf32>
    %383 = vector.extract_strided_slice %379 {offsets = [0, 128], sizes = [8, 128], strides = [1, 1]} : vector<8x384xf32> to vector<8x128xf32>
    %384 = vector.extract_strided_slice %379 {offsets = [0, 256], sizes = [8, 128], strides = [1, 1]} : vector<8x384xf32> to vector<8x128xf32>
    %385 = arith.mulf %383, %364 : vector<8x128xf32>
    %386 = arith.mulf %382, %381 : vector<8x128xf32>
    %387 = arith.addf %385, %386 : vector<8x128xf32>
    %388 = math.tanh %387 : vector<8x128xf32>
    %389 = arith.mulf %384, %388 : vector<8x128xf32>
    %c0_156 = arith.constant 0 : index
    %c0_157 = arith.constant 0 : index
    %390 = vector.load %arg2[%c0_156, %c0_157] : memref<136x128xf32, #tpu.memory_space<vmem>>, vector<128x128xf32>
    %cst_158 = arith.constant dense<0.000000e+00> : vector<8x128xf32>
    %391 = tpu.matmul %389, %390, %cst_158 {dimension_numbers = #tpu.dot_dimension_numbers<[1], [0], [0], [1], [0, 0, 1, 1], [], []>} : vector<8x128xf32>, vector<128x128xf32>, vector<8x128xf32> -> vector<8x128xf32>
    %c128_159 = arith.constant 128 : index
    %c0_160 = arith.constant 0 : index
    %392 = vector.load %arg2[%c128_159, %c0_160] : memref<136x128xf32, #tpu.memory_space<vmem>>, vector<1x128xf32>
    %393 = vector.broadcast %392 : vector<1x128xf32> to vector<8x128xf32>
    %394 = arith.addf %391, %393 : vector<8x128xf32>
    %c0_161 = arith.constant 0 : index
    %c0_162 = arith.constant 0 : index
    %395 = vector.load %arg3[%c0_161, %c0_162] : memref<8x128xf32, #tpu.memory_space<vmem>>, vector<8x128xf32>
    tpu.vector_store %arg3[%c0_161, %c0_162], %394 {strides = array<i32>} : memref<8x128xf32, #tpu.memory_space<vmem>>, vector<8x128xf32>,
    return
  }
}

</mosaic_0001>

<llo_original>
// kernel: model_forward.1
$region0: #{model_forward.1}
  #allocation0 [shape = 'u32[]', space=smem, size = 0x4, offset = 0x4, fixed_abs, tag = 'smem constant byte address 0x4 - core index']
  #allocation1 [shape = 'u32[72,128]{1,0:T(1,128)}', space=vmem, size = 0x9000, scoped, tag = 'internal scratch']
  #allocation2 [shape = 'f32[64,512]{1,0:T(8,128)}', space=vmem, size = 0x20000, scoped, tag = 'scratch operand']
  %s0 = inlined_call_operand.vmem [shape: f32[64,128], index: 0, kind: input, shape index: {}]
  %s1 = inlined_call_operand.hbm [shape: f32[2,264,512], index: 1, kind: input, shape index: {}]
  %s2 = inlined_call_operand.hbm [shape: f32[136,128], index: 2, kind: input, shape index: {}]
  %s3 = inlined_call_operand.vmem [shape: f32[8,128], index: 3, kind: output, shape index: {}]
  %s4 = sld [smem:[#allocation0]]
  $region30: #{model_forward.1} parent=0
    _
  %s6 = ssub.s32 1, %s4
  %s7 = scalar_select 0, %s6, %s4
  $region1: #{model_forward.1} parent=0
    #allocation3 [shape = 'u8[1081344]{0}', space=vmem, size = 0x108000, scoped, tag = 'input window, operand 1, single buffered']
    #allocation4 [shape = 's32[1]{0}', space=sflag, size = 0x4, scoped, tag = 'scoped memory for model_forward.1']
    #allocation5 [shape = 'u8[69632]{0}', space=vmem, size = 0x11000, scoped, tag = 'input window, operand 2, single buffered']
    #allocation6 [shape = 's32[1]{0}', space=sflag, size = 0x4, scoped, tag = 'scoped memory for model_forward.1']
    %8 = vsyncpa [#allocation4], 0
    %9 = vsyncpa [#allocation6], 0
    // Predicated region
    $region2: #{model_forward.1} parent=1 // pred_check
      _
    $region3: #{model_forward.1} parent=1 // pred_check_branch
      %11 = sbr.rel (0) target = $region5
    $region4: #{model_forward.1} parent=1 // pred_region
      _
    $region5: #{model_forward.1} parent=1 // pred_fallthru
      _
    // Predicated region
    $region6: #{model_forward.1} parent=1 // pred_check
      _
    $region7: #{model_forward.1} parent=1 // pred_check_branch
      %13 = sbr.rel (0) target = $region9
    $region8: #{model_forward.1} parent=1 // pred_region
      %15 = vsyncadd [#allocation4], 0
      %s16 = sshll.u32 %s1, 4
      %s17 = int_to_ptr.hbm [resolvable:$true] %s16
      %s18 = sshll.u32 [#allocation3], 4
      %s19 = int_to_ptr.vmem [resolvable:$true] %s18
      %24 = dma.hbm_to_vmem [thread:$0]  %s17, 33792, %s19, [#allocation4], 512, 512, 32
    $region9: #{model_forward.1} parent=1 // pred_fallthru
      _
    // Predicated region
    $region10: #{model_forward.1} parent=1 // pred_check
      _
    $region11: #{model_forward.1} parent=1 // pred_check_branch
      %26 = sbr.rel (0) target = $region13
    $region12: #{model_forward.1} parent=1 // pred_region
      %28 = vsyncadd [#allocation6], 0
      %s29 = sshll.u32 %s2, 4
      %s30 = int_to_ptr.hbm [resolvable:$true] %s29
      %s31 = sshll.u32 [#allocation5], 4
      %s32 = int_to_ptr.vmem [resolvable:$true] %s31
      %37 = dma.hbm_to_vmem [thread:$0]  %s30, 2176, %s32, [#allocation6], 128, 128, 8
    $region13: #{model_forward.1} parent=1 // pred_fallthru
      _
    // Predicated region
    $region14: #{model_forward.1} parent=1 // pred_check
      _
    $region15: #{model_forward.1} parent=1 // pred_check_branch
      %39 = sbr.rel (0) target = $region17
    $region16: #{model_forward.1} parent=1 // pred_region
      %41 = dma.done [#allocation4], 33792
    $region17: #{model_forward.1} parent=1 // pred_fallthru
      _
    // Predicated region
    $region18: #{model_forward.1} parent=1 // pred_check
      _
    $region19: #{model_forward.1} parent=1 // pred_check_branch
      %43 = sbr.rel (0) target = $region21
    $region20: #{model_forward.1} parent=1 // pred_region
      %45 = dma.done [#allocation6], 2176
    $region21: #{model_forward.1} parent=1 // pred_fallthru
      _
    %v46 = vld [vmem:[%s0] sm:$0xff]
    %v47 = vld [vmem:[%s0 + $0x8] sm:$0xff]
    %v48 = vld [vmem:[%s0 + $0x10] sm:$0xff]
    %v49 = vld [vmem:[%s0 + $0x18] sm:$0xff]
    %v50 = vld [vmem:[%s0 + $0x20] sm:$0xff]
    %v51 = vld [vmem:[%s0 + $0x28] sm:$0xff]
    %v52 = vld [vmem:[%s0 + $0x30] sm:$0xff]
    %v53 = vld [vmem:[%s0 + $0x38] sm:$0xff]
    %s54 = scalar_lea.vmem [#allocation3], 1024
    %v55 = vld [vmem:[%s54] ss:$8 sm:$0xf]
    %v56 = vld [vmem:[#allocation3] sm:$0xff]
    %v57 = vld [vmem:[#allocation3 + $0x8] sm:$0xff]
    %v58 = vld [vmem:[#allocation3 + $0x10] sm:$0xff]
    %v59 = vld [vmem:[#allocation3 + $0x18] sm:$0xff]
    %v60 = vld [vmem:[#allocation3 + $0x20] sm:$0xff]
    %v61 = vld [vmem:[#allocation3 + $0x28] sm:$0xff]
    %v62 = vld [vmem:[#allocation3 + $0x30] sm:$0xff]
    %v63 = vld [vmem:[#allocation3 + $0x38] sm:$0xff]
    %v64 = vld [vmem:[#allocation3 + $0x40] sm:$0xff]
    %v65 = vld [vmem:[#allocation3 + $0x48] sm:$0xff]
    %v66 = vld [vmem:[#allocation3 + $0x50] sm:$0xff]
    %v67 = vld [vmem:[#allocation3 + $0x58] sm:$0xff]
    %v68 = vld [vmem:[#allocation3 + $0x60] sm:$0xff]
    %v69 = vld [vmem:[#allocation3 + $0x68] sm:$0xff]
    %v70 = vld [vmem:[#allocation3 + $0x70] sm:$0xff]
    %v71 = vld [vmem:[#allocation3 + $0x78] sm:$0xff]
    %v72 = vld [vmem:[#allocation3 + $0x80] sm:$0xff]
    %v73 = vld [vmem:[#allocation3 + $0x88] sm:$0xff]
    %v74 = vld [vmem:[#allocation3 + $0x90] sm:$0xff]
    %v75 = vld [vmem:[#allocation3 + $0x98] sm:$0xff]
    %v76 = vld [vmem:[#allocation3 + $0xa0] sm:$0xff]
    %v77 = vld [vmem:[#allocation3 + $0xa8] sm:$0xff]
    %v78 = vld [vmem:[#allocation3 + $0xb0] sm:$0xff]
    %v79 = vld [vmem:[#allocation3 + $0xb8] sm:$0xff]
    %v80 = vld [vmem:[#allocation3 + $0xc0] sm:$0xff]
    %v81 = vld [vmem:[#allocation3 + $0xc8] sm:$0xff]
    %v82 = vld [vmem:[#allocation3 + $0xd0] sm:$0xff]
    %v83 = vld [vmem:[#allocation3 + $0xd8] sm:$0xff]
    %v84 = vld [vmem:[#allocation3 + $0xe0] sm:$0xff]
    %v85 = vld [vmem:[#allocation3 + $0xe8] sm:$0xff]
    %v86 = vld [vmem:[#allocation3 + $0xf0] sm:$0xff]
    %v87 = vld [vmem:[#allocation3 + $0xf8] sm:$0xff]
    %v88 = vld [vmem:[#allocation3 + $0x100] sm:$0xff]
    %v89 = vld [vmem:[#allocation3 + $0x108] sm:$0xff]
    %v90 = vld [vmem:[#allocation3 + $0x110] sm:$0xff]
    %v91 = vld [vmem:[#allocation3 + $0x118] sm:$0xff]
    %v92 = vld [vmem:[#allocation3 + $0x120] sm:$0xff]
    %v93 = vld [vmem:[#allocation3 + $0x128] sm:$0xff]
    %v94 = vld [vmem:[#allocation3 + $0x130] sm:$0xff]
    %v95 = vld [vmem:[#allocation3 + $0x138] sm:$0xff]
    %v96 = vld [vmem:[#allocation3 + $0x140] sm:$0xff]
    %v97 = vld [vmem:[#allocation3 + $0x148] sm:$0xff]
    %v98 = vld [vmem:[#allocation3 + $0x150] sm:$0xff]
    %v99 = vld [vmem:[#allocation3 + $0x158] sm:$0xff]
    %v100 = vld [vmem:[#allocation3 + $0x160] sm:$0xff]
    %v101 = vld [vmem:[#allocation3 + $0x168] sm:$0xff]
    %v102 = vld [vmem:[#allocation3 + $0x170] sm:$0xff]
    %v103 = vld [vmem:[#allocation3 + $0x178] sm:$0xff]
    %v104 = vld [vmem:[#allocation3 + $0x180] sm:$0xff]
    %v105 = vld [vmem:[#allocation3 + $0x188] sm:$0xff]
    %v106 = vld [vmem:[#allocation3 + $0x190] sm:$0xff]
    %v107 = vld [vmem:[#allocation3 + $0x198] sm:$0xff]
    %v108 = vld [vmem:[#allocation3 + $0x1a0] sm:$0xff]
    %v109 = vld [vmem:[#allocation3 + $0x1a8] sm:$0xff]
    %v110 = vld [vmem:[#allocation3 + $0x1b0] sm:$0xff]
    %v111 = vld [vmem:[#allocation3 + $0x1b8] sm:$0xff]
    %v112 = vld [vmem:[#allocation3 + $0x1c0] sm:$0xff]
    %v113 = vld [vmem:[#allocation3 + $0x1c8] sm:$0xff]
    %v114 = vld [vmem:[#allocation3 + $0x1d0] sm:$0xff]
    %v115 = vld [vmem:[#allocation3 + $0x1d8] sm:$0xff]
    %v116 = vld [vmem:[#allocation3 + $0x1e0] sm:$0xff]
    %v117 = vld [vmem:[#allocation3 + $0x1e8] sm:$0xff]
    %v118 = vld [vmem:[#allocation3 + $0x1f0] sm:$0xff]
    %v119 = vld [vmem:[#allocation3 + $0x1f8] sm:$0xff]
    %v121 = vperm.slane %v55, 0
    %v122 = vperm.slane %v55, 1
    %v123 = vperm.slane %v55, 2
    %v124 = vperm.slane %v55, 3
    %129 = vmatpush.msra.mxu0 %v116
    %130 = vmatpush.msra.mxu0 %v112
    %131 = vmatpush.msra.mxu0 %v108
    %132 = vmatpush.msra.mxu0 %v104
    %133 = vmatpush.msra.mxu0 %v100
    %134 = vmatpush.msra.mxu0 %v96
    %135 = vmatpush.msra.mxu0 %v92
    %136 = vmatpush.msra.mxu0 %v88
    %137 = vmatpush.msra.mxu0 %v84
    %138 = vmatpush.msra.mxu0 %v80
    %139 = vmatpush.msra.mxu0 %v76
    %140 = vmatpush.msra.mxu0 %v72
    %141 = vmatpush.msra.mxu0 %v68
    %142 = vmatpush.msra.mxu0 %v64
    %143 = vmatpush.msra.mxu0 %v60
    %144 = vmatpush.msra.mxu0 %v56
    %145 = vmatmul.f32.gmra.mxu0 %v46
    %v146 = vpop.f32.mrf.mxu0
    %v147 = vadd.f32 %v121, %v146
    %148 = vmatmul.f32.gmra.mxu0 %v47
    %v149 = vpop.f32.mrf.mxu0
    %v150 = vadd.f32 %v121, %v149
    %151 = vmatmul.f32.gmra.mxu0 %v48
    %v152 = vpop.f32.mrf.mxu0
    %v153 = vadd.f32 %v121, %v152
    %154 = vmatmul.f32.gmra.mxu0 %v49
    %v155 = vpop.f32.mrf.mxu0
    %v156 = vadd.f32 %v121, %v155
    %157 = vmatmul.f32.gmra.mxu0 %v50
    %v158 = vpop.f32.mrf.mxu0
    %v159 = vadd.f32 %v121, %v158
    %160 = vmatmul.f32.gmra.mxu0 %v51
    %v161 = vpop.f32.mrf.mxu0
    %v162 = vadd.f32 %v121, %v161
    %163 = vmatmul.f32.gmra.mxu0 %v52
    %v164 = vpop.f32.mrf.mxu0
    %v165 = vadd.f32 %v121, %v164
    %166 = vmatmul.f32.gmra.mxu0 %v53
    %v167 = vpop.f32.mrf.mxu0
    %v168 = vadd.f32 %v121, %v167
    %169 = vdwg.mxu0
    %170 = vmatpush.msra.mxu0 %v117
    %171 = vmatpush.msra.mxu0 %v113
    %172 = vmatpush.msra.mxu0 %v109
    %173 = vmatpush.msra.mxu0 %v105
    %174 = vmatpush.msra.mxu0 %v101
    %175 = vmatpush.msra.mxu0 %v97
    %176 = vmatpush.msra.mxu0 %v93
    %177 = vmatpush.msra.mxu0 %v89
    %178 = vmatpush.msra.mxu0 %v85
    %179 = vmatpush.msra.mxu0 %v81
    %180 = vmatpush.msra.mxu0 %v77
    %181 = vmatpush.msra.mxu0 %v73
    %182 = vmatpush.msra.mxu0 %v69
    %183 = vmatpush.msra.mxu0 %v65
    %184 = vmatpush.msra.mxu0 %v61
    %185 = vmatpush.msra.mxu0 %v57
    %186 = vmatmul.f32.gmra.mxu0 %v46
    %v187 = vpop.f32.mrf.mxu0
    %v188 = vadd.f32 %v122, %v187
    %189 = vmatmul.f32.gmra.mxu0 %v47
    %v190 = vpop.f32.mrf.mxu0
    %v191 = vadd.f32 %v122, %v190
    %192 = vmatmul.f32.gmra.mxu0 %v48
    %v193 = vpop.f32.mrf.mxu0
    %v194 = vadd.f32 %v122, %v193
    %195 = vmatmul.f32.gmra.mxu0 %v49
    %v196 = vpop.f32.mrf.mxu0
    %v197 = vadd.f32 %v122, %v196
    %198 = vmatmul.f32.gmra.mxu0 %v50
    %v199 = vpop.f32.mrf.mxu0
    %v200 = vadd.f32 %v122, %v199
    %201 = vmatmul.f32.gmra.mxu0 %v51
    %v202 = vpop.f32.mrf.mxu0
    %v203 = vadd.f32 %v122, %v202
    %204 = vmatmul.f32.gmra.mxu0 %v52
    %v205 = vpop.f32.mrf.mxu0
    %v206 = vadd.f32 %v122, %v205
    %207 = vmatmul.f32.gmra.mxu0 %v53
    %v208 = vpop.f32.mrf.mxu0
    %v209 = vadd.f32 %v122, %v208
    %210 = vdwg.mxu0
    %211 = vmatpush.msra.mxu0 %v118
    %212 = vmatpush.msra.mxu0 %v114
    %213 = vmatpush.msra.mxu0 %v110
    %214 = vmatpush.msra.mxu0 %v106
    %215 = vmatpush.msra.mxu0 %v102
    %216 = vmatpush.msra.mxu0 %v98
    %217 = vmatpush.msra.mxu0 %v94
    %218 = vmatpush.msra.mxu0 %v90
    %219 = vmatpush.msra.mxu0 %v86
    %220 = vmatpush.msra.mxu0 %v82
    %221 = vmatpush.msra.mxu0 %v78
    %222 = vmatpush.msra.mxu0 %v74
    %223 = vmatpush.msra.mxu0 %v70
    %224 = vmatpush.msra.mxu0 %v66
    %225 = vmatpush.msra.mxu0 %v62
    %226 = vmatpush.msra.mxu0 %v58
    %227 = vmatmul.f32.gmra.mxu0 %v46
    %v228 = vpop.f32.mrf.mxu0
    %v229 = vadd.f32 %v123, %v228
    %230 = vmatmul.f32.gmra.mxu0 %v47
    %v231 = vpop.f32.mrf.mxu0
    %v232 = vadd.f32 %v123, %v231
    %233 = vmatmul.f32.gmra.mxu0 %v48
    %v234 = vpop.f32.mrf.mxu0
    %v235 = vadd.f32 %v123, %v234
    %236 = vmatmul.f32.gmra.mxu0 %v49
    %v237 = vpop.f32.mrf.mxu0
    %v238 = vadd.f32 %v123, %v237
    %239 = vmatmul.f32.gmra.mxu0 %v50
    %v240 = vpop.f32.mrf.mxu0
    %v241 = vadd.f32 %v123, %v240
    %242 = vmatmul.f32.gmra.mxu0 %v51
    %v243 = vpop.f32.mrf.mxu0
    %v244 = vadd.f32 %v123, %v243
    %245 = vmatmul.f32.gmra.mxu0 %v52
    %v246 = vpop.f32.mrf.mxu0
    %v247 = vadd.f32 %v123, %v246
    %248 = vmatmul.f32.gmra.mxu0 %v53
    %v249 = vpop.f32.mrf.mxu0
    %v250 = vadd.f32 %v123, %v249
    %251 = vdwg.mxu0
    %252 = vmatpush.msra.mxu0 %v119
    %253 = vmatpush.msra.mxu0 %v115
    %254 = vmatpush.msra.mxu0 %v111
    %255 = vmatpush.msra.mxu0 %v107
    %256 = vmatpush.msra.mxu0 %v103
    %257 = vmatpush.msra.mxu0 %v99
    %258 = vmatpush.msra.mxu0 %v95
    %259 = vmatpush.msra.mxu0 %v91
    %260 = vmatpush.msra.mxu0 %v87
    %261 = vmatpush.msra.mxu0 %v83
    %262 = vmatpush.msra.mxu0 %v79
    %263 = vmatpush.msra.mxu0 %v75
    %264 = vmatpush.msra.mxu0 %v71
    %265 = vmatpush.msra.mxu0 %v67
    %266 = vmatpush.msra.mxu0 %v63
    %267 = vmatpush.msra.mxu0 %v59
    %268 = vmatmul.f32.gmra.mxu0 %v46
    %v269 = vpop.f32.mrf.mxu0
    %v270 = vadd.f32 %v124, %v269
    %271 = vmatmul.f32.gmra.mxu0 %v47
    %v272 = vpop.f32.mrf.mxu0
    %v273 = vadd.f32 %v124, %v272
    %274 = vmatmul.f32.gmra.mxu0 %v48
    %v275 = vpop.f32.mrf.mxu0
    %v276 = vadd.f32 %v124, %v275
    %277 = vmatmul.f32.gmra.mxu0 %v49
    %v278 = vpop.f32.mrf.mxu0
    %v279 = vadd.f32 %v124, %v278
    %280 = vmatmul.f32.gmra.mxu0 %v50
    %v281 = vpop.f32.mrf.mxu0
    %v282 = vadd.f32 %v124, %v281
    %283 = vmatmul.f32.gmra.mxu0 %v51
    %v284 = vpop.f32.mrf.mxu0
    %v285 = vadd.f32 %v124, %v284
    %286 = vmatmul.f32.gmra.mxu0 %v52
    %v287 = vpop.f32.mrf.mxu0
    %v288 = vadd.f32 %v124, %v287
    %289 = vmatmul.f32.gmra.mxu0 %v53
    %v290 = vpop.f32.mrf.mxu0
    %v291 = vadd.f32 %v124, %v290
    %292 = vdwg.mxu0
    %293 = vst [vmem:[#allocation2] sm:$0xff] %v147
    %294 = vst [vmem:[#allocation2 + $0x8] sm:$0xff] %v188
    %295 = vst [vmem:[#allocation2 + $0x10] sm:$0xff] %v229
    %296 = vst [vmem:[#allocation2 + $0x18] sm:$0xff] %v270
    %297 = vst [vmem:[#allocation2 + $0x20] sm:$0xff] %v150
    %298 = vst [vmem:[#allocation2 + $0x28] sm:$0xff] %v191
    %299 = vst [vmem:[#allocation2 + $0x30] sm:$0xff] %v232
    %300 = vst [vmem:[#allocation2 + $0x38] sm:$0xff] %v273
    %301 = vst [vmem:[#allocation2 + $0x40] sm:$0xff] %v153
    %302 = vst [vmem:[#allocation2 + $0x48] sm:$0xff] %v194
    %303 = vst [vmem:[#allocation2 + $0x50] sm:$0xff] %v235
    %304 = vst [vmem:[#allocation2 + $0x58] sm:$0xff] %v276
    %305 = vst [vmem:[#allocation2 + $0x60] sm:$0xff] %v156
    %306 = vst [vmem:[#allocation2 + $0x68] sm:$0xff] %v197
    %307 = vst [vmem:[#allocation2 + $0x70] sm:$0xff] %v238
    %308 = vst [vmem:[#allocation2 + $0x78] sm:$0xff] %v279
    %309 = vst [vmem:[#allocation2 + $0x80] sm:$0xff] %v159
    %310 = vst [vmem:[#allocation2 + $0x88] sm:$0xff] %v200
    %311 = vst [vmem:[#allocation2 + $0x90] sm:$0xff] %v241
    %312 = vst [vmem:[#allocation2 + $0x98] sm:$0xff] %v282
    %313 = vst [vmem:[#allocation2 + $0xa0] sm:$0xff] %v162
    %314 = vst [vmem:[#allocation2 + $0xa8] sm:$0xff] %v203
    %315 = vst [vmem:[#allocation2 + $0xb0] sm:$0xff] %v244
    %316 = vst [vmem:[#allocation2 + $0xb8] sm:$0xff] %v285
    %317 = vst [vmem:[#allocation2 + $0xc0] sm:$0xff] %v165
    %318 = vst [vmem:[#allocation2 + $0xc8] sm:$0xff] %v206
    %319 = vst [vmem:[#allocation2 + $0xd0] sm:$0xff] %v247
    %320 = vst [vmem:[#allocation2 + $0xd8] sm:$0xff] %v288
    %321 = vst [vmem:[#allocation2 + $0xe0] sm:$0xff] %v168
    %322 = vst [vmem:[#allocation2 + $0xe8] sm:$0xff] %v209
    %323 = vst [vmem:[#allocation2 + $0xf0] sm:$0xff] %v250
    %324 = vst [vmem:[#allocation2 + $0xf8] sm:$0xff] %v291
    %v325 = vld [vmem:[#allocation2] sm:$0xff]
    %v326 = vld [vmem:[#allocation2 + $0x8] sm:$0xff]
    %v327 = vld [vmem:[#allocation2 + $0x10] sm:$0xff]
    %v328 = vld [vmem:[#allocation2 + $0x18] sm:$0xff]
    %v329 = vld [vmem:[#allocation3 + $0x200] sm:$0xff]
    %v330 = vld [vmem:[#allocation3 + $0x208] sm:$0xff]
    %v331 = vld [vmem:[#allocation3 + $0x210] sm:$0xff]
    %v332 = vld [vmem:[#allocation3 + $0x218] sm:$0xff]
    %v333 = vld [vmem:[#allocation3 + $0x220] sm:$0xff]
    %v334 = vld [vmem:[#allocation3 + $0x228] sm:$0xff]
    %v335 = vld [vmem:[#allocation3 + $0x230] sm:$0xff]
    %v336 = vld [vmem:[#allocation3 + $0x238] sm:$0xff]
    %v337 = vld [vmem:[#allocation3 + $0x240] sm:$0xff]
    %v338 = vld [vmem:[#allocation3 + $0x248] sm:$0xff]
    %v339 = vld [vmem:[#allocation3 + $0x250] sm:$0xff]
    %v340 = vld [vmem:[#allocation3 + $0x258] sm:$0xff]
    %v341 = vld [vmem:[#allocation3 + $0x260] sm:$0xff]
    %v342 = vld [vmem:[#allocation3 + $0x268] sm:$0xff]
    %v343 = vld [vmem:[#allocation3 + $0x270] sm:$0xff]
    %v344 = vld [vmem:[#allocation3 + $0x278] sm:$0xff]
    %v345 = vld [vmem:[#allocation3 + $0x280] sm:$0xff]
    %v346 = vld [vmem:[#allocation3 + $0x288] sm:$0xff]
    %v347 = vld [vmem:[#allocation3 + $0x290] sm:$0xff]
    %v348 = vld [vmem:[#allocation3 + $0x298] sm:$0xff]
    %v349 = vld [vmem:[#allocation3 + $0x2a0] sm:$0xff]
    %v350 = vld [vmem:[#allocation3 + $0x2a8] sm:$0xff]
    %v351 = vld [vmem:[#allocation3 + $0x2b0] sm:$0xff]
    %v352 = vld [vmem:[#allocation3 + $0x2b8] sm:$0xff]
    %v353 = vld [vmem:[#allocation3 + $0x2c0] sm:$0xff]
    %v354 = vld [vmem:[#allocation3 + $0x2c8] sm:$0xff]
    %v355 = vld [vmem:[#allocation3 + $0x2d0] sm:$0xff]
    %v356 = vld [vmem:[#allocation3 + $0x2d8] sm:$0xff]
    %v357 = vld [vmem:[#allocation3 + $0x2e0] sm:$0xff]
    %v358 = vld [vmem:[#allocation3 + $0x2e8] sm:$0xff]
    %v359 = vld [vmem:[#allocation3 + $0x2f0] sm:$0xff]
    %v360 = vld [vmem:[#allocation3 + $0x2f8] sm:$0xff]
    %v361 = vld [vmem:[#allocation3 + $0x300] sm:$0xff]
    %v362 = vld [vmem:[#allocation3 + $0x308] sm:$0xff]
    %v363 = vld [vmem:[#allocation3 + $0x310] sm:$0xff]
    %v364 = vld [vmem:[#allocation3 + $0x318] sm:$0xff]
    %v365 = vld [vmem:[#allocation3 + $0x320] sm:$0xff]
    %v366 = vld [vmem:[#allocation3 + $0x328] sm:$0xff]
    %v367 = vld [vmem:[#allocation3 + $0x330] sm:$0xff]
    %v368 = vld [vmem:[#allocation3 + $0x338] sm:$0xff]
    %v369 = vld [vmem:[#allocation3 + $0x340] sm:$0xff]
    %v370 = vld [vmem:[#allocation3 + $0x348] sm:$0xff]
    %v371 = vld [vmem:[#allocation3 + $0x350] sm:$0xff]
    %v372 = vld [vmem:[#allocation3 + $0x358] sm:$0xff]
    %v373 = vld [vmem:[#allocation3 + $0x360] sm:$0xff]
    %v374 = vld [vmem:[#allocation3 + $0x368] sm:$0xff]
    %v375 = vld [vmem:[#allocation3 + $0x370] sm:$0xff]
    %v376 = vld [vmem:[#allocation3 + $0x378] sm:$0xff]
    %v377 = vld [vmem:[#allocation3 + $0x380] sm:$0xff]
    %v378 = vld [vmem:[#allocation3 + $0x388] sm:$0xff]
    %v379 = vld [vmem:[#allocation3 + $0x390] sm:$0xff]
    %v380 = vld [vmem:[#allocation3 + $0x398] sm:$0xff]
    %v381 = vld [vmem:[#allocation3 + $0x3a0] sm:$0xff]
    %v382 = vld [vmem:[#allocation3 + $0x3a8] sm:$0xff]
    %v383 = vld [vmem:[#allocation3 + $0x3b0] sm:$0xff]
    %v384 = vld [vmem:[#allocation3 + $0x3b8] sm:$0xff]
    %v385 = vld [vmem:[#allocation3 + $0x3c0] sm:$0xff]
    %v386 = vld [vmem:[#allocation3 + $0x3c8] sm:$0xff]
    %v387 = vld [vmem:[#allocation3 + $0x3d0] sm:$0xff]
    %v388 = vld [vmem:[#allocation3 + $0x3d8] sm:$0xff]
    %v389 = vld [vmem:[#allocation3 + $0x3e0] sm:$0xff]
    %v390 = vld [vmem:[#allocation3 + $0x3e8] sm:$0xff]
    %v391 = vld [vmem:[#allocation3 + $0x3f0] sm:$0xff]
    %v392 = vld [vmem:[#allocation3 + $0x3f8] sm:$0xff]
    %393 = vmatpush.msra.mxu0 %v389
    %394 = vmatpush.msra.mxu0 %v385
    %395 = vmatpush.msra.mxu0 %v381
    %396 = vmatpush.msra.mxu0 %v377
    %397 = vmatpush.msra.mxu0 %v373
    %398 = vmatpush.msra.mxu0 %v369
    %399 = vmatpush.msra.mxu0 %v365
    %400 = vmatpush.msra.mxu0 %v361
    %401 = vmatpush.msra.mxu0 %v357
    %402 = vmatpush.msra.mxu0 %v353
    %403 = vmatpush.msra.mxu0 %v349
    %404 = vmatpush.msra.mxu0 %v345
    %405 = vmatpush.msra.mxu0 %v341
    %406 = vmatpush.msra.mxu0 %v337
    %407 = vmatpush.msra.mxu0 %v333
    %408 = vmatpush.msra.mxu0 %v329
    %409 = vmatmul.f32.gmra.mxu0 0.0
    %v410 = vpop.f32.mrf.mxu0
    %v411 = vadd.f32 0.0, %v410
    %412 = vdwg.mxu0
    %413 = vmatpush.msra.mxu0 %v390
    %414 = vmatpush.msra.mxu0 %v386
    %415 = vmatpush.msra.mxu0 %v382
    %416 = vmatpush.msra.mxu0 %v378
    %417 = vmatpush.msra.mxu0 %v374
    %418 = vmatpush.msra.mxu0 %v370
    %419 = vmatpush.msra.mxu0 %v366
    %420 = vmatpush.msra.mxu0 %v362
    %421 = vmatpush.msra.mxu0 %v358
    %422 = vmatpush.msra.mxu0 %v354
    %423 = vmatpush.msra.mxu0 %v350
    %424 = vmatpush.msra.mxu0 %v346
    %425 = vmatpush.msra.mxu0 %v342
    %426 = vmatpush.msra.mxu0 %v338
    %427 = vmatpush.msra.mxu0 %v334
    %428 = vmatpush.msra.mxu0 %v330
    %429 = vmatmul.f32.gmra.mxu0 0.0
    %v430 = vpop.f32.mrf.mxu0
    %v431 = vadd.f32 0.0, %v430
    %432 = vdwg.mxu0
    %433 = vmatpush.msra.mxu0 %v391
    %434 = vmatpush.msra.mxu0 %v387
    %435 = vmatpush.msra.mxu0 %v383
    %436 = vmatpush.msra.mxu0 %v379
    %437 = vmatpush.msra.mxu0 %v375
    %438 = vmatpush.msra.mxu0 %v371
    %439 = vmatpush.msra.mxu0 %v367
    %440 = vmatpush.msra.mxu0 %v363
    %441 = vmatpush.msra.mxu0 %v359
    %442 = vmatpush.msra.mxu0 %v355
    %443 = vmatpush.msra.mxu0 %v351
    %444 = vmatpush.msra.mxu0 %v347
    %445 = vmatpush.msra.mxu0 %v343
    %446 = vmatpush.msra.mxu0 %v339
    %447 = vmatpush.msra.mxu0 %v335
    %448 = vmatpush.msra.mxu0 %v331
    %449 = vmatmul.f32.gmra.mxu0 0.0
    %v450 = vpop.f32.mrf.mxu0
    %v451 = vadd.f32 0.0, %v450
    %452 = vdwg.mxu0
    %453 = vmatpush.msra.mxu0 %v392
    %454 = vmatpush.msra.mxu0 %v388
    %455 = vmatpush.msra.mxu0 %v384
    %456 = vmatpush.msra.mxu0 %v380
    %457 = vmatpush.msra.mxu0 %v376
    %458 = vmatpush.msra.mxu0 %v372
    %459 = vmatpush.msra.mxu0 %v368
    %460 = vmatpush.msra.mxu0 %v364
    %461 = vmatpush.msra.mxu0 %v360
    %462 = vmatpush.msra.mxu0 %v356
    %463 = vmatpush.msra.mxu0 %v352
    %464 = vmatpush.msra.mxu0 %v348
    %465 = vmatpush.msra.mxu0 %v344
    %466 = vmatpush.msra.mxu0 %v340
    %467 = vmatpush.msra.mxu0 %v336
    %468 = vmatpush.msra.mxu0 %v332
    %469 = vmatmul.f32.gmra.mxu0 0.0
    %v470 = vpop.f32.mrf.mxu0
    %v471 = vadd.f32 0.0, %v470
    %472 = vdwg.mxu0
    %v473 = vadd.f32 %v325, %v411
    %v474 = vadd.f32 %v326, %v431
    %v475 = vadd.f32 %v327, %v451
    %v476 = vadd.f32 %v328, %v471
    %v477 = vsub.f32 0.0, %v473
    %v478 = vsub.f32 0.0, %v474
    %v479 = vsub.f32 0.0, %v475
    %v480 = vmul.f32 %v477, 1.442695
    %v481 = vpow.pop %v480
    %v482 = vmul.f32 %v478, 1.442695
    %v483 = vpow.pop %v482
    %v484 = vmul.f32 %v479, 1.442695
    %v485 = vpow.pop %v484
    %v486 = vadd.f32 %v481, 1.0
    %v487 = vadd.f32 %v483, 1.0
    %v488 = vadd.f32 %v485, 1.0
    %v489 = vrcp.pop %v486
    %v490 = vmul.f32 %v486, %v489
    %v491 = vsub.f32 1.0, %v490
    %v492 = vmul.f32 %v489, %v491
    %v493 = vadd.f32 %v489, %v492
    %vm494 = vweird.f32 %v486
    %vm495 = vweird.f32 %v489
    %vm496 = vmor %vm494, %vm495
    %v497 = vsel %vm496, %v489, %v493
    %v498 = vand.u32 2147483647, %v486
    %vm499 = vcmp.eq.f32.partialorder %v498, 8.507059e+37
    %v500 = vand.u32 %v486, 2147483648
    %v501 = vor.u32 1.1754944e-38, %v500
    %v502 = vsel %vm499, %v501, %v497
    %v503 = vmul.f32 1.0, %v502
    %v504 = vrcp.pop %v487
    %v505 = vmul.f32 %v487, %v504
    %v506 = vsub.f32 1.0, %v505
    %v507 = vmul.f32 %v504, %v506
    %v508 = vadd.f32 %v504, %v507
    %vm509 = vweird.f32 %v487
    %vm510 = vweird.f32 %v504
    %vm511 = vmor %vm509, %vm510
    %v512 = vsel %vm511, %v504, %v508
    %v513 = vand.u32 2147483647, %v487
    %vm514 = vcmp.eq.f32.partialorder %v513, 8.507059e+37
    %v515 = vand.u32 %v487, 2147483648
    %v516 = vor.u32 1.1754944e-38, %v515
    %v517 = vsel %vm514, %v516, %v512
    %v518 = vmul.f32 1.0, %v517
    %v519 = vrcp.pop %v488
    %v520 = vmul.f32 %v488, %v519
    %v521 = vsub.f32 1.0, %v520
    %v522 = vmul.f32 %v519, %v521
    %v523 = vadd.f32 %v519, %v522
    %vm524 = vweird.f32 %v488
    %vm525 = vweird.f32 %v519
    %vm526 = vmor %vm524, %vm525
    %v527 = vsel %vm526, %v519, %v523
    %v528 = vand.u32 2147483647, %v488
    %vm529 = vcmp.eq.f32.partialorder %v528, 8.507059e+37
    %v530 = vand.u32 %v488, 2147483648
    %v531 = vor.u32 1.1754944e-38, %v530
    %v532 = vsel %vm529, %v531, %v527
    %v533 = vmul.f32 1.0, %v532
    %v534 = vtanh.pop %v476
    %v535 = vmul.f32 %v518, 0.0
    %v536 = vmul.f32 %v503, %v534
    %v537 = vadd.f32 %v535, %v536
    %v538 = vtanh.pop %v537
    %v539 = vmul.f32 %v533, %v538
    %v540 = vld [vmem:[#allocation2 + $0x20] sm:$0xff]
    %v541 = vld [vmem:[#allocation2 + $0x28] sm:$0xff]
    %v542 = vld [vmem:[#allocation2 + $0x30] sm:$0xff]
    %v543 = vld [vmem:[#allocation2 + $0x38] sm:$0xff]
    %544 = vmatpush.msra.mxu0 %v389
    %545 = vmatpush.msra.mxu0 %v385
    %546 = vmatpush.msra.mxu0 %v381
    %547 = vmatpush.msra.mxu0 %v377
    %548 = vmatpush.msra.mxu0 %v373
    %549 = vmatpush.msra.mxu0 %v369
    %550 = vmatpush.msra.mxu0 %v365
    %551 = vmatpush.msra.mxu0 %v361
    %552 = vmatpush.msra.mxu0 %v357
    %553 = vmatpush.msra.mxu0 %v353
    %554 = vmatpush.msra.mxu0 %v349
    %555 = vmatpush.msra.mxu0 %v345
    %556 = vmatpush.msra.mxu0 %v341
    %557 = vmatpush.msra.mxu0 %v337
    %558 = vmatpush.msra.mxu0 %v333
    %559 = vmatpush.msra.mxu0 %v329
    %560 = vmatmul.f32.gmra.mxu0 %v539
    %v561 = vpop.f32.mrf.mxu0
    %v562 = vadd.f32 0.0, %v561
    %563 = vdwg.mxu0
    %564 = vmatpush.msra.mxu0 %v390
    %565 = vmatpush.msra.mxu0 %v386
    %566 = vmatpush.msra.mxu0 %v382
    %567 = vmatpush.msra.mxu0 %v378
    %568 = vmatpush.msra.mxu0 %v374
    %569 = vmatpush.msra.mxu0 %v370
    %570 = vmatpush.msra.mxu0 %v366
    %571 = vmatpush.msra.mxu0 %v362
    %572 = vmatpush.msra.mxu0 %v358
    %573 = vmatpush.msra.mxu0 %v354
    %574 = vmatpush.msra.mxu0 %v350
    %575 = vmatpush.msra.mxu0 %v346
    %576 = vmatpush.msra.mxu0 %v342
    %577 = vmatpush.msra.mxu0 %v338
    %578 = vmatpush.msra.mxu0 %v334
    %579 = vmatpush.msra.mxu0 %v330
    %580 = vmatmul.f32.gmra.mxu0 %v539
    %v581 = vpop.f32.mrf.mxu0
    %v582 = vadd.f32 0.0, %v581
    %583 = vdwg.mxu0
    %584 = vmatpush.msra.mxu0 %v391
    %585 = vmatpush.msra.mxu0 %v387
    %586 = vmatpush.msra.mxu0 %v383
    %587 = vmatpush.msra.mxu0 %v379
    %588 = vmatpush.msra.mxu0 %v375
    %589 = vmatpush.msra.mxu0 %v371
    %590 = vmatpush.msra.mxu0 %v367
    %591 = vmatpush.msra.mxu0 %v363
    %592 = vmatpush.msra.mxu0 %v359
    %593 = vmatpush.msra.mxu0 %v355
    %594 = vmatpush.msra.mxu0 %v351
    %595 = vmatpush.msra.mxu0 %v347
    %596 = vmatpush.msra.mxu0 %v343
    %597 = vmatpush.msra.mxu0 %v339
    %598 = vmatpush.msra.mxu0 %v335
    %599 = vmatpush.msra.mxu0 %v331
    %600 = vmatmul.f32.gmra.mxu0 %v539
    %v601 = vpop.f32.mrf.mxu0
    %v602 = vadd.f32 0.0, %v601
    %603 = vdwg.mxu0
    %604 = vmatpush.msra.mxu0 %v392
    %605 = vmatpush.msra.mxu0 %v388
    %606 = vmatpush.msra.mxu0 %v384
    %607 = vmatpush.msra.mxu0 %v380
    %608 = vmatpush.msra.mxu0 %v376
    %609 = vmatpush.msra.mxu0 %v372
    %610 = vmatpush.msra.mxu0 %v368
    %611 = vmatpush.msra.mxu0 %v364
    %612 = vmatpush.msra.mxu0 %v360
    %613 = vmatpush.msra.mxu0 %v356
    %614 = vmatpush.msra.mxu0 %v352
    %615 = vmatpush.msra.mxu0 %v348
    %616 = vmatpush.msra.mxu0 %v344
    %617 = vmatpush.msra.mxu0 %v340
    %618 = vmatpush.msra.mxu0 %v336
    %619 = vmatpush.msra.mxu0 %v332
    %620 = vmatmul.f32.gmra.mxu0 %v539
    %v621 = vpop.f32.mrf.mxu0
    %v622 = vadd.f32 0.0, %v621
    %623 = vdwg.mxu0
    %v624 = vadd.f32 %v540, %v562
    %v625 = vadd.f32 %v541, %v582
    %v626 = vadd.f32 %v542, %v602
    %v627 = vadd.f32 %v543, %v622
    %v628 = vsub.f32 0.0, %v624
    %v629 = vsub.f32 0.0, %v625
    %v630 = vsub.f32 0.0, %v626
    %v631 = vmul.f32 %v628, 1.442695
    %v632 = vpow.pop %v631
    %v633 = vmul.f32 %v629, 1.442695
    %v634 = vpow.pop %v633
    %v635 = vmul.f32 %v630, 1.442695
    %v636 = vpow.pop %v635
    %v637 = vadd.f32 %v632, 1.0
    %v638 = vadd.f32 %v634, 1.0
    %v639 = vadd.f32 %v636, 1.0
    %v640 = vrcp.pop %v637
    %v641 = vmul.f32 %v637, %v640
    %v642 = vsub.f32 1.0, %v641
    %v643 = vmul.f32 %v640, %v642
    %v644 = vadd.f32 %v640, %v643
    %vm645 = vweird.f32 %v637
    %vm646 = vweird.f32 %v640
    %vm647 = vmor %vm645, %vm646
    %v648 = vsel %vm647, %v640, %v644
    %v649 = vand.u32 2147483647, %v637
    %vm650 = vcmp.eq.f32.partialorder %v649, 8.507059e+37
    %v651 = vand.u32 %v637, 2147483648
    %v652 = vor.u32 1.1754944e-38, %v651
    %v653 = vsel %vm650, %v652, %v648
    %v654 = vmul.f32 1.0, %v653
    %v655 = vrcp.pop %v638
    %v656 = vmul.f32 %v638, %v655
    %v657 = vsub.f32 1.0, %v656
    %v658 = vmul.f32 %v655, %v657
    %v659 = vadd.f32 %v655, %v658
    %vm660 = vweird.f32 %v638
    %vm661 = vweird.f32 %v655
    %vm662 = vmor %vm660, %vm661
    %v663 = vsel %vm662, %v655, %v659
    %v664 = vand.u32 2147483647, %v638
    %vm665 = vcmp.eq.f32.partialorder %v664, 8.507059e+37
    %v666 = vand.u32 %v638, 2147483648
    %v667 = vor.u32 1.1754944e-38, %v666
    %v668 = vsel %vm665, %v667, %v663
    %v669 = vmul.f32 1.0, %v668
    %v670 = vrcp.pop %v639
    %v671 = vmul.f32 %v639, %v670
    %v672 = vsub.f32 1.0, %v671
    %v673 = vmul.f32 %v670, %v672
    %v674 = vadd.f32 %v670, %v673
    %vm675 = vweird.f32 %v639
    %vm676 = vweird.f32 %v670
    %vm677 = vmor %vm675, %vm676
    %v678 = vsel %vm677, %v670, %v674
    %v679 = vand.u32 2147483647, %v639
    %vm680 = vcmp.eq.f32.partialorder %v679, 8.507059e+37
    %v681 = vand.u32 %v639, 2147483648
    %v682 = vor.u32 1.1754944e-38, %v681
    %v683 = vsel %vm680, %v682, %v678
    %v684 = vmul.f32 1.0, %v683
    %v685 = vtanh.pop %v627
    %v686 = vmul.f32 %v669, %v537
    %v687 = vmul.f32 %v654, %v685
    %v688 = vadd.f32 %v686, %v687
    %v689 = vtanh.pop %v688
    %v690 = vmul.f32 %v684, %v689
    %v691 = vld [vmem:[#allocation2 + $0x40] sm:$0xff]
    %v692 = vld [vmem:[#allocation2 + $0x48] sm:$0xff]
    %v693 = vld [vmem:[#allocation2 + $0x50] sm:$0xff]
    %v694 = vld [vmem:[#allocation2 + $0x58] sm:$0xff]
    %695 = vmatpush.msra.mxu0 %v389
    %696 = vmatpush.msra.mxu0 %v385
    %697 = vmatpush.msra.mxu0 %v381
    %698 = vmatpush.msra.mxu0 %v377
    %699 = vmatpush.msra.mxu0 %v373
    %700 = vmatpush.msra.mxu0 %v369
    %701 = vmatpush.msra.mxu0 %v365
    %702 = vmatpush.msra.mxu0 %v361
    %703 = vmatpush.msra.mxu0 %v357
    %704 = vmatpush.msra.mxu0 %v353
    %705 = vmatpush.msra.mxu0 %v349
    %706 = vmatpush.msra.mxu0 %v345
    %707 = vmatpush.msra.mxu0 %v341
    %708 = vmatpush.msra.mxu0 %v337
    %709 = vmatpush.msra.mxu0 %v333
    %710 = vmatpush.msra.mxu0 %v329
    %711 = vmatmul.f32.gmra.mxu0 %v690
    %v712 = vpop.f32.mrf.mxu0
    %v713 = vadd.f32 0.0, %v712
    %714 = vdwg.mxu0
    %715 = vmatpush.msra.mxu0 %v390
    %716 = vmatpush.msra.mxu0 %v386
    %717 = vmatpush.msra.mxu0 %v382
    %718 = vmatpush.msra.mxu0 %v378
    %719 = vmatpush.msra.mxu0 %v374
    %720 = vmatpush.msra.mxu0 %v370
    %721 = vmatpush.msra.mxu0 %v366
    %722 = vmatpush.msra.mxu0 %v362
    %723 = vmatpush.msra.mxu0 %v358
    %724 = vmatpush.msra.mxu0 %v354
    %725 = vmatpush.msra.mxu0 %v350
    %726 = vmatpush.msra.mxu0 %v346
    %727 = vmatpush.msra.mxu0 %v342
    %728 = vmatpush.msra.mxu0 %v338
    %729 = vmatpush.msra.mxu0 %v334
    %730 = vmatpush.msra.mxu0 %v330
    %731 = vmatmul.f32.gmra.mxu0 %v690
    %v732 = vpop.f32.mrf.mxu0
    %v733 = vadd.f32 0.0, %v732
    %734 = vdwg.mxu0
    %735 = vmatpush.msra.mxu0 %v391
    %736 = vmatpush.msra.mxu0 %v387
    %737 = vmatpush.msra.mxu0 %v383
    %738 = vmatpush.msra.mxu0 %v379
    %739 = vmatpush.msra.mxu0 %v375
    %740 = vmatpush.msra.mxu0 %v371
    %741 = vmatpush.msra.mxu0 %v367
    %742 = vmatpush.msra.mxu0 %v363
    %743 = vmatpush.msra.mxu0 %v359
    %744 = vmatpush.msra.mxu0 %v355
    %745 = vmatpush.msra.mxu0 %v351
    %746 = vmatpush.msra.mxu0 %v347
    %747 = vmatpush.msra.mxu0 %v343
    %748 = vmatpush.msra.mxu0 %v339
    %749 = vmatpush.msra.mxu0 %v335
    %750 = vmatpush.msra.mxu0 %v331
    %751 = vmatmul.f32.gmra.mxu0 %v690
    %v752 = vpop.f32.mrf.mxu0
    %v753 = vadd.f32 0.0, %v752
    %754 = vdwg.mxu0
    %755 = vmatpush.msra.mxu0 %v392
    %756 = vmatpush.msra.mxu0 %v388
    %757 = vmatpush.msra.mxu0 %v384
    %758 = vmatpush.msra.mxu0 %v380
    %759 = vmatpush.msra.mxu0 %v376
    %760 = vmatpush.msra.mxu0 %v372
    %761 = vmatpush.msra.mxu0 %v368
    %762 = vmatpush.msra.mxu0 %v364
    %763 = vmatpush.msra.mxu0 %v360
    %764 = vmatpush.msra.mxu0 %v356
    %765 = vmatpush.msra.mxu0 %v352
    %766 = vmatpush.msra.mxu0 %v348
    %767 = vmatpush.msra.mxu0 %v344
    %768 = vmatpush.msra.mxu0 %v340
    %769 = vmatpush.msra.mxu0 %v336
    %770 = vmatpush.msra.mxu0 %v332
    %771 = vmatmul.f32.gmra.mxu0 %v690
    %v772 = vpop.f32.mrf.mxu0
    %v773 = vadd.f32 0.0, %v772
    %774 = vdwg.mxu0
    %v775 = vadd.f32 %v691, %v713
    %v776 = vadd.f32 %v692, %v733
    %v777 = vadd.f32 %v693, %v753
    %v778 = vadd.f32 %v694, %v773
    %v779 = vsub.f32 0.0, %v775
    %v780 = vsub.f32 0.0, %v776
    %v781 = vsub.f32 0.0, %v777
    %v782 = vmul.f32 %v779, 1.442695
    %v783 = vpow.pop %v782
    %v784 = vmul.f32 %v780, 1.442695
    %v785 = vpow.pop %v784
    %v786 = vmul.f32 %v781, 1.442695
    %v787 = vpow.pop %v786
    %v788 = vadd.f32 %v783, 1.0
    %v789 = vadd.f32 %v785, 1.0
    %v790 = vadd.f32 %v787, 1.0
    %v791 = vrcp.pop %v788
    %v792 = vmul.f32 %v788, %v791
    %v793 = vsub.f32 1.0, %v792
    %v794 = vmul.f32 %v791, %v793
    %v795 = vadd.f32 %v791, %v794
    %vm796 = vweird.f32 %v788
    %vm797 = vweird.f32 %v791
    %vm798 = vmor %vm796, %vm797
    %v799 = vsel %vm798, %v791, %v795
    %v800 = vand.u32 2147483647, %v788
    %vm801 = vcmp.eq.f32.partialorder %v800, 8.507059e+37
    %v802 = vand.u32 %v788, 2147483648
    %v803 = vor.u32 1.1754944e-38, %v802
    %v804 = vsel %vm801, %v803, %v799
    %v805 = vmul.f32 1.0, %v804
    %v806 = vrcp.pop %v789
    %v807 = vmul.f32 %v789, %v806
    %v808 = vsub.f32 1.0, %v807
    %v809 = vmul.f32 %v806, %v808
    %v810 = vadd.f32 %v806, %v809
    %vm811 = vweird.f32 %v789
    %vm812 = vweird.f32 %v806
    %vm813 = vmor %vm811, %vm812
    %v814 = vsel %vm813, %v806, %v810
    %v815 = vand.u32 2147483647, %v789
    %vm816 = vcmp.eq.f32.partialorder %v815, 8.507059e+37
    %v817 = vand.u32 %v789, 2147483648
    %v818 = vor.u32 1.1754944e-38, %v817
    %v819 = vsel %vm816, %v818, %v814
    %v820 = vmul.f32 1.0, %v819
    %v821 = vrcp.pop %v790
    %v822 = vmul.f32 %v790, %v821
    %v823 = vsub.f32 1.0, %v822
    %v824 = vmul.f32 %v821, %v823
    %v825 = vadd.f32 %v821, %v824
    %vm826 = vweird.f32 %v790
    %vm827 = vweird.f32 %v821
    %vm828 = vmor %vm826, %vm827
    %v829 = vsel %vm828, %v821, %v825
    %v830 = vand.u32 2147483647, %v790
    %vm831 = vcmp.eq.f32.partialorder %v830, 8.507059e+37
    %v832 = vand.u32 %v790, 2147483648
    %v833 = vor.u32 1.1754944e-38, %v832
    %v834 = vsel %vm831, %v833, %v829
    %v835 = vmul.f32 1.0, %v834
    %v836 = vtanh.pop %v778
    %v837 = vmul.f32 %v820, %v688
    %v838 = vmul.f32 %v805, %v836
    %v839 = vadd.f32 %v837, %v838
    %v840 = vtanh.pop %v839
    %v841 = vmul.f32 %v835, %v840
    %v842 = vld [vmem:[#allocation2 + $0x60] sm:$0xff]
    %v843 = vld [vmem:[#allocation2 + $0x68] sm:$0xff]
    %v844 = vld [vmem:[#allocation2 + $0x70] sm:$0xff]
    %v845 = vld [vmem:[#allocation2 + $0x78] sm:$0xff]
    %846 = vmatpush.msra.mxu0 %v389
    %847 = vmatpush.msra.mxu0 %v385
    %848 = vmatpush.msra.mxu0 %v381
    %849 = vmatpush.msra.mxu0 %v377
    %850 = vmatpush.msra.mxu0 %v373
    %851 = vmatpush.msra.mxu0 %v369
    %852 = vmatpush.msra.mxu0 %v365
    %853 = vmatpush.msra.mxu0 %v361
    %854 = vmatpush.msra.mxu0 %v357
    %855 = vmatpush.msra.mxu0 %v353
    %856 = vmatpush.msra.mxu0 %v349
    %857 = vmatpush.msra.mxu0 %v345
    %858 = vmatpush.msra.mxu0 %v341
    %859 = vmatpush.msra.mxu0 %v337
    %860 = vmatpush.msra.mxu0 %v333
    %861 = vmatpush.msra.mxu0 %v329
    %862 = vmatmul.f32.gmra.mxu0 %v841
    %v863 = vpop.f32.mrf.mxu0
    %v864 = vadd.f32 0.0, %v863
    %865 = vdwg.mxu0
    %866 = vmatpush.msra.mxu0 %v390
    %867 = vmatpush.msra.mxu0 %v386
    %868 = vmatpush.msra.mxu0 %v382
    %869 = vmatpush.msra.mxu0 %v378
    %870 = vmatpush.msra.mxu0 %v374
    %871 = vmatpush.msra.mxu0 %v370
    %872 = vmatpush.msra.mxu0 %v366
    %873 = vmatpush.msra.mxu0 %v362
    %874 = vmatpush.msra.mxu0 %v358
    %875 = vmatpush.msra.mxu0 %v354
    %876 = vmatpush.msra.mxu0 %v350
    %877 = vmatpush.msra.mxu0 %v346
    %878 = vmatpush.msra.mxu0 %v342
    %879 = vmatpush.msra.mxu0 %v338
    %880 = vmatpush.msra.mxu0 %v334
    %881 = vmatpush.msra.mxu0 %v330
    %882 = vmatmul.f32.gmra.mxu0 %v841
    %v883 = vpop.f32.mrf.mxu0
    %v884 = vadd.f32 0.0, %v883
    %885 = vdwg.mxu0
    %886 = vmatpush.msra.mxu0 %v391
    %887 = vmatpush.msra.mxu0 %v387
    %888 = vmatpush.msra.mxu0 %v383
    %889 = vmatpush.msra.mxu0 %v379
    %890 = vmatpush.msra.mxu0 %v375
    %891 = vmatpush.msra.mxu0 %v371
    %892 = vmatpush.msra.mxu0 %v367
    %893 = vmatpush.msra.mxu0 %v363
    %894 = vmatpush.msra.mxu0 %v359
    %895 = vmatpush.msra.mxu0 %v355
    %896 = vmatpush.msra.mxu0 %v351
    %897 = vmatpush.msra.mxu0 %v347
    %898 = vmatpush.msra.mxu0 %v343
    %899 = vmatpush.msra.mxu0 %v339
    %900 = vmatpush.msra.mxu0 %v335
    %901 = vmatpush.msra.mxu0 %v331
    %902 = vmatmul.f32.gmra.mxu0 %v841
    %v903 = vpop.f32.mrf.mxu0
    %v904 = vadd.f32 0.0, %v903
    %905 = vdwg.mxu0
    %906 = vmatpush.msra.mxu0 %v392
    %907 = vmatpush.msra.mxu0 %v388
    %908 = vmatpush.msra.mxu0 %v384
    %909 = vmatpush.msra.mxu0 %v380
    %910 = vmatpush.msra.mxu0 %v376
    %911 = vmatpush.msra.mxu0 %v372
    %912 = vmatpush.msra.mxu0 %v368
    %913 = vmatpush.msra.mxu0 %v364
    %914 = vmatpush.msra.mxu0 %v360
    %915 = vmatpush.msra.mxu0 %v356
    %916 = vmatpush.msra.mxu0 %v352
    %917 = vmatpush.msra.mxu0 %v348
    %918 = vmatpush.msra.mxu0 %v344
    %919 = vmatpush.msra.mxu0 %v340
    %920 = vmatpush.msra.mxu0 %v336
    %921 = vmatpush.msra.mxu0 %v332
    %922 = vmatmul.f32.gmra.mxu0 %v841
    %v923 = vpop.f32.mrf.mxu0
    %v924 = vadd.f32 0.0, %v923
    %925 = vdwg.mxu0
    %v926 = vadd.f32 %v842, %v864
    %v927 = vadd.f32 %v843, %v884
    %v928 = vadd.f32 %v844, %v904
    %v929 = vadd.f32 %v845, %v924
    %v930 = vsub.f32 0.0, %v926
    %v931 = vsub.f32 0.0, %v927
    %v932 = vsub.f32 0.0, %v928
    %v933 = vmul.f32 %v930, 1.442695
    %v934 = vpow.pop %v933
    %v935 = vmul.f32 %v931, 1.442695
    %v936 = vpow.pop %v935
    %v937 = vmul.f32 %v932, 1.442695
    %v938 = vpow.pop %v937
    %v939 = vadd.f32 %v934, 1.0
    %v940 = vadd.f32 %v936, 1.0
    %v941 = vadd.f32 %v938, 1.0
    %v942 = vrcp.pop %v939
    %v943 = vmul.f32 %v939, %v942
    %v944 = vsub.f32 1.0, %v943
    %v945 = vmul.f32 %v942, %v944
    %v946 = vadd.f32 %v942, %v945
    %vm947 = vweird.f32 %v939
    %vm948 = vweird.f32 %v942
    %vm949 = vmor %vm947, %vm948
    %v950 = vsel %vm949, %v942, %v946
    %v951 = vand.u32 2147483647, %v939
    %vm952 = vcmp.eq.f32.partialorder %v951, 8.507059e+37
    %v953 = vand.u32 %v939, 2147483648
    %v954 = vor.u32 1.1754944e-38, %v953
    %v955 = vsel %vm952, %v954, %v950
    %v956 = vmul.f32 1.0, %v955
    %v957 = vrcp.pop %v940
    %v958 = vmul.f32 %v940, %v957
    %v959 = vsub.f32 1.0, %v958
    %v960 = vmul.f32 %v957, %v959
    %v961 = vadd.f32 %v957, %v960
    %vm962 = vweird.f32 %v940
    %vm963 = vweird.f32 %v957
    %vm964 = vmor %vm962, %vm963
    %v965 = vsel %vm964, %v957, %v961
    %v966 = vand.u32 2147483647, %v940
    %vm967 = vcmp.eq.f32.partialorder %v966, 8.507059e+37
    %v968 = vand.u32 %v940, 2147483648
    %v969 = vor.u32 1.1754944e-38, %v968
    %v970 = vsel %vm967, %v969, %v965
    %v971 = vmul.f32 1.0, %v970
    %v972 = vrcp.pop %v941
    %v973 = vmul.f32 %v941, %v972
    %v974 = vsub.f32 1.0, %v973
    %v975 = vmul.f32 %v972, %v974
    %v976 = vadd.f32 %v972, %v975
    %vm977 = vweird.f32 %v941
    %vm978 = vweird.f32 %v972
    %vm979 = vmor %vm977, %vm978
    %v980 = vsel %vm979, %v972, %v976
    %v981 = vand.u32 2147483647, %v941
    %vm982 = vcmp.eq.f32.partialorder %v981, 8.507059e+37
    %v983 = vand.u32 %v941, 2147483648
    %v984 = vor.u32 1.1754944e-38, %v983
    %v985 = vsel %vm982, %v984, %v980
    %v986 = vmul.f32 1.0, %v985
    %v987 = vtanh.pop %v929
    %v988 = vmul.f32 %v971, %v839
    %v989 = vmul.f32 %v956, %v987
    %v990 = vadd.f32 %v988, %v989
    %v991 = vtanh.pop %v990
    %v992 = vmul.f32 %v986, %v991
    %v993 = vld [vmem:[#allocation2 + $0x80] sm:$0xff]
    %v994 = vld [vmem:[#allocation2 + $0x88] sm:$0xff]
    %v995 = vld [vmem:[#allocation2 + $0x90] sm:$0xff]
    %v996 = vld [vmem:[#allocation2 + $0x98] sm:$0xff]
    %997 = vmatpush.msra.mxu0 %v389
    %998 = vmatpush.msra.mxu0 %v385
    %999 = vmatpush.msra.mxu0 %v381
    %1000 = vmatpush.msra.mxu0 %v377
    %1001 = vmatpush.msra.mxu0 %v373
    %1002 = vmatpush.msra.mxu0 %v369
    %1003 = vmatpush.msra.mxu0 %v365
    %1004 = vmatpush.msra.mxu0 %v361
    %1005 = vmatpush.msra.mxu0 %v357
    %1006 = vmatpush.msra.mxu0 %v353
    %1007 = vmatpush.msra.mxu0 %v349
    %1008 = vmatpush.msra.mxu0 %v345
    %1009 = vmatpush.msra.mxu0 %v341
    %1010 = vmatpush.msra.mxu0 %v337
    %1011 = vmatpush.msra.mxu0 %v333
    %1012 = vmatpush.msra.mxu0 %v329
    %1013 = vmatmul.f32.gmra.mxu0 %v992
    %v1014 = vpop.f32.mrf.mxu0
    %v1015 = vadd.f32 0.0, %v1014
    %1016 = vdwg.mxu0
    %1017 = vmatpush.msra.mxu0 %v390
    %1018 = vmatpush.msra.mxu0 %v386
    %1019 = vmatpush.msra.mxu0 %v382
    %1020 = vmatpush.msra.mxu0 %v378
    %1021 = vmatpush.msra.mxu0 %v374
    %1022 = vmatpush.msra.mxu0 %v370
    %1023 = vmatpush.msra.mxu0 %v366
    %1024 = vmatpush.msra.mxu0 %v362
    %1025 = vmatpush.msra.mxu0 %v358
    %1026 = vmatpush.msra.mxu0 %v354
    %1027 = vmatpush.msra.mxu0 %v350
    %1028 = vmatpush.msra.mxu0 %v346
    %1029 = vmatpush.msra.mxu0 %v342
    %1030 = vmatpush.msra.mxu0 %v338
    %1031 = vmatpush.msra.mxu0 %v334
    %1032 = vmatpush.msra.mxu0 %v330
    %1033 = vmatmul.f32.gmra.mxu0 %v992
    %v1034 = vpop.f32.mrf.mxu0
    %v1035 = vadd.f32 0.0, %v1034
    %1036 = vdwg.mxu0
    %1037 = vmatpush.msra.mxu0 %v391
    %1038 = vmatpush.msra.mxu0 %v387
    %1039 = vmatpush.msra.mxu0 %v383
    %1040 = vmatpush.msra.mxu0 %v379
    %1041 = vmatpush.msra.mxu0 %v375
    %1042 = vmatpush.msra.mxu0 %v371
    %1043 = vmatpush.msra.mxu0 %v367
    %1044 = vmatpush.msra.mxu0 %v363
    %1045 = vmatpush.msra.mxu0 %v359
    %1046 = vmatpush.msra.mxu0 %v355
    %1047 = vmatpush.msra.mxu0 %v351
    %1048 = vmatpush.msra.mxu0 %v347
    %1049 = vmatpush.msra.mxu0 %v343
    %1050 = vmatpush.msra.mxu0 %v339
    %1051 = vmatpush.msra.mxu0 %v335
    %1052 = vmatpush.msra.mxu0 %v331
    %1053 = vmatmul.f32.gmra.mxu0 %v992
    %v1054 = vpop.f32.mrf.mxu0
    %v1055 = vadd.f32 0.0, %v1054
    %1056 = vdwg.mxu0
    %1057 = vmatpush.msra.mxu0 %v392
    %1058 = vmatpush.msra.mxu0 %v388
    %1059 = vmatpush.msra.mxu0 %v384
    %1060 = vmatpush.msra.mxu0 %v380
    %1061 = vmatpush.msra.mxu0 %v376
    %1062 = vmatpush.msra.mxu0 %v372
    %1063 = vmatpush.msra.mxu0 %v368
    %1064 = vmatpush.msra.mxu0 %v364
    %1065 = vmatpush.msra.mxu0 %v360
    %1066 = vmatpush.msra.mxu0 %v356
    %1067 = vmatpush.msra.mxu0 %v352
    %1068 = vmatpush.msra.mxu0 %v348
    %1069 = vmatpush.msra.mxu0 %v344
    %1070 = vmatpush.msra.mxu0 %v340
    %1071 = vmatpush.msra.mxu0 %v336
    %1072 = vmatpush.msra.mxu0 %v332
    %1073 = vmatmul.f32.gmra.mxu0 %v992
    %v1074 = vpop.f32.mrf.mxu0
    %v1075 = vadd.f32 0.0, %v1074
    %1076 = vdwg.mxu0
    %v1077 = vadd.f32 %v993, %v1015
    %v1078 = vadd.f32 %v994, %v1035
    %v1079 = vadd.f32 %v995, %v1055
    %v1080 = vadd.f32 %v996, %v1075
    %v1081 = vsub.f32 0.0, %v1077
    %v1082 = vsub.f32 0.0, %v1078
    %v1083 = vsub.f32 0.0, %v1079
    %v1084 = vmul.f32 %v1081, 1.442695
    %v1085 = vpow.pop %v1084
    %v1086 = vmul.f32 %v1082, 1.442695
    %v1087 = vpow.pop %v1086
    %v1088 = vmul.f32 %v1083, 1.442695
    %v1089 = vpow.pop %v1088
    %v1090 = vadd.f32 %v1085, 1.0
    %v1091 = vadd.f32 %v1087, 1.0
    %v1092 = vadd.f32 %v1089, 1.0
    %v1093 = vrcp.pop %v1090
    %v1094 = vmul.f32 %v1090, %v1093
    %v1095 = vsub.f32 1.0, %v1094
    %v1096 = vmul.f32 %v1093, %v1095
    %v1097 = vadd.f32 %v1093, %v1096
    %vm1098 = vweird.f32 %v1090
    %vm1099 = vweird.f32 %v1093
    %vm1100 = vmor %vm1098, %vm1099
    %v1101 = vsel %vm1100, %v1093, %v1097
    %v1102 = vand.u32 2147483647, %v1090
    %vm1103 = vcmp.eq.f32.partialorder %v1102, 8.507059e+37
    %v1104 = vand.u32 %v1090, 2147483648
    %v1105 = vor.u32 1.1754944e-38, %v1104
    %v1106 = vsel %vm1103, %v1105, %v1101
    %v1107 = vmul.f32 1.0, %v1106
    %v1108 = vrcp.pop %v1091
    %v1109 = vmul.f32 %v1091, %v1108
    %v1110 = vsub.f32 1.0, %v1109
    %v1111 = vmul.f32 %v1108, %v1110
    %v1112 = vadd.f32 %v1108, %v1111
    %vm1113 = vweird.f32 %v1091
    %vm1114 = vweird.f32 %v1108
    %vm1115 = vmor %vm1113, %vm1114
    %v1116 = vsel %vm1115, %v1108, %v1112
    %v1117 = vand.u32 2147483647, %v1091
    %vm1118 = vcmp.eq.f32.partialorder %v1117, 8.507059e+37
    %v1119 = vand.u32 %v1091, 2147483648
    %v1120 = vor.u32 1.1754944e-38, %v1119
    %v1121 = vsel %vm1118, %v1120, %v1116
    %v1122 = vmul.f32 1.0, %v1121
    %v1123 = vrcp.pop %v1092
    %v1124 = vmul.f32 %v1092, %v1123
    %v1125 = vsub.f32 1.0, %v1124
    %v1126 = vmul.f32 %v1123, %v1125
    %v1127 = vadd.f32 %v1123, %v1126
    %vm1128 = vweird.f32 %v1092
    %vm1129 = vweird.f32 %v1123
    %vm1130 = vmor %vm1128, %vm1129
    %v1131 = vsel %vm1130, %v1123, %v1127
    %v1132 = vand.u32 2147483647, %v1092
    %vm1133 = vcmp.eq.f32.partialorder %v1132, 8.507059e+37
    %v1134 = vand.u32 %v1092, 2147483648
    %v1135 = vor.u32 1.1754944e-38, %v1134
    %v1136 = vsel %vm1133, %v1135, %v1131
    %v1137 = vmul.f32 1.0, %v1136
    %v1138 = vtanh.pop %v1080
    %v1139 = vmul.f32 %v1122, %v990
    %v1140 = vmul.f32 %v1107, %v1138
    %v1141 = vadd.f32 %v1139, %v1140
    %v1142 = vtanh.pop %v1141
    %v1143 = vmul.f32 %v1137, %v1142
    %v1144 = vld [vmem:[#allocation2 + $0xa0] sm:$0xff]
    %v1145 = vld [vmem:[#allocation2 + $0xa8] sm:$0xff]
    %v1146 = vld [vmem:[#allocation2 + $0xb0] sm:$0xff]
    %v1147 = vld [vmem:[#allocation2 + $0xb8] sm:$0xff]
    %1148 = vmatpush.msra.mxu0 %v389
    %1149 = vmatpush.msra.mxu0 %v385
    %1150 = vmatpush.msra.mxu0 %v381
    %1151 = vmatpush.msra.mxu0 %v377
    %1152 = vmatpush.msra.mxu0 %v373
    %1153 = vmatpush.msra.mxu0 %v369
    %1154 = vmatpush.msra.mxu0 %v365
    %1155 = vmatpush.msra.mxu0 %v361
    %1156 = vmatpush.msra.mxu0 %v357
    %1157 = vmatpush.msra.mxu0 %v353
    %1158 = vmatpush.msra.mxu0 %v349
    %1159 = vmatpush.msra.mxu0 %v345
    %1160 = vmatpush.msra.mxu0 %v341
    %1161 = vmatpush.msra.mxu0 %v337
    %1162 = vmatpush.msra.mxu0 %v333
    %1163 = vmatpush.msra.mxu0 %v329
    %1164 = vmatmul.f32.gmra.mxu0 %v1143
    %v1165 = vpop.f32.mrf.mxu0
    %v1166 = vadd.f32 0.0, %v1165
    %1167 = vdwg.mxu0
    %1168 = vmatpush.msra.mxu0 %v390
    %1169 = vmatpush.msra.mxu0 %v386
    %1170 = vmatpush.msra.mxu0 %v382
    %1171 = vmatpush.msra.mxu0 %v378
    %1172 = vmatpush.msra.mxu0 %v374
    %1173 = vmatpush.msra.mxu0 %v370
    %1174 = vmatpush.msra.mxu0 %v366
    %1175 = vmatpush.msra.mxu0 %v362
    %1176 = vmatpush.msra.mxu0 %v358
    %1177 = vmatpush.msra.mxu0 %v354
    %1178 = vmatpush.msra.mxu0 %v350
    %1179 = vmatpush.msra.mxu0 %v346
    %1180 = vmatpush.msra.mxu0 %v342
    %1181 = vmatpush.msra.mxu0 %v338
    %1182 = vmatpush.msra.mxu0 %v334
    %1183 = vmatpush.msra.mxu0 %v330
    %1184 = vmatmul.f32.gmra.mxu0 %v1143
    %v1185 = vpop.f32.mrf.mxu0
    %v1186 = vadd.f32 0.0, %v1185
    %1187 = vdwg.mxu0
    %1188 = vmatpush.msra.mxu0 %v391
    %1189 = vmatpush.msra.mxu0 %v387
    %1190 = vmatpush.msra.mxu0 %v383
    %1191 = vmatpush.msra.mxu0 %v379
    %1192 = vmatpush.msra.mxu0 %v375
    %1193 = vmatpush.msra.mxu0 %v371
    %1194 = vmatpush.msra.mxu0 %v367
    %1195 = vmatpush.msra.mxu0 %v363
    %1196 = vmatpush.msra.mxu0 %v359
    %1197 = vmatpush.msra.mxu0 %v355
    %1198 = vmatpush.msra.mxu0 %v351
    %1199 = vmatpush.msra.mxu0 %v347
    %1200 = vmatpush.msra.mxu0 %v343
    %1201 = vmatpush.msra.mxu0 %v339
    %1202 = vmatpush.msra.mxu0 %v335
    %1203 = vmatpush.msra.mxu0 %v331
    %1204 = vmatmul.f32.gmra.mxu0 %v1143
    %v1205 = vpop.f32.mrf.mxu0
    %v1206 = vadd.f32 0.0, %v1205
    %1207 = vdwg.mxu0
    %1208 = vmatpush.msra.mxu0 %v392
    %1209 = vmatpush.msra.mxu0 %v388
    %1210 = vmatpush.msra.mxu0 %v384
    %1211 = vmatpush.msra.mxu0 %v380
    %1212 = vmatpush.msra.mxu0 %v376
    %1213 = vmatpush.msra.mxu0 %v372
    %1214 = vmatpush.msra.mxu0 %v368
    %1215 = vmatpush.msra.mxu0 %v364
    %1216 = vmatpush.msra.mxu0 %v360
    %1217 = vmatpush.msra.mxu0 %v356
    %1218 = vmatpush.msra.mxu0 %v352
    %1219 = vmatpush.msra.mxu0 %v348
    %1220 = vmatpush.msra.mxu0 %v344
    %1221 = vmatpush.msra.mxu0 %v340
    %1222 = vmatpush.msra.mxu0 %v336
    %1223 = vmatpush.msra.mxu0 %v332
    %1224 = vmatmul.f32.gmra.mxu0 %v1143
    %v1225 = vpop.f32.mrf.mxu0
    %v1226 = vadd.f32 0.0, %v1225
    %1227 = vdwg.mxu0
    %v1228 = vadd.f32 %v1144, %v1166
    %v1229 = vadd.f32 %v1145, %v1186
    %v1230 = vadd.f32 %v1146, %v1206
    %v1231 = vadd.f32 %v1147, %v1226
    %v1232 = vsub.f32 0.0, %v1228
    %v1233 = vsub.f32 0.0, %v1229
    %v1234 = vsub.f32 0.0, %v1230
    %v1235 = vmul.f32 %v1232, 1.442695
    %v1236 = vpow.pop %v1235
    %v1237 = vmul.f32 %v1233, 1.442695
    %v1238 = vpow.pop %v1237
    %v1239 = vmul.f32 %v1234, 1.442695
    %v1240 = vpow.pop %v1239
    %v1241 = vadd.f32 %v1236, 1.0
    %v1242 = vadd.f32 %v1238, 1.0
    %v1243 = vadd.f32 %v1240, 1.0
    %v1244 = vrcp.pop %v1241
    %v1245 = vmul.f32 %v1241, %v1244
    %v1246 = vsub.f32 1.0, %v1245
    %v1247 = vmul.f32 %v1244, %v1246
    %v1248 = vadd.f32 %v1244, %v1247
    %vm1249 = vweird.f32 %v1241
    %vm1250 = vweird.f32 %v1244
    %vm1251 = vmor %vm1249, %vm1250
    %v1252 = vsel %vm1251, %v1244, %v1248
    %v1253 = vand.u32 2147483647, %v1241
    %vm1254 = vcmp.eq.f32.partialorder %v1253, 8.507059e+37
    %v1255 = vand.u32 %v1241, 2147483648
    %v1256 = vor.u32 1.1754944e-38, %v1255
    %v1257 = vsel %vm1254, %v1256, %v1252
    %v1258 = vmul.f32 1.0, %v1257
    %v1259 = vrcp.pop %v1242
    %v1260 = vmul.f32 %v1242, %v1259
    %v1261 = vsub.f32 1.0, %v1260
    %v1262 = vmul.f32 %v1259, %v1261
    %v1263 = vadd.f32 %v1259, %v1262
    %vm1264 = vweird.f32 %v1242
    %vm1265 = vweird.f32 %v1259
    %vm1266 = vmor %vm1264, %vm1265
    %v1267 = vsel %vm1266, %v1259, %v1263
    %v1268 = vand.u32 2147483647, %v1242
    %vm1269 = vcmp.eq.f32.partialorder %v1268, 8.507059e+37
    %v1270 = vand.u32 %v1242, 2147483648
    %v1271 = vor.u32 1.1754944e-38, %v1270
    %v1272 = vsel %vm1269, %v1271, %v1267
    %v1273 = vmul.f32 1.0, %v1272
    %v1274 = vrcp.pop %v1243
    %v1275 = vmul.f32 %v1243, %v1274
    %v1276 = vsub.f32 1.0, %v1275
    %v1277 = vmul.f32 %v1274, %v1276
    %v1278 = vadd.f32 %v1274, %v1277
    %vm1279 = vweird.f32 %v1243
    %vm1280 = vweird.f32 %v1274
    %vm1281 = vmor %vm1279, %vm1280
    %v1282 = vsel %vm1281, %v1274, %v1278
    %v1283 = vand.u32 2147483647, %v1243
    %vm1284 = vcmp.eq.f32.partialorder %v1283, 8.507059e+37
    %v1285 = vand.u32 %v1243, 2147483648
    %v1286 = vor.u32 1.1754944e-38, %v1285
    %v1287 = vsel %vm1284, %v1286, %v1282
    %v1288 = vmul.f32 1.0, %v1287
    %v1289 = vtanh.pop %v1231
    %v1290 = vmul.f32 %v1273, %v1141
    %v1291 = vmul.f32 %v1258, %v1289
    %v1292 = vadd.f32 %v1290, %v1291
    %v1293 = vtanh.pop %v1292
    %v1294 = vmul.f32 %v1288, %v1293
    %v1295 = vld [vmem:[#allocation2 + $0xc0] sm:$0xff]
    %v1296 = vld [vmem:[#allocation2 + $0xc8] sm:$0xff]
    %v1297 = vld [vmem:[#allocation2 + $0xd0] sm:$0xff]
    %v1298 = vld [vmem:[#allocation2 + $0xd8] sm:$0xff]
    %1299 = vmatpush.msra.mxu0 %v389
    %1300 = vmatpush.msra.mxu0 %v385
    %1301 = vmatpush.msra.mxu0 %v381
    %1302 = vmatpush.msra.mxu0 %v377
    %1303 = vmatpush.msra.mxu0 %v373
    %1304 = vmatpush.msra.mxu0 %v369
    %1305 = vmatpush.msra.mxu0 %v365
    %1306 = vmatpush.msra.mxu0 %v361
    %1307 = vmatpush.msra.mxu0 %v357
    %1308 = vmatpush.msra.mxu0 %v353
    %1309 = vmatpush.msra.mxu0 %v349
    %1310 = vmatpush.msra.mxu0 %v345
    %1311 = vmatpush.msra.mxu0 %v341
    %1312 = vmatpush.msra.mxu0 %v337
    %1313 = vmatpush.msra.mxu0 %v333
    %1314 = vmatpush.msra.mxu0 %v329
    %1315 = vmatmul.f32.gmra.mxu0 %v1294
    %v1316 = vpop.f32.mrf.mxu0
    %v1317 = vadd.f32 0.0, %v1316
    %1318 = vdwg.mxu0
    %1319 = vmatpush.msra.mxu0 %v390
    %1320 = vmatpush.msra.mxu0 %v386
    %1321 = vmatpush.msra.mxu0 %v382
    %1322 = vmatpush.msra.mxu0 %v378
    %1323 = vmatpush.msra.mxu0 %v374
    %1324 = vmatpush.msra.mxu0 %v370
    %1325 = vmatpush.msra.mxu0 %v366
    %1326 = vmatpush.msra.mxu0 %v362
    %1327 = vmatpush.msra.mxu0 %v358
    %1328 = vmatpush.msra.mxu0 %v354
    %1329 = vmatpush.msra.mxu0 %v350
    %1330 = vmatpush.msra.mxu0 %v346
    %1331 = vmatpush.msra.mxu0 %v342
    %1332 = vmatpush.msra.mxu0 %v338
    %1333 = vmatpush.msra.mxu0 %v334
    %1334 = vmatpush.msra.mxu0 %v330
    %1335 = vmatmul.f32.gmra.mxu0 %v1294
    %v1336 = vpop.f32.mrf.mxu0
    %v1337 = vadd.f32 0.0, %v1336
    %1338 = vdwg.mxu0
    %1339 = vmatpush.msra.mxu0 %v391
    %1340 = vmatpush.msra.mxu0 %v387
    %1341 = vmatpush.msra.mxu0 %v383
    %1342 = vmatpush.msra.mxu0 %v379
    %1343 = vmatpush.msra.mxu0 %v375
    %1344 = vmatpush.msra.mxu0 %v371
    %1345 = vmatpush.msra.mxu0 %v367
    %1346 = vmatpush.msra.mxu0 %v363
    %1347 = vmatpush.msra.mxu0 %v359
    %1348 = vmatpush.msra.mxu0 %v355
    %1349 = vmatpush.msra.mxu0 %v351
    %1350 = vmatpush.msra.mxu0 %v347
    %1351 = vmatpush.msra.mxu0 %v343
    %1352 = vmatpush.msra.mxu0 %v339
    %1353 = vmatpush.msra.mxu0 %v335
    %1354 = vmatpush.msra.mxu0 %v331
    %1355 = vmatmul.f32.gmra.mxu0 %v1294
    %v1356 = vpop.f32.mrf.mxu0
    %v1357 = vadd.f32 0.0, %v1356
    %1358 = vdwg.mxu0
    %1359 = vmatpush.msra.mxu0 %v392
    %1360 = vmatpush.msra.mxu0 %v388
    %1361 = vmatpush.msra.mxu0 %v384
    %1362 = vmatpush.msra.mxu0 %v380
    %1363 = vmatpush.msra.mxu0 %v376
    %1364 = vmatpush.msra.mxu0 %v372
    %1365 = vmatpush.msra.mxu0 %v368
    %1366 = vmatpush.msra.mxu0 %v364
    %1367 = vmatpush.msra.mxu0 %v360
    %1368 = vmatpush.msra.mxu0 %v356
    %1369 = vmatpush.msra.mxu0 %v352
    %1370 = vmatpush.msra.mxu0 %v348
    %1371 = vmatpush.msra.mxu0 %v344
    %1372 = vmatpush.msra.mxu0 %v340
    %1373 = vmatpush.msra.mxu0 %v336
    %1374 = vmatpush.msra.mxu0 %v332
    %1375 = vmatmul.f32.gmra.mxu0 %v1294
    %v1376 = vpop.f32.mrf.mxu0
    %v1377 = vadd.f32 0.0, %v1376
    %1378 = vdwg.mxu0
    %v1379 = vadd.f32 %v1295, %v1317
    %v1380 = vadd.f32 %v1296, %v1337
    %v1381 = vadd.f32 %v1297, %v1357
    %v1382 = vadd.f32 %v1298, %v1377
    %v1383 = vsub.f32 0.0, %v1379
    %v1384 = vsub.f32 0.0, %v1380
    %v1385 = vsub.f32 0.0, %v1381
    %v1386 = vmul.f32 %v1383, 1.442695
    %v1387 = vpow.pop %v1386
    %v1388 = vmul.f32 %v1384, 1.442695
    %v1389 = vpow.pop %v1388
    %v1390 = vmul.f32 %v1385, 1.442695
    %v1391 = vpow.pop %v1390
    %v1392 = vadd.f32 %v1387, 1.0
    %v1393 = vadd.f32 %v1389, 1.0
    %v1394 = vadd.f32 %v1391, 1.0
    %v1395 = vrcp.pop %v1392
    %v1396 = vmul.f32 %v1392, %v1395
    %v1397 = vsub.f32 1.0, %v1396
    %v1398 = vmul.f32 %v1395, %v1397
    %v1399 = vadd.f32 %v1395, %v1398
    %vm1400 = vweird.f32 %v1392
    %vm1401 = vweird.f32 %v1395
    %vm1402 = vmor %vm1400, %vm1401
    %v1403 = vsel %vm1402, %v1395, %v1399
    %v1404 = vand.u32 2147483647, %v1392
    %vm1405 = vcmp.eq.f32.partialorder %v1404, 8.507059e+37
    %v1406 = vand.u32 %v1392, 2147483648
    %v1407 = vor.u32 1.1754944e-38, %v1406
    %v1408 = vsel %vm1405, %v1407, %v1403
    %v1409 = vmul.f32 1.0, %v1408
    %v1410 = vrcp.pop %v1393
    %v1411 = vmul.f32 %v1393, %v1410
    %v1412 = vsub.f32 1.0, %v1411
    %v1413 = vmul.f32 %v1410, %v1412
    %v1414 = vadd.f32 %v1410, %v1413
    %vm1415 = vweird.f32 %v1393
    %vm1416 = vweird.f32 %v1410
    %vm1417 = vmor %vm1415, %vm1416
    %v1418 = vsel %vm1417, %v1410, %v1414
    %v1419 = vand.u32 2147483647, %v1393
    %vm1420 = vcmp.eq.f32.partialorder %v1419, 8.507059e+37
    %v1421 = vand.u32 %v1393, 2147483648
    %v1422 = vor.u32 1.1754944e-38, %v1421
    %v1423 = vsel %vm1420, %v1422, %v1418
    %v1424 = vmul.f32 1.0, %v1423
    %v1425 = vrcp.pop %v1394
    %v1426 = vmul.f32 %v1394, %v1425
    %v1427 = vsub.f32 1.0, %v1426
    %v1428 = vmul.f32 %v1425, %v1427
    %v1429 = vadd.f32 %v1425, %v1428
    %vm1430 = vweird.f32 %v1394
    %vm1431 = vweird.f32 %v1425
    %vm1432 = vmor %vm1430, %vm1431
    %v1433 = vsel %vm1432, %v1425, %v1429
    %v1434 = vand.u32 2147483647, %v1394
    %vm1435 = vcmp.eq.f32.partialorder %v1434, 8.507059e+37
    %v1436 = vand.u32 %v1394, 2147483648
    %v1437 = vor.u32 1.1754944e-38, %v1436
    %v1438 = vsel %vm1435, %v1437, %v1433
    %v1439 = vmul.f32 1.0, %v1438
    %v1440 = vtanh.pop %v1382
    %v1441 = vmul.f32 %v1424, %v1292
    %v1442 = vmul.f32 %v1409, %v1440
    %v1443 = vadd.f32 %v1441, %v1442
    %v1444 = vtanh.pop %v1443
    %v1445 = vmul.f32 %v1439, %v1444
    %v1446 = vld [vmem:[#allocation2 + $0xe0] sm:$0xff]
    %v1447 = vld [vmem:[#allocation2 + $0xe8] sm:$0xff]
    %v1448 = vld [vmem:[#allocation2 + $0xf0] sm:$0xff]
    %v1449 = vld [vmem:[#allocation2 + $0xf8] sm:$0xff]
    %1450 = vmatpush.msra.mxu0 %v389
    %1451 = vmatpush.msra.mxu0 %v385
    %1452 = vmatpush.msra.mxu0 %v381
    %1453 = vmatpush.msra.mxu0 %v377
    %1454 = vmatpush.msra.mxu0 %v373
    %1455 = vmatpush.msra.mxu0 %v369
    %1456 = vmatpush.msra.mxu0 %v365
    %1457 = vmatpush.msra.mxu0 %v361
    %1458 = vmatpush.msra.mxu0 %v357
    %1459 = vmatpush.msra.mxu0 %v353
    %1460 = vmatpush.msra.mxu0 %v349
    %1461 = vmatpush.msra.mxu0 %v345
    %1462 = vmatpush.msra.mxu0 %v341
    %1463 = vmatpush.msra.mxu0 %v337
    %1464 = vmatpush.msra.mxu0 %v333
    %1465 = vmatpush.msra.mxu0 %v329
    %1466 = vmatmul.f32.gmra.mxu0 %v1445
    %v1467 = vpop.f32.mrf.mxu0
    %v1468 = vadd.f32 0.0, %v1467
    %1469 = vdwg.mxu0
    %1470 = vmatpush.msra.mxu0 %v390
    %1471 = vmatpush.msra.mxu0 %v386
    %1472 = vmatpush.msra.mxu0 %v382
    %1473 = vmatpush.msra.mxu0 %v378
    %1474 = vmatpush.msra.mxu0 %v374
    %1475 = vmatpush.msra.mxu0 %v370
    %1476 = vmatpush.msra.mxu0 %v366
    %1477 = vmatpush.msra.mxu0 %v362
    %1478 = vmatpush.msra.mxu0 %v358
    %1479 = vmatpush.msra.mxu0 %v354
    %1480 = vmatpush.msra.mxu0 %v350
    %1481 = vmatpush.msra.mxu0 %v346
    %1482 = vmatpush.msra.mxu0 %v342
    %1483 = vmatpush.msra.mxu0 %v338
    %1484 = vmatpush.msra.mxu0 %v334
    %1485 = vmatpush.msra.mxu0 %v330
    %1486 = vmatmul.f32.gmra.mxu0 %v1445
    %v1487 = vpop.f32.mrf.mxu0
    %v1488 = vadd.f32 0.0, %v1487
    %1489 = vdwg.mxu0
    %1490 = vmatpush.msra.mxu0 %v391
    %1491 = vmatpush.msra.mxu0 %v387
    %1492 = vmatpush.msra.mxu0 %v383
    %1493 = vmatpush.msra.mxu0 %v379
    %1494 = vmatpush.msra.mxu0 %v375
    %1495 = vmatpush.msra.mxu0 %v371
    %1496 = vmatpush.msra.mxu0 %v367
    %1497 = vmatpush.msra.mxu0 %v363
    %1498 = vmatpush.msra.mxu0 %v359
    %1499 = vmatpush.msra.mxu0 %v355
    %1500 = vmatpush.msra.mxu0 %v351
    %1501 = vmatpush.msra.mxu0 %v347
    %1502 = vmatpush.msra.mxu0 %v343
    %1503 = vmatpush.msra.mxu0 %v339
    %1504 = vmatpush.msra.mxu0 %v335
    %1505 = vmatpush.msra.mxu0 %v331
    %1506 = vmatmul.f32.gmra.mxu0 %v1445
    %v1507 = vpop.f32.mrf.mxu0
    %v1508 = vadd.f32 0.0, %v1507
    %1509 = vdwg.mxu0
    %1510 = vmatpush.msra.mxu0 %v392
    %1511 = vmatpush.msra.mxu0 %v388
    %1512 = vmatpush.msra.mxu0 %v384
    %1513 = vmatpush.msra.mxu0 %v380
    %1514 = vmatpush.msra.mxu0 %v376
    %1515 = vmatpush.msra.mxu0 %v372
    %1516 = vmatpush.msra.mxu0 %v368
    %1517 = vmatpush.msra.mxu0 %v364
    %1518 = vmatpush.msra.mxu0 %v360
    %1519 = vmatpush.msra.mxu0 %v356
    %1520 = vmatpush.msra.mxu0 %v352
    %1521 = vmatpush.msra.mxu0 %v348
    %1522 = vmatpush.msra.mxu0 %v344
    %1523 = vmatpush.msra.mxu0 %v340
    %1524 = vmatpush.msra.mxu0 %v336
    %1525 = vmatpush.msra.mxu0 %v332
    %1526 = vmatmul.f32.gmra.mxu0 %v1445
    %v1527 = vpop.f32.mrf.mxu0
    %v1528 = vadd.f32 0.0, %v1527
    %1529 = vdwg.mxu0
    %v1530 = vadd.f32 %v1446, %v1468
    %v1531 = vadd.f32 %v1447, %v1488
    %v1532 = vadd.f32 %v1448, %v1508
    %v1533 = vadd.f32 %v1449, %v1528
    %v1534 = vsub.f32 0.0, %v1530
    %v1535 = vsub.f32 0.0, %v1531
    %v1536 = vsub.f32 0.0, %v1532
    %v1537 = vmul.f32 %v1534, 1.442695
    %v1538 = vpow.pop %v1537
    %v1539 = vmul.f32 %v1535, 1.442695
    %v1540 = vpow.pop %v1539
    %v1541 = vmul.f32 %v1536, 1.442695
    %v1542 = vpow.pop %v1541
    %v1543 = vadd.f32 %v1538, 1.0
    %v1544 = vadd.f32 %v1540, 1.0
    %v1545 = vadd.f32 %v1542, 1.0
    %v1546 = vrcp.pop %v1543
    %v1547 = vmul.f32 %v1543, %v1546
    %v1548 = vsub.f32 1.0, %v1547
    %v1549 = vmul.f32 %v1546, %v1548
    %v1550 = vadd.f32 %v1546, %v1549
    %vm1551 = vweird.f32 %v1543
    %vm1552 = vweird.f32 %v1546
    %vm1553 = vmor %vm1551, %vm1552
    %v1554 = vsel %vm1553, %v1546, %v1550
    %v1555 = vand.u32 2147483647, %v1543
    %vm1556 = vcmp.eq.f32.partialorder %v1555, 8.507059e+37
    %v1557 = vand.u32 %v1543, 2147483648
    %v1558 = vor.u32 1.1754944e-38, %v1557
    %v1559 = vsel %vm1556, %v1558, %v1554
    %v1560 = vmul.f32 1.0, %v1559
    %v1561 = vrcp.pop %v1544
    %v1562 = vmul.f32 %v1544, %v1561
    %v1563 = vsub.f32 1.0, %v1562
    %v1564 = vmul.f32 %v1561, %v1563
    %v1565 = vadd.f32 %v1561, %v1564
    %vm1566 = vweird.f32 %v1544
    %vm1567 = vweird.f32 %v1561
    %vm1568 = vmor %vm1566, %vm1567
    %v1569 = vsel %vm1568, %v1561, %v1565
    %v1570 = vand.u32 2147483647, %v1544
    %vm1571 = vcmp.eq.f32.partialorder %v1570, 8.507059e+37
    %v1572 = vand.u32 %v1544, 2147483648
    %v1573 = vor.u32 1.1754944e-38, %v1572
    %v1574 = vsel %vm1571, %v1573, %v1569
    %v1575 = vmul.f32 1.0, %v1574
    %v1576 = vrcp.pop %v1545
    %v1577 = vmul.f32 %v1545, %v1576
    %v1578 = vsub.f32 1.0, %v1577
    %v1579 = vmul.f32 %v1576, %v1578
    %v1580 = vadd.f32 %v1576, %v1579
    %vm1581 = vweird.f32 %v1545
    %vm1582 = vweird.f32 %v1576
    %vm1583 = vmor %vm1581, %vm1582
    %v1584 = vsel %vm1583, %v1576, %v1580
    %v1585 = vand.u32 2147483647, %v1545
    %vm1586 = vcmp.eq.f32.partialorder %v1585, 8.507059e+37
    %v1587 = vand.u32 %v1545, 2147483648
    %v1588 = vor.u32 1.1754944e-38, %v1587
    %v1589 = vsel %vm1586, %v1588, %v1584
    %v1590 = vmul.f32 1.0, %v1589
    %v1591 = vtanh.pop %v1533
    %v1592 = vmul.f32 %v1575, %v1443
    %v1593 = vmul.f32 %v1560, %v1591
    %v1594 = vadd.f32 %v1592, %v1593
    %v1595 = vtanh.pop %v1594
    %v1596 = vmul.f32 %v1590, %v1595
    %s1597 = scalar_lea.vmem [#allocation3], 1056
    %s1598 = scalar_lea.vmem %s1597, 1024 [#allocation3]
    %v1599 = vld [vmem:[%s1598] ss:$8 sm:$0xf]
    %v1600 = vld [vmem:[%s1597] sm:$0xff]
    %v1601 = vld [vmem:[%s1597 + $0x8] sm:$0xff]
    %v1602 = vld [vmem:[%s1597 + $0x10] sm:$0xff]
    %v1603 = vld [vmem:[%s1597 + $0x18] sm:$0xff]
    %v1604 = vld [vmem:[%s1597 + $0x20] sm:$0xff]
    %v1605 = vld [vmem:[%s1597 + $0x28] sm:$0xff]
    %v1606 = vld [vmem:[%s1597 + $0x30] sm:$0xff]
    %v1607 = vld [vmem:[%s1597 + $0x38] sm:$0xff]
    %v1608 = vld [vmem:[%s1597 + $0x40] sm:$0xff]
    %v1609 = vld [vmem:[%s1597 + $0x48] sm:$0xff]
    %v1610 = vld [vmem:[%s1597 + $0x50] sm:$0xff]
    %v1611 = vld [vmem:[%s1597 + $0x58] sm:$0xff]
    %v1612 = vld [vmem:[%s1597 + $0x60] sm:$0xff]
    %v1613 = vld [vmem:[%s1597 + $0x68] sm:$0xff]
    %v1614 = vld [vmem:[%s1597 + $0x70] sm:$0xff]
    %v1615 = vld [vmem:[%s1597 + $0x78] sm:$0xff]
    %v1616 = vld [vmem:[%s1597 + $0x80] sm:$0xff]
    %v1617 = vld [vmem:[%s1597 + $0x88] sm:$0xff]
    %v1618 = vld [vmem:[%s1597 + $0x90] sm:$0xff]
    %v1619 = vld [vmem:[%s1597 + $0x98] sm:$0xff]
    %v1620 = vld [vmem:[%s1597 + $0xa0] sm:$0xff]
    %v1621 = vld [vmem:[%s1597 + $0xa8] sm:$0xff]
    %v1622 = vld [vmem:[%s1597 + $0xb0] sm:$0xff]
    %v1623 = vld [vmem:[%s1597 + $0xb8] sm:$0xff]
    %v1624 = vld [vmem:[%s1597 + $0xc0] sm:$0xff]
    %v1625 = vld [vmem:[%s1597 + $0xc8] sm:$0xff]
    %v1626 = vld [vmem:[%s1597 + $0xd0] sm:$0xff]
    %v1627 = vld [vmem:[%s1597 + $0xd8] sm:$0xff]
    %v1628 = vld [vmem:[%s1597 + $0xe0] sm:$0xff]
    %v1629 = vld [vmem:[%s1597 + $0xe8] sm:$0xff]
    %v1630 = vld [vmem:[%s1597 + $0xf0] sm:$0xff]
    %v1631 = vld [vmem:[%s1597 + $0xf8] sm:$0xff]
    %v1632 = vld [vmem:[%s1597 + $0x100] sm:$0xff]
    %v1633 = vld [vmem:[%s1597 + $0x108] sm:$0xff]
    %v1634 = vld [vmem:[%s1597 + $0x110] sm:$0xff]
    %v1635 = vld [vmem:[%s1597 + $0x118] sm:$0xff]
    %v1636 = vld [vmem:[%s1597 + $0x120] sm:$0xff]
    %v1637 = vld [vmem:[%s1597 + $0x128] sm:$0xff]
    %v1638 = vld [vmem:[%s1597 + $0x130] sm:$0xff]
    %v1639 = vld [vmem:[%s1597 + $0x138] sm:$0xff]
    %v1640 = vld [vmem:[%s1597 + $0x140] sm:$0xff]
    %v1641 = vld [vmem:[%s1597 + $0x148] sm:$0xff]
    %v1642 = vld [vmem:[%s1597 + $0x150] sm:$0xff]
    %v1643 = vld [vmem:[%s1597 + $0x158] sm:$0xff]
    %v1644 = vld [vmem:[%s1597 + $0x160] sm:$0xff]
    %v1645 = vld [vmem:[%s1597 + $0x168] sm:$0xff]
    %v1646 = vld [vmem:[%s1597 + $0x170] sm:$0xff]
    %v1647 = vld [vmem:[%s1597 + $0x178] sm:$0xff]
    %v1648 = vld [vmem:[%s1597 + $0x180] sm:$0xff]
    %v1649 = vld [vmem:[%s1597 + $0x188] sm:$0xff]
    %v1650 = vld [vmem:[%s1597 + $0x190] sm:$0xff]
    %v1651 = vld [vmem:[%s1597 + $0x198] sm:$0xff]
    %v1652 = vld [vmem:[%s1597 + $0x1a0] sm:$0xff]
    %v1653 = vld [vmem:[%s1597 + $0x1a8] sm:$0xff]
    %v1654 = vld [vmem:[%s1597 + $0x1b0] sm:$0xff]
    %v1655 = vld [vmem:[%s1597 + $0x1b8] sm:$0xff]
    %v1656 = vld [vmem:[%s1597 + $0x1c0] sm:$0xff]
    %v1657 = vld [vmem:[%s1597 + $0x1c8] sm:$0xff]
    %v1658 = vld [vmem:[%s1597 + $0x1d0] sm:$0xff]
    %v1659 = vld [vmem:[%s1597 + $0x1d8] sm:$0xff]
    %v1660 = vld [vmem:[%s1597 + $0x1e0] sm:$0xff]
    %v1661 = vld [vmem:[%s1597 + $0x1e8] sm:$0xff]
    %v1662 = vld [vmem:[%s1597 + $0x1f0] sm:$0xff]
    %v1663 = vld [vmem:[%s1597 + $0x1f8] sm:$0xff]
    %v1665 = vperm.slane %v1599, 0
    %v1666 = vperm.slane %v1599, 1
    %v1667 = vperm.slane %v1599, 2
    %v1668 = vperm.slane %v1599, 3
    %1673 = vmatpush.msra.mxu0 %v1660
    %1674 = vmatpush.msra.mxu0 %v1656
    %1675 = vmatpush.msra.mxu0 %v1652
    %1676 = vmatpush.msra.mxu0 %v1648
    %1677 = vmatpush.msra.mxu0 %v1644
    %1678 = vmatpush.msra.mxu0 %v1640
    %1679 = vmatpush.msra.mxu0 %v1636
    %1680 = vmatpush.msra.mxu0 %v1632
    %1681 = vmatpush.msra.mxu0 %v1628
    %1682 = vmatpush.msra.mxu0 %v1624
    %1683 = vmatpush.msra.mxu0 %v1620
    %1684 = vmatpush.msra.mxu0 %v1616
    %1685 = vmatpush.msra.mxu0 %v1612
    %1686 = vmatpush.msra.mxu0 %v1608
    %1687 = vmatpush.msra.mxu0 %v1604
    %1688 = vmatpush.msra.mxu0 %v1600
    %1689 = vmatmul.f32.gmra.mxu0 %v539
    %v1690 = vpop.f32.mrf.mxu0
    %v1691 = vadd.f32 %v1665, %v1690
    %1692 = vmatmul.f32.gmra.mxu0 %v690
    %v1693 = vpop.f32.mrf.mxu0
    %v1694 = vadd.f32 %v1665, %v1693
    %1695 = vmatmul.f32.gmra.mxu0 %v841
    %v1696 = vpop.f32.mrf.mxu0
    %v1697 = vadd.f32 %v1665, %v1696
    %1698 = vmatmul.f32.gmra.mxu0 %v992
    %v1699 = vpop.f32.mrf.mxu0
    %v1700 = vadd.f32 %v1665, %v1699
    %1701 = vmatmul.f32.gmra.mxu0 %v1143
    %v1702 = vpop.f32.mrf.mxu0
    %v1703 = vadd.f32 %v1665, %v1702
    %1704 = vmatmul.f32.gmra.mxu0 %v1294
    %v1705 = vpop.f32.mrf.mxu0
    %v1706 = vadd.f32 %v1665, %v1705
    %1707 = vmatmul.f32.gmra.mxu0 %v1445
    %v1708 = vpop.f32.mrf.mxu0
    %v1709 = vadd.f32 %v1665, %v1708
    %1710 = vmatmul.f32.gmra.mxu0 %v1596
    %v1711 = vpop.f32.mrf.mxu0
    %v1712 = vadd.f32 %v1665, %v1711
    %1713 = vdwg.mxu0
    %1714 = vmatpush.msra.mxu0 %v1661
    %1715 = vmatpush.msra.mxu0 %v1657
    %1716 = vmatpush.msra.mxu0 %v1653
    %1717 = vmatpush.msra.mxu0 %v1649
    %1718 = vmatpush.msra.mxu0 %v1645
    %1719 = vmatpush.msra.mxu0 %v1641
    %1720 = vmatpush.msra.mxu0 %v1637
    %1721 = vmatpush.msra.mxu0 %v1633
    %1722 = vmatpush.msra.mxu0 %v1629
    %1723 = vmatpush.msra.mxu0 %v1625
    %1724 = vmatpush.msra.mxu0 %v1621
    %1725 = vmatpush.msra.mxu0 %v1617
    %1726 = vmatpush.msra.mxu0 %v1613
    %1727 = vmatpush.msra.mxu0 %v1609
    %1728 = vmatpush.msra.mxu0 %v1605
    %1729 = vmatpush.msra.mxu0 %v1601
    %1730 = vmatmul.f32.gmra.mxu0 %v539
    %v1731 = vpop.f32.mrf.mxu0
    %v1732 = vadd.f32 %v1666, %v1731
    %1733 = vmatmul.f32.gmra.mxu0 %v690
    %v1734 = vpop.f32.mrf.mxu0
    %v1735 = vadd.f32 %v1666, %v1734
    %1736 = vmatmul.f32.gmra.mxu0 %v841
    %v1737 = vpop.f32.mrf.mxu0
    %v1738 = vadd.f32 %v1666, %v1737
    %1739 = vmatmul.f32.gmra.mxu0 %v992
    %v1740 = vpop.f32.mrf.mxu0
    %v1741 = vadd.f32 %v1666, %v1740
    %1742 = vmatmul.f32.gmra.mxu0 %v1143
    %v1743 = vpop.f32.mrf.mxu0
    %v1744 = vadd.f32 %v1666, %v1743
    %1745 = vmatmul.f32.gmra.mxu0 %v1294
    %v1746 = vpop.f32.mrf.mxu0
    %v1747 = vadd.f32 %v1666, %v1746
    %1748 = vmatmul.f32.gmra.mxu0 %v1445
    %v1749 = vpop.f32.mrf.mxu0
    %v1750 = vadd.f32 %v1666, %v1749
    %1751 = vmatmul.f32.gmra.mxu0 %v1596
    %v1752 = vpop.f32.mrf.mxu0
    %v1753 = vadd.f32 %v1666, %v1752
    %1754 = vdwg.mxu0
    %1755 = vmatpush.msra.mxu0 %v1662
    %1756 = vmatpush.msra.mxu0 %v1658
    %1757 = vmatpush.msra.mxu0 %v1654
    %1758 = vmatpush.msra.mxu0 %v1650
    %1759 = vmatpush.msra.mxu0 %v1646
    %1760 = vmatpush.msra.mxu0 %v1642
    %1761 = vmatpush.msra.mxu0 %v1638
    %1762 = vmatpush.msra.mxu0 %v1634
    %1763 = vmatpush.msra.mxu0 %v1630
    %1764 = vmatpush.msra.mxu0 %v1626
    %1765 = vmatpush.msra.mxu0 %v1622
    %1766 = vmatpush.msra.mxu0 %v1618
    %1767 = vmatpush.msra.mxu0 %v1614
    %1768 = vmatpush.msra.mxu0 %v1610
    %1769 = vmatpush.msra.mxu0 %v1606
    %1770 = vmatpush.msra.mxu0 %v1602
    %1771 = vmatmul.f32.gmra.mxu0 %v539
    %v1772 = vpop.f32.mrf.mxu0
    %v1773 = vadd.f32 %v1667, %v1772
    %1774 = vmatmul.f32.gmra.mxu0 %v690
    %v1775 = vpop.f32.mrf.mxu0
    %v1776 = vadd.f32 %v1667, %v1775
    %1777 = vmatmul.f32.gmra.mxu0 %v841
    %v1778 = vpop.f32.mrf.mxu0
    %v1779 = vadd.f32 %v1667, %v1778
    %1780 = vmatmul.f32.gmra.mxu0 %v992
    %v1781 = vpop.f32.mrf.mxu0
    %v1782 = vadd.f32 %v1667, %v1781
    %1783 = vmatmul.f32.gmra.mxu0 %v1143
    %v1784 = vpop.f32.mrf.mxu0
    %v1785 = vadd.f32 %v1667, %v1784
    %1786 = vmatmul.f32.gmra.mxu0 %v1294
    %v1787 = vpop.f32.mrf.mxu0
    %v1788 = vadd.f32 %v1667, %v1787
    %1789 = vmatmul.f32.gmra.mxu0 %v1445
    %v1790 = vpop.f32.mrf.mxu0
    %v1791 = vadd.f32 %v1667, %v1790
    %1792 = vmatmul.f32.gmra.mxu0 %v1596
    %v1793 = vpop.f32.mrf.mxu0
    %v1794 = vadd.f32 %v1667, %v1793
    %1795 = vdwg.mxu0
    %1796 = vmatpush.msra.mxu0 %v1663
    %1797 = vmatpush.msra.mxu0 %v1659
    %1798 = vmatpush.msra.mxu0 %v1655
    %1799 = vmatpush.msra.mxu0 %v1651
    %1800 = vmatpush.msra.mxu0 %v1647
    %1801 = vmatpush.msra.mxu0 %v1643
    %1802 = vmatpush.msra.mxu0 %v1639
    %1803 = vmatpush.msra.mxu0 %v1635
    %1804 = vmatpush.msra.mxu0 %v1631
    %1805 = vmatpush.msra.mxu0 %v1627
    %1806 = vmatpush.msra.mxu0 %v1623
    %1807 = vmatpush.msra.mxu0 %v1619
    %1808 = vmatpush.msra.mxu0 %v1615
    %1809 = vmatpush.msra.mxu0 %v1611
    %1810 = vmatpush.msra.mxu0 %v1607
    %1811 = vmatpush.msra.mxu0 %v1603
    %1812 = vmatmul.f32.gmra.mxu0 %v539
    %v1813 = vpop.f32.mrf.mxu0
    %v1814 = vadd.f32 %v1668, %v1813
    %1815 = vmatmul.f32.gmra.mxu0 %v690
    %v1816 = vpop.f32.mrf.mxu0
    %v1817 = vadd.f32 %v1668, %v1816
    %1818 = vmatmul.f32.gmra.mxu0 %v841
    %v1819 = vpop.f32.mrf.mxu0
    %v1820 = vadd.f32 %v1668, %v1819
    %1821 = vmatmul.f32.gmra.mxu0 %v992
    %v1822 = vpop.f32.mrf.mxu0
    %v1823 = vadd.f32 %v1668, %v1822
    %1824 = vmatmul.f32.gmra.mxu0 %v1143
    %v1825 = vpop.f32.mrf.mxu0
    %v1826 = vadd.f32 %v1668, %v1825
    %1827 = vmatmul.f32.gmra.mxu0 %v1294
    %v1828 = vpop.f32.mrf.mxu0
    %v1829 = vadd.f32 %v1668, %v1828
    %1830 = vmatmul.f32.gmra.mxu0 %v1445
    %v1831 = vpop.f32.mrf.mxu0
    %v1832 = vadd.f32 %v1668, %v1831
    %1833 = vmatmul.f32.gmra.mxu0 %v1596
    %v1834 = vpop.f32.mrf.mxu0
    %v1835 = vadd.f32 %v1668, %v1834
    %1836 = vdwg.mxu0
    %1837 = vst [vmem:[#allocation2] sm:$0xff] %v1691
    %1838 = vst [vmem:[#allocation2 + $0x8] sm:$0xff] %v1732
    %1839 = vst [vmem:[#allocation2 + $0x10] sm:$0xff] %v1773
    %1840 = vst [vmem:[#allocation2 + $0x18] sm:$0xff] %v1814
    %1841 = vst [vmem:[#allocation2 + $0x20] sm:$0xff] %v1694
    %1842 = vst [vmem:[#allocation2 + $0x28] sm:$0xff] %v1735
    %1843 = vst [vmem:[#allocation2 + $0x30] sm:$0xff] %v1776
    %1844 = vst [vmem:[#allocation2 + $0x38] sm:$0xff] %v1817
    %1845 = vst [vmem:[#allocation2 + $0x40] sm:$0xff] %v1697
    %1846 = vst [vmem:[#allocation2 + $0x48] sm:$0xff] %v1738
    %1847 = vst [vmem:[#allocation2 + $0x50] sm:$0xff] %v1779
    %1848 = vst [vmem:[#allocation2 + $0x58] sm:$0xff] %v1820
    %1849 = vst [vmem:[#allocation2 + $0x60] sm:$0xff] %v1700
    %1850 = vst [vmem:[#allocation2 + $0x68] sm:$0xff] %v1741
    %1851 = vst [vmem:[#allocation2 + $0x70] sm:$0xff] %v1782
    %1852 = vst [vmem:[#allocation2 + $0x78] sm:$0xff] %v1823
    %1853 = vst [vmem:[#allocation2 + $0x80] sm:$0xff] %v1703
    %1854 = vst [vmem:[#allocation2 + $0x88] sm:$0xff] %v1744
    %1855 = vst [vmem:[#allocation2 + $0x90] sm:$0xff] %v1785
    %1856 = vst [vmem:[#allocation2 + $0x98] sm:$0xff] %v1826
    %1857 = vst [vmem:[#allocation2 + $0xa0] sm:$0xff] %v1706
    %1858 = vst [vmem:[#allocation2 + $0xa8] sm:$0xff] %v1747
    %1859 = vst [vmem:[#allocation2 + $0xb0] sm:$0xff] %v1788
    %1860 = vst [vmem:[#allocation2 + $0xb8] sm:$0xff] %v1829
    %1861 = vst [vmem:[#allocation2 + $0xc0] sm:$0xff] %v1709
    %1862 = vst [vmem:[#allocation2 + $0xc8] sm:$0xff] %v1750
    %1863 = vst [vmem:[#allocation2 + $0xd0] sm:$0xff] %v1791
    %1864 = vst [vmem:[#allocation2 + $0xd8] sm:$0xff] %v1832
    %1865 = vst [vmem:[#allocation2 + $0xe0] sm:$0xff] %v1712
    %1866 = vst [vmem:[#allocation2 + $0xe8] sm:$0xff] %v1753
    %1867 = vst [vmem:[#allocation2 + $0xf0] sm:$0xff] %v1794
    %1868 = vst [vmem:[#allocation2 + $0xf8] sm:$0xff] %v1835
    %v1869 = vld [vmem:[#allocation2] sm:$0xff]
    %v1870 = vld [vmem:[#allocation2 + $0x8] sm:$0xff]
    %v1871 = vld [vmem:[#allocation2 + $0x10] sm:$0xff]
    %v1872 = vld [vmem:[#allocation2 + $0x18] sm:$0xff]
    %v1873 = vld [vmem:[%s1597 + $0x200] sm:$0xff]
    %v1874 = vld [vmem:[%s1597 + $0x208] sm:$0xff]
    %v1875 = vld [vmem:[%s1597 + $0x210] sm:$0xff]
    %v1876 = vld [vmem:[%s1597 + $0x218] sm:$0xff]
    %v1877 = vld [vmem:[%s1597 + $0x220] sm:$0xff]
    %v1878 = vld [vmem:[%s1597 + $0x228] sm:$0xff]
    %v1879 = vld [vmem:[%s1597 + $0x230] sm:$0xff]
    %v1880 = vld [vmem:[%s1597 + $0x238] sm:$0xff]
    %v1881 = vld [vmem:[%s1597 + $0x240] sm:$0xff]
    %v1882 = vld [vmem:[%s1597 + $0x248] sm:$0xff]
    %v1883 = vld [vmem:[%s1597 + $0x250] sm:$0xff]
    %v1884 = vld [vmem:[%s1597 + $0x258] sm:$0xff]
    %v1885 = vld [vmem:[%s1597 + $0x260] sm:$0xff]
    %v1886 = vld [vmem:[%s1597 + $0x268] sm:$0xff]
    %v1887 = vld [vmem:[%s1597 + $0x270] sm:$0xff]
    %v1888 = vld [vmem:[%s1597 + $0x278] sm:$0xff]
    %v1889 = vld [vmem:[%s1597 + $0x280] sm:$0xff]
    %v1890 = vld [vmem:[%s1597 + $0x288] sm:$0xff]
    %v1891 = vld [vmem:[%s1597 + $0x290] sm:$0xff]
    %v1892 = vld [vmem:[%s1597 + $0x298] sm:$0xff]
    %v1893 = vld [vmem:[%s1597 + $0x2a0] sm:$0xff]
    %v1894 = vld [vmem:[%s1597 + $0x2a8] sm:$0xff]
    %v1895 = vld [vmem:[%s1597 + $0x2b0] sm:$0xff]
    %v1896 = vld [vmem:[%s1597 + $0x2b8] sm:$0xff]
    %v1897 = vld [vmem:[%s1597 + $0x2c0] sm:$0xff]
    %v1898 = vld [vmem:[%s1597 + $0x2c8] sm:$0xff]
    %v1899 = vld [vmem:[%s1597 + $0x2d0] sm:$0xff]
    %v1900 = vld [vmem:[%s1597 + $0x2d8] sm:$0xff]
    %v1901 = vld [vmem:[%s1597 + $0x2e0] sm:$0xff]
    %v1902 = vld [vmem:[%s1597 + $0x2e8] sm:$0xff]
    %v1903 = vld [vmem:[%s1597 + $0x2f0] sm:$0xff]
    %v1904 = vld [vmem:[%s1597 + $0x2f8] sm:$0xff]
    %v1905 = vld [vmem:[%s1597 + $0x300] sm:$0xff]
    %v1906 = vld [vmem:[%s1597 + $0x308] sm:$0xff]
    %v1907 = vld [vmem:[%s1597 + $0x310] sm:$0xff]
    %v1908 = vld [vmem:[%s1597 + $0x318] sm:$0xff]
    %v1909 = vld [vmem:[%s1597 + $0x320] sm:$0xff]
    %v1910 = vld [vmem:[%s1597 + $0x328] sm:$0xff]
    %v1911 = vld [vmem:[%s1597 + $0x330] sm:$0xff]
    %v1912 = vld [vmem:[%s1597 + $0x338] sm:$0xff]
    %v1913 = vld [vmem:[%s1597 + $0x340] sm:$0xff]
    %v1914 = vld [vmem:[%s1597 + $0x348] sm:$0xff]
    %v1915 = vld [vmem:[%s1597 + $0x350] sm:$0xff]
    %v1916 = vld [vmem:[%s1597 + $0x358] sm:$0xff]
    %v1917 = vld [vmem:[%s1597 + $0x360] sm:$0xff]
    %v1918 = vld [vmem:[%s1597 + $0x368] sm:$0xff]
    %v1919 = vld [vmem:[%s1597 + $0x370] sm:$0xff]
    %v1920 = vld [vmem:[%s1597 + $0x378] sm:$0xff]
    %v1921 = vld [vmem:[%s1597 + $0x380] sm:$0xff]
    %v1922 = vld [vmem:[%s1597 + $0x388] sm:$0xff]
    %v1923 = vld [vmem:[%s1597 + $0x390] sm:$0xff]
    %v1924 = vld [vmem:[%s1597 + $0x398] sm:$0xff]
    %v1925 = vld [vmem:[%s1597 + $0x3a0] sm:$0xff]
    %v1926 = vld [vmem:[%s1597 + $0x3a8] sm:$0xff]
    %v1927 = vld [vmem:[%s1597 + $0x3b0] sm:$0xff]
    %v1928 = vld [vmem:[%s1597 + $0x3b8] sm:$0xff]
    %v1929 = vld [vmem:[%s1597 + $0x3c0] sm:$0xff]
    %v1930 = vld [vmem:[%s1597 + $0x3c8] sm:$0xff]
    %v1931 = vld [vmem:[%s1597 + $0x3d0] sm:$0xff]
    %v1932 = vld [vmem:[%s1597 + $0x3d8] sm:$0xff]
    %v1933 = vld [vmem:[%s1597 + $0x3e0] sm:$0xff]
    %v1934 = vld [vmem:[%s1597 + $0x3e8] sm:$0xff]
    %v1935 = vld [vmem:[%s1597 + $0x3f0] sm:$0xff]
    %v1936 = vld [vmem:[%s1597 + $0x3f8] sm:$0xff]
    %1937 = vmatpush.msra.mxu0 %v1933
    %1938 = vmatpush.msra.mxu0 %v1929
    %1939 = vmatpush.msra.mxu0 %v1925
    %1940 = vmatpush.msra.mxu0 %v1921
    %1941 = vmatpush.msra.mxu0 %v1917
    %1942 = vmatpush.msra.mxu0 %v1913
    %1943 = vmatpush.msra.mxu0 %v1909
    %1944 = vmatpush.msra.mxu0 %v1905
    %1945 = vmatpush.msra.mxu0 %v1901
    %1946 = vmatpush.msra.mxu0 %v1897
    %1947 = vmatpush.msra.mxu0 %v1893
    %1948 = vmatpush.msra.mxu0 %v1889
    %1949 = vmatpush.msra.mxu0 %v1885
    %1950 = vmatpush.msra.mxu0 %v1881
    %1951 = vmatpush.msra.mxu0 %v1877
    %1952 = vmatpush.msra.mxu0 %v1873
    %1953 = vmatmul.f32.gmra.mxu0 0.0
    %v1954 = vpop.f32.mrf.mxu0
    %v1955 = vadd.f32 0.0, %v1954
    %1956 = vdwg.mxu0
    %1957 = vmatpush.msra.mxu0 %v1934
    %1958 = vmatpush.msra.mxu0 %v1930
    %1959 = vmatpush.msra.mxu0 %v1926
    %1960 = vmatpush.msra.mxu0 %v1922
    %1961 = vmatpush.msra.mxu0 %v1918
    %1962 = vmatpush.msra.mxu0 %v1914
    %1963 = vmatpush.msra.mxu0 %v1910
    %1964 = vmatpush.msra.mxu0 %v1906
    %1965 = vmatpush.msra.mxu0 %v1902
    %1966 = vmatpush.msra.mxu0 %v1898
    %1967 = vmatpush.msra.mxu0 %v1894
    %1968 = vmatpush.msra.mxu0 %v1890
    %1969 = vmatpush.msra.mxu0 %v1886
    %1970 = vmatpush.msra.mxu0 %v1882
    %1971 = vmatpush.msra.mxu0 %v1878
    %1972 = vmatpush.msra.mxu0 %v1874
    %1973 = vmatmul.f32.gmra.mxu0 0.0
    %v1974 = vpop.f32.mrf.mxu0
    %v1975 = vadd.f32 0.0, %v1974
    %1976 = vdwg.mxu0
    %1977 = vmatpush.msra.mxu0 %v1935
    %1978 = vmatpush.msra.mxu0 %v1931
    %1979 = vmatpush.msra.mxu0 %v1927
    %1980 = vmatpush.msra.mxu0 %v1923
    %1981 = vmatpush.msra.mxu0 %v1919
    %1982 = vmatpush.msra.mxu0 %v1915
    %1983 = vmatpush.msra.mxu0 %v1911
    %1984 = vmatpush.msra.mxu0 %v1907
    %1985 = vmatpush.msra.mxu0 %v1903
    %1986 = vmatpush.msra.mxu0 %v1899
    %1987 = vmatpush.msra.mxu0 %v1895
    %1988 = vmatpush.msra.mxu0 %v1891
    %1989 = vmatpush.msra.mxu0 %v1887
    %1990 = vmatpush.msra.mxu0 %v1883
    %1991 = vmatpush.msra.mxu0 %v1879
    %1992 = vmatpush.msra.mxu0 %v1875
    %1993 = vmatmul.f32.gmra.mxu0 0.0
    %v1994 = vpop.f32.mrf.mxu0
    %v1995 = vadd.f32 0.0, %v1994
    %1996 = vdwg.mxu0
    %1997 = vmatpush.msra.mxu0 %v1936
    %1998 = vmatpush.msra.mxu0 %v1932
    %1999 = vmatpush.msra.mxu0 %v1928
    %2000 = vmatpush.msra.mxu0 %v1924
    %2001 = vmatpush.msra.mxu0 %v1920
    %2002 = vmatpush.msra.mxu0 %v1916
    %2003 = vmatpush.msra.mxu0 %v1912
    %2004 = vmatpush.msra.mxu0 %v1908
    %2005 = vmatpush.msra.mxu0 %v1904
    %2006 = vmatpush.msra.mxu0 %v1900
    %2007 = vmatpush.msra.mxu0 %v1896
    %2008 = vmatpush.msra.mxu0 %v1892
    %2009 = vmatpush.msra.mxu0 %v1888
    %2010 = vmatpush.msra.mxu0 %v1884
    %2011 = vmatpush.msra.mxu0 %v1880
    %2012 = vmatpush.msra.mxu0 %v1876
    %2013 = vmatmul.f32.gmra.mxu0 0.0
    %v2014 = vpop.f32.mrf.mxu0
    %v2015 = vadd.f32 0.0, %v2014
    %2016 = vdwg.mxu0
    %v2017 = vadd.f32 %v1869, %v1955
    %v2018 = vadd.f32 %v1870, %v1975
    %v2019 = vadd.f32 %v1871, %v1995
    %v2020 = vadd.f32 %v1872, %v2015
    %v2021 = vsub.f32 0.0, %v2017
    %v2022 = vsub.f32 0.0, %v2018
    %v2023 = vsub.f32 0.0, %v2019
    %v2024 = vmul.f32 %v2021, 1.442695
    %v2025 = vpow.pop %v2024
    %v2026 = vmul.f32 %v2022, 1.442695
    %v2027 = vpow.pop %v2026
    %v2028 = vmul.f32 %v2023, 1.442695
    %v2029 = vpow.pop %v2028
    %v2030 = vadd.f32 %v2025, 1.0
    %v2031 = vadd.f32 %v2027, 1.0
    %v2032 = vadd.f32 %v2029, 1.0
    %v2033 = vrcp.pop %v2030
    %v2034 = vmul.f32 %v2030, %v2033
    %v2035 = vsub.f32 1.0, %v2034
    %v2036 = vmul.f32 %v2033, %v2035
    %v2037 = vadd.f32 %v2033, %v2036
    %vm2038 = vweird.f32 %v2030
    %vm2039 = vweird.f32 %v2033
    %vm2040 = vmor %vm2038, %vm2039
    %v2041 = vsel %vm2040, %v2033, %v2037
    %v2042 = vand.u32 2147483647, %v2030
    %vm2043 = vcmp.eq.f32.partialorder %v2042, 8.507059e+37
    %v2044 = vand.u32 %v2030, 2147483648
    %v2045 = vor.u32 1.1754944e-38, %v2044
    %v2046 = vsel %vm2043, %v2045, %v2041
    %v2047 = vmul.f32 1.0, %v2046
    %v2048 = vrcp.pop %v2031
    %v2049 = vmul.f32 %v2031, %v2048
    %v2050 = vsub.f32 1.0, %v2049
    %v2051 = vmul.f32 %v2048, %v2050
    %v2052 = vadd.f32 %v2048, %v2051
    %vm2053 = vweird.f32 %v2031
    %vm2054 = vweird.f32 %v2048
    %vm2055 = vmor %vm2053, %vm2054
    %v2056 = vsel %vm2055, %v2048, %v2052
    %v2057 = vand.u32 2147483647, %v2031
    %vm2058 = vcmp.eq.f32.partialorder %v2057, 8.507059e+37
    %v2059 = vand.u32 %v2031, 2147483648
    %v2060 = vor.u32 1.1754944e-38, %v2059
    %v2061 = vsel %vm2058, %v2060, %v2056
    %v2062 = vmul.f32 1.0, %v2061
    %v2063 = vrcp.pop %v2032
    %v2064 = vmul.f32 %v2032, %v2063
    %v2065 = vsub.f32 1.0, %v2064
    %v2066 = vmul.f32 %v2063, %v2065
    %v2067 = vadd.f32 %v2063, %v2066
    %vm2068 = vweird.f32 %v2032
    %vm2069 = vweird.f32 %v2063
    %vm2070 = vmor %vm2068, %vm2069
    %v2071 = vsel %vm2070, %v2063, %v2067
    %v2072 = vand.u32 2147483647, %v2032
    %vm2073 = vcmp.eq.f32.partialorder %v2072, 8.507059e+37
    %v2074 = vand.u32 %v2032, 2147483648
    %v2075 = vor.u32 1.1754944e-38, %v2074
    %v2076 = vsel %vm2073, %v2075, %v2071
    %v2077 = vmul.f32 1.0, %v2076
    %v2078 = vtanh.pop %v2020
    %v2079 = vmul.f32 %v2062, 0.0
    %v2080 = vmul.f32 %v2047, %v2078
    %v2081 = vadd.f32 %v2079, %v2080
    %v2082 = vtanh.pop %v2081
    %v2083 = vmul.f32 %v2077, %v2082
    %v2084 = vld [vmem:[#allocation2 + $0x20] sm:$0xff]
    %v2085 = vld [vmem:[#allocation2 + $0x28] sm:$0xff]
    %v2086 = vld [vmem:[#allocation2 + $0x30] sm:$0xff]
    %v2087 = vld [vmem:[#allocation2 + $0x38] sm:$0xff]
    %2088 = vmatpush.msra.mxu0 %v1933
    %2089 = vmatpush.msra.mxu0 %v1929
    %2090 = vmatpush.msra.mxu0 %v1925
    %2091 = vmatpush.msra.mxu0 %v1921
    %2092 = vmatpush.msra.mxu0 %v1917
    %2093 = vmatpush.msra.mxu0 %v1913
    %2094 = vmatpush.msra.mxu0 %v1909
    %2095 = vmatpush.msra.mxu0 %v1905
    %2096 = vmatpush.msra.mxu0 %v1901
    %2097 = vmatpush.msra.mxu0 %v1897
    %2098 = vmatpush.msra.mxu0 %v1893
    %2099 = vmatpush.msra.mxu0 %v1889
    %2100 = vmatpush.msra.mxu0 %v1885
    %2101 = vmatpush.msra.mxu0 %v1881
    %2102 = vmatpush.msra.mxu0 %v1877
    %2103 = vmatpush.msra.mxu0 %v1873
    %2104 = vmatmul.f32.gmra.mxu0 %v2083
    %v2105 = vpop.f32.mrf.mxu0
    %v2106 = vadd.f32 0.0, %v2105
    %2107 = vdwg.mxu0
    %2108 = vmatpush.msra.mxu0 %v1934
    %2109 = vmatpush.msra.mxu0 %v1930
    %2110 = vmatpush.msra.mxu0 %v1926
    %2111 = vmatpush.msra.mxu0 %v1922
    %2112 = vmatpush.msra.mxu0 %v1918
    %2113 = vmatpush.msra.mxu0 %v1914
    %2114 = vmatpush.msra.mxu0 %v1910
    %2115 = vmatpush.msra.mxu0 %v1906
    %2116 = vmatpush.msra.mxu0 %v1902
    %2117 = vmatpush.msra.mxu0 %v1898
    %2118 = vmatpush.msra.mxu0 %v1894
    %2119 = vmatpush.msra.mxu0 %v1890
    %2120 = vmatpush.msra.mxu0 %v1886
    %2121 = vmatpush.msra.mxu0 %v1882
    %2122 = vmatpush.msra.mxu0 %v1878
    %2123 = vmatpush.msra.mxu0 %v1874
    %2124 = vmatmul.f32.gmra.mxu0 %v2083
    %v2125 = vpop.f32.mrf.mxu0
    %v2126 = vadd.f32 0.0, %v2125
    %2127 = vdwg.mxu0
    %2128 = vmatpush.msra.mxu0 %v1935
    %2129 = vmatpush.msra.mxu0 %v1931
    %2130 = vmatpush.msra.mxu0 %v1927
    %2131 = vmatpush.msra.mxu0 %v1923
    %2132 = vmatpush.msra.mxu0 %v1919
    %2133 = vmatpush.msra.mxu0 %v1915
    %2134 = vmatpush.msra.mxu0 %v1911
    %2135 = vmatpush.msra.mxu0 %v1907
    %2136 = vmatpush.msra.mxu0 %v1903
    %2137 = vmatpush.msra.mxu0 %v1899
    %2138 = vmatpush.msra.mxu0 %v1895
    %2139 = vmatpush.msra.mxu0 %v1891
    %2140 = vmatpush.msra.mxu0 %v1887
    %2141 = vmatpush.msra.mxu0 %v1883
    %2142 = vmatpush.msra.mxu0 %v1879
    %2143 = vmatpush.msra.mxu0 %v1875
    %2144 = vmatmul.f32.gmra.mxu0 %v2083
    %v2145 = vpop.f32.mrf.mxu0
    %v2146 = vadd.f32 0.0, %v2145
    %2147 = vdwg.mxu0
    %2148 = vmatpush.msra.mxu0 %v1936
    %2149 = vmatpush.msra.mxu0 %v1932
    %2150 = vmatpush.msra.mxu0 %v1928
    %2151 = vmatpush.msra.mxu0 %v1924
    %2152 = vmatpush.msra.mxu0 %v1920
    %2153 = vmatpush.msra.mxu0 %v1916
    %2154 = vmatpush.msra.mxu0 %v1912
    %2155 = vmatpush.msra.mxu0 %v1908
    %2156 = vmatpush.msra.mxu0 %v1904
    %2157 = vmatpush.msra.mxu0 %v1900
    %2158 = vmatpush.msra.mxu0 %v1896
    %2159 = vmatpush.msra.mxu0 %v1892
    %2160 = vmatpush.msra.mxu0 %v1888
    %2161 = vmatpush.msra.mxu0 %v1884
    %2162 = vmatpush.msra.mxu0 %v1880
    %2163 = vmatpush.msra.mxu0 %v1876
    %2164 = vmatmul.f32.gmra.mxu0 %v2083
    %v2165 = vpop.f32.mrf.mxu0
    %v2166 = vadd.f32 0.0, %v2165
    %2167 = vdwg.mxu0
    %v2168 = vadd.f32 %v2084, %v2106
    %v2169 = vadd.f32 %v2085, %v2126
    %v2170 = vadd.f32 %v2086, %v2146
    %v2171 = vadd.f32 %v2087, %v2166
    %v2172 = vsub.f32 0.0, %v2168
    %v2173 = vsub.f32 0.0, %v2169
    %v2174 = vsub.f32 0.0, %v2170
    %v2175 = vmul.f32 %v2172, 1.442695
    %v2176 = vpow.pop %v2175
    %v2177 = vmul.f32 %v2173, 1.442695
    %v2178 = vpow.pop %v2177
    %v2179 = vmul.f32 %v2174, 1.442695
    %v2180 = vpow.pop %v2179
    %v2181 = vadd.f32 %v2176, 1.0
    %v2182 = vadd.f32 %v2178, 1.0
    %v2183 = vadd.f32 %v2180, 1.0
    %v2184 = vrcp.pop %v2181
    %v2185 = vmul.f32 %v2181, %v2184
    %v2186 = vsub.f32 1.0, %v2185
    %v2187 = vmul.f32 %v2184, %v2186
    %v2188 = vadd.f32 %v2184, %v2187
    %vm2189 = vweird.f32 %v2181
    %vm2190 = vweird.f32 %v2184
    %vm2191 = vmor %vm2189, %vm2190
    %v2192 = vsel %vm2191, %v2184, %v2188
    %v2193 = vand.u32 2147483647, %v2181
    %vm2194 = vcmp.eq.f32.partialorder %v2193, 8.507059e+37
    %v2195 = vand.u32 %v2181, 2147483648
    %v2196 = vor.u32 1.1754944e-38, %v2195
    %v2197 = vsel %vm2194, %v2196, %v2192
    %v2198 = vmul.f32 1.0, %v2197
    %v2199 = vrcp.pop %v2182
    %v2200 = vmul.f32 %v2182, %v2199
    %v2201 = vsub.f32 1.0, %v2200
    %v2202 = vmul.f32 %v2199, %v2201
    %v2203 = vadd.f32 %v2199, %v2202
    %vm2204 = vweird.f32 %v2182
    %vm2205 = vweird.f32 %v2199
    %vm2206 = vmor %vm2204, %vm2205
    %v2207 = vsel %vm2206, %v2199, %v2203
    %v2208 = vand.u32 2147483647, %v2182
    %vm2209 = vcmp.eq.f32.partialorder %v2208, 8.507059e+37
    %v2210 = vand.u32 %v2182, 2147483648
    %v2211 = vor.u32 1.1754944e-38, %v2210
    %v2212 = vsel %vm2209, %v2211, %v2207
    %v2213 = vmul.f32 1.0, %v2212
    %v2214 = vrcp.pop %v2183
    %v2215 = vmul.f32 %v2183, %v2214
    %v2216 = vsub.f32 1.0, %v2215
    %v2217 = vmul.f32 %v2214, %v2216
    %v2218 = vadd.f32 %v2214, %v2217
    %vm2219 = vweird.f32 %v2183
    %vm2220 = vweird.f32 %v2214
    %vm2221 = vmor %vm2219, %vm2220
    %v2222 = vsel %vm2221, %v2214, %v2218
    %v2223 = vand.u32 2147483647, %v2183
    %vm2224 = vcmp.eq.f32.partialorder %v2223, 8.507059e+37
    %v2225 = vand.u32 %v2183, 2147483648
    %v2226 = vor.u32 1.1754944e-38, %v2225
    %v2227 = vsel %vm2224, %v2226, %v2222
    %v2228 = vmul.f32 1.0, %v2227
    %v2229 = vtanh.pop %v2171
    %v2230 = vmul.f32 %v2213, %v2081
    %v2231 = vmul.f32 %v2198, %v2229
    %v2232 = vadd.f32 %v2230, %v2231
    %v2233 = vtanh.pop %v2232
    %v2234 = vmul.f32 %v2228, %v2233
    %v2235 = vld [vmem:[#allocation2 + $0x40] sm:$0xff]
    %v2236 = vld [vmem:[#allocation2 + $0x48] sm:$0xff]
    %v2237 = vld [vmem:[#allocation2 + $0x50] sm:$0xff]
    %v2238 = vld [vmem:[#allocation2 + $0x58] sm:$0xff]
    %2239 = vmatpush.msra.mxu0 %v1933
    %2240 = vmatpush.msra.mxu0 %v1929
    %2241 = vmatpush.msra.mxu0 %v1925
    %2242 = vmatpush.msra.mxu0 %v1921
    %2243 = vmatpush.msra.mxu0 %v1917
    %2244 = vmatpush.msra.mxu0 %v1913
    %2245 = vmatpush.msra.mxu0 %v1909
    %2246 = vmatpush.msra.mxu0 %v1905
    %2247 = vmatpush.msra.mxu0 %v1901
    %2248 = vmatpush.msra.mxu0 %v1897
    %2249 = vmatpush.msra.mxu0 %v1893
    %2250 = vmatpush.msra.mxu0 %v1889
    %2251 = vmatpush.msra.mxu0 %v1885
    %2252 = vmatpush.msra.mxu0 %v1881
    %2253 = vmatpush.msra.mxu0 %v1877
    %2254 = vmatpush.msra.mxu0 %v1873
    %2255 = vmatmul.f32.gmra.mxu0 %v2234
    %v2256 = vpop.f32.mrf.mxu0
    %v2257 = vadd.f32 0.0, %v2256
    %2258 = vdwg.mxu0
    %2259 = vmatpush.msra.mxu0 %v1934
    %2260 = vmatpush.msra.mxu0 %v1930
    %2261 = vmatpush.msra.mxu0 %v1926
    %2262 = vmatpush.msra.mxu0 %v1922
    %2263 = vmatpush.msra.mxu0 %v1918
    %2264 = vmatpush.msra.mxu0 %v1914
    %2265 = vmatpush.msra.mxu0 %v1910
    %2266 = vmatpush.msra.mxu0 %v1906
    %2267 = vmatpush.msra.mxu0 %v1902
    %2268 = vmatpush.msra.mxu0 %v1898
    %2269 = vmatpush.msra.mxu0 %v1894
    %2270 = vmatpush.msra.mxu0 %v1890
    %2271 = vmatpush.msra.mxu0 %v1886
    %2272 = vmatpush.msra.mxu0 %v1882
    %2273 = vmatpush.msra.mxu0 %v1878
    %2274 = vmatpush.msra.mxu0 %v1874
    %2275 = vmatmul.f32.gmra.mxu0 %v2234
    %v2276 = vpop.f32.mrf.mxu0
    %v2277 = vadd.f32 0.0, %v2276
    %2278 = vdwg.mxu0
    %2279 = vmatpush.msra.mxu0 %v1935
    %2280 = vmatpush.msra.mxu0 %v1931
    %2281 = vmatpush.msra.mxu0 %v1927
    %2282 = vmatpush.msra.mxu0 %v1923
    %2283 = vmatpush.msra.mxu0 %v1919
    %2284 = vmatpush.msra.mxu0 %v1915
    %2285 = vmatpush.msra.mxu0 %v1911
    %2286 = vmatpush.msra.mxu0 %v1907
    %2287 = vmatpush.msra.mxu0 %v1903
    %2288 = vmatpush.msra.mxu0 %v1899
    %2289 = vmatpush.msra.mxu0 %v1895
    %2290 = vmatpush.msra.mxu0 %v1891
    %2291 = vmatpush.msra.mxu0 %v1887
    %2292 = vmatpush.msra.mxu0 %v1883
    %2293 = vmatpush.msra.mxu0 %v1879
    %2294 = vmatpush.msra.mxu0 %v1875
    %2295 = vmatmul.f32.gmra.mxu0 %v2234
    %v2296 = vpop.f32.mrf.mxu0
    %v2297 = vadd.f32 0.0, %v2296
    %2298 = vdwg.mxu0
    %2299 = vmatpush.msra.mxu0 %v1936
    %2300 = vmatpush.msra.mxu0 %v1932
    %2301 = vmatpush.msra.mxu0 %v1928
    %2302 = vmatpush.msra.mxu0 %v1924
    %2303 = vmatpush.msra.mxu0 %v1920
    %2304 = vmatpush.msra.mxu0 %v1916
    %2305 = vmatpush.msra.mxu0 %v1912
    %2306 = vmatpush.msra.mxu0 %v1908
    %2307 = vmatpush.msra.mxu0 %v1904
    %2308 = vmatpush.msra.mxu0 %v1900
    %2309 = vmatpush.msra.mxu0 %v1896
    %2310 = vmatpush.msra.mxu0 %v1892
    %2311 = vmatpush.msra.mxu0 %v1888
    %2312 = vmatpush.msra.mxu0 %v1884
    %2313 = vmatpush.msra.mxu0 %v1880
    %2314 = vmatpush.msra.mxu0 %v1876
    %2315 = vmatmul.f32.gmra.mxu0 %v2234
    %v2316 = vpop.f32.mrf.mxu0
    %v2317 = vadd.f32 0.0, %v2316
    %2318 = vdwg.mxu0
    %v2319 = vadd.f32 %v2235, %v2257
    %v2320 = vadd.f32 %v2236, %v2277
    %v2321 = vadd.f32 %v2237, %v2297
    %v2322 = vadd.f32 %v2238, %v2317
    %v2323 = vsub.f32 0.0, %v2319
    %v2324 = vsub.f32 0.0, %v2320
    %v2325 = vsub.f32 0.0, %v2321
    %v2326 = vmul.f32 %v2323, 1.442695
    %v2327 = vpow.pop %v2326
    %v2328 = vmul.f32 %v2324, 1.442695
    %v2329 = vpow.pop %v2328
    %v2330 = vmul.f32 %v2325, 1.442695
    %v2331 = vpow.pop %v2330
    %v2332 = vadd.f32 %v2327, 1.0
    %v2333 = vadd.f32 %v2329, 1.0
    %v2334 = vadd.f32 %v2331, 1.0
    %v2335 = vrcp.pop %v2332
    %v2336 = vmul.f32 %v2332, %v2335
    %v2337 = vsub.f32 1.0, %v2336
    %v2338 = vmul.f32 %v2335, %v2337
    %v2339 = vadd.f32 %v2335, %v2338
    %vm2340 = vweird.f32 %v2332
    %vm2341 = vweird.f32 %v2335
    %vm2342 = vmor %vm2340, %vm2341
    %v2343 = vsel %vm2342, %v2335, %v2339
    %v2344 = vand.u32 2147483647, %v2332
    %vm2345 = vcmp.eq.f32.partialorder %v2344, 8.507059e+37
    %v2346 = vand.u32 %v2332, 2147483648
    %v2347 = vor.u32 1.1754944e-38, %v2346
    %v2348 = vsel %vm2345, %v2347, %v2343
    %v2349 = vmul.f32 1.0, %v2348
    %v2350 = vrcp.pop %v2333
    %v2351 = vmul.f32 %v2333, %v2350
    %v2352 = vsub.f32 1.0, %v2351
    %v2353 = vmul.f32 %v2350, %v2352
    %v2354 = vadd.f32 %v2350, %v2353
    %vm2355 = vweird.f32 %v2333
    %vm2356 = vweird.f32 %v2350
    %vm2357 = vmor %vm2355, %vm2356
    %v2358 = vsel %vm2357, %v2350, %v2354
    %v2359 = vand.u32 2147483647, %v2333
    %vm2360 = vcmp.eq.f32.partialorder %v2359, 8.507059e+37
    %v2361 = vand.u32 %v2333, 2147483648
    %v2362 = vor.u32 1.1754944e-38, %v2361
    %v2363 = vsel %vm2360, %v2362, %v2358
    %v2364 = vmul.f32 1.0, %v2363
    %v2365 = vrcp.pop %v2334
    %v2366 = vmul.f32 %v2334, %v2365
    %v2367 = vsub.f32 1.0, %v2366
    %v2368 = vmul.f32 %v2365, %v2367
    %v2369 = vadd.f32 %v2365, %v2368
    %vm2370 = vweird.f32 %v2334
    %vm2371 = vweird.f32 %v2365
    %vm2372 = vmor %vm2370, %vm2371
    %v2373 = vsel %vm2372, %v2365, %v2369
    %v2374 = vand.u32 2147483647, %v2334
    %vm2375 = vcmp.eq.f32.partialorder %v2374, 8.507059e+37
    %v2376 = vand.u32 %v2334, 2147483648
    %v2377 = vor.u32 1.1754944e-38, %v2376
    %v2378 = vsel %vm2375, %v2377, %v2373
    %v2379 = vmul.f32 1.0, %v2378
    %v2380 = vtanh.pop %v2322
    %v2381 = vmul.f32 %v2364, %v2232
    %v2382 = vmul.f32 %v2349, %v2380
    %v2383 = vadd.f32 %v2381, %v2382
    %v2384 = vtanh.pop %v2383
    %v2385 = vmul.f32 %v2379, %v2384
    %v2386 = vld [vmem:[#allocation2 + $0x60] sm:$0xff]
    %v2387 = vld [vmem:[#allocation2 + $0x68] sm:$0xff]
    %v2388 = vld [vmem:[#allocation2 + $0x70] sm:$0xff]
    %v2389 = vld [vmem:[#allocation2 + $0x78] sm:$0xff]
    %2390 = vmatpush.msra.mxu0 %v1933
    %2391 = vmatpush.msra.mxu0 %v1929
    %2392 = vmatpush.msra.mxu0 %v1925
    %2393 = vmatpush.msra.mxu0 %v1921
    %2394 = vmatpush.msra.mxu0 %v1917
    %2395 = vmatpush.msra.mxu0 %v1913
    %2396 = vmatpush.msra.mxu0 %v1909
    %2397 = vmatpush.msra.mxu0 %v1905
    %2398 = vmatpush.msra.mxu0 %v1901
    %2399 = vmatpush.msra.mxu0 %v1897
    %2400 = vmatpush.msra.mxu0 %v1893
    %2401 = vmatpush.msra.mxu0 %v1889
    %2402 = vmatpush.msra.mxu0 %v1885
    %2403 = vmatpush.msra.mxu0 %v1881
    %2404 = vmatpush.msra.mxu0 %v1877
    %2405 = vmatpush.msra.mxu0 %v1873
    %2406 = vmatmul.f32.gmra.mxu0 %v2385
    %v2407 = vpop.f32.mrf.mxu0
    %v2408 = vadd.f32 0.0, %v2407
    %2409 = vdwg.mxu0
    %2410 = vmatpush.msra.mxu0 %v1934
    %2411 = vmatpush.msra.mxu0 %v1930
    %2412 = vmatpush.msra.mxu0 %v1926
    %2413 = vmatpush.msra.mxu0 %v1922
    %2414 = vmatpush.msra.mxu0 %v1918
    %2415 = vmatpush.msra.mxu0 %v1914
    %2416 = vmatpush.msra.mxu0 %v1910
    %2417 = vmatpush.msra.mxu0 %v1906
    %2418 = vmatpush.msra.mxu0 %v1902
    %2419 = vmatpush.msra.mxu0 %v1898
    %2420 = vmatpush.msra.mxu0 %v1894
    %2421 = vmatpush.msra.mxu0 %v1890
    %2422 = vmatpush.msra.mxu0 %v1886
    %2423 = vmatpush.msra.mxu0 %v1882
    %2424 = vmatpush.msra.mxu0 %v1878
    %2425 = vmatpush.msra.mxu0 %v1874
    %2426 = vmatmul.f32.gmra.mxu0 %v2385
    %v2427 = vpop.f32.mrf.mxu0
    %v2428 = vadd.f32 0.0, %v2427
    %2429 = vdwg.mxu0
    %2430 = vmatpush.msra.mxu0 %v1935
    %2431 = vmatpush.msra.mxu0 %v1931
    %2432 = vmatpush.msra.mxu0 %v1927
    %2433 = vmatpush.msra.mxu0 %v1923
    %2434 = vmatpush.msra.mxu0 %v1919
    %2435 = vmatpush.msra.mxu0 %v1915
    %2436 = vmatpush.msra.mxu0 %v1911
    %2437 = vmatpush.msra.mxu0 %v1907
    %2438 = vmatpush.msra.mxu0 %v1903
    %2439 = vmatpush.msra.mxu0 %v1899
    %2440 = vmatpush.msra.mxu0 %v1895
    %2441 = vmatpush.msra.mxu0 %v1891
    %2442 = vmatpush.msra.mxu0 %v1887
    %2443 = vmatpush.msra.mxu0 %v1883
    %2444 = vmatpush.msra.mxu0 %v1879
    %2445 = vmatpush.msra.mxu0 %v1875
    %2446 = vmatmul.f32.gmra.mxu0 %v2385
    %v2447 = vpop.f32.mrf.mxu0
    %v2448 = vadd.f32 0.0, %v2447
    %2449 = vdwg.mxu0
    %2450 = vmatpush.msra.mxu0 %v1936
    %2451 = vmatpush.msra.mxu0 %v1932
    %2452 = vmatpush.msra.mxu0 %v1928
    %2453 = vmatpush.msra.mxu0 %v1924
    %2454 = vmatpush.msra.mxu0 %v1920
    %2455 = vmatpush.msra.mxu0 %v1916
    %2456 = vmatpush.msra.mxu0 %v1912
    %2457 = vmatpush.msra.mxu0 %v1908
    %2458 = vmatpush.msra.mxu0 %v1904
    %2459 = vmatpush.msra.mxu0 %v1900
    %2460 = vmatpush.msra.mxu0 %v1896
    %2461 = vmatpush.msra.mxu0 %v1892
    %2462 = vmatpush.msra.mxu0 %v1888
    %2463 = vmatpush.msra.mxu0 %v1884
    %2464 = vmatpush.msra.mxu0 %v1880
    %2465 = vmatpush.msra.mxu0 %v1876
    %2466 = vmatmul.f32.gmra.mxu0 %v2385
    %v2467 = vpop.f32.mrf.mxu0
    %v2468 = vadd.f32 0.0, %v2467
    %2469 = vdwg.mxu0
    %v2470 = vadd.f32 %v2386, %v2408
    %v2471 = vadd.f32 %v2387, %v2428
    %v2472 = vadd.f32 %v2388, %v2448
    %v2473 = vadd.f32 %v2389, %v2468
    %v2474 = vsub.f32 0.0, %v2470
    %v2475 = vsub.f32 0.0, %v2471
    %v2476 = vsub.f32 0.0, %v2472
    %v2477 = vmul.f32 %v2474, 1.442695
    %v2478 = vpow.pop %v2477
    %v2479 = vmul.f32 %v2475, 1.442695
    %v2480 = vpow.pop %v2479
    %v2481 = vmul.f32 %v2476, 1.442695
    %v2482 = vpow.pop %v2481
    %v2483 = vadd.f32 %v2478, 1.0
    %v2484 = vadd.f32 %v2480, 1.0
    %v2485 = vadd.f32 %v2482, 1.0
    %v2486 = vrcp.pop %v2483
    %v2487 = vmul.f32 %v2483, %v2486
    %v2488 = vsub.f32 1.0, %v2487
    %v2489 = vmul.f32 %v2486, %v2488
    %v2490 = vadd.f32 %v2486, %v2489
    %vm2491 = vweird.f32 %v2483
    %vm2492 = vweird.f32 %v2486
    %vm2493 = vmor %vm2491, %vm2492
    %v2494 = vsel %vm2493, %v2486, %v2490
    %v2495 = vand.u32 2147483647, %v2483
    %vm2496 = vcmp.eq.f32.partialorder %v2495, 8.507059e+37
    %v2497 = vand.u32 %v2483, 2147483648
    %v2498 = vor.u32 1.1754944e-38, %v2497
    %v2499 = vsel %vm2496, %v2498, %v2494
    %v2500 = vmul.f32 1.0, %v2499
    %v2501 = vrcp.pop %v2484
    %v2502 = vmul.f32 %v2484, %v2501
    %v2503 = vsub.f32 1.0, %v2502
    %v2504 = vmul.f32 %v2501, %v2503
    %v2505 = vadd.f32 %v2501, %v2504
    %vm2506 = vweird.f32 %v2484
    %vm2507 = vweird.f32 %v2501
    %vm2508 = vmor %vm2506, %vm2507
    %v2509 = vsel %vm2508, %v2501, %v2505
    %v2510 = vand.u32 2147483647, %v2484
    %vm2511 = vcmp.eq.f32.partialorder %v2510, 8.507059e+37
    %v2512 = vand.u32 %v2484, 2147483648
    %v2513 = vor.u32 1.1754944e-38, %v2512
    %v2514 = vsel %vm2511, %v2513, %v2509
    %v2515 = vmul.f32 1.0, %v2514
    %v2516 = vrcp.pop %v2485
    %v2517 = vmul.f32 %v2485, %v2516
    %v2518 = vsub.f32 1.0, %v2517
    %v2519 = vmul.f32 %v2516, %v2518
    %v2520 = vadd.f32 %v2516, %v2519
    %vm2521 = vweird.f32 %v2485
    %vm2522 = vweird.f32 %v2516
    %vm2523 = vmor %vm2521, %vm2522
    %v2524 = vsel %vm2523, %v2516, %v2520
    %v2525 = vand.u32 2147483647, %v2485
    %vm2526 = vcmp.eq.f32.partialorder %v2525, 8.507059e+37
    %v2527 = vand.u32 %v2485, 2147483648
    %v2528 = vor.u32 1.1754944e-38, %v2527
    %v2529 = vsel %vm2526, %v2528, %v2524
    %v2530 = vmul.f32 1.0, %v2529
    %v2531 = vtanh.pop %v2473
    %v2532 = vmul.f32 %v2515, %v2383
    %v2533 = vmul.f32 %v2500, %v2531
    %v2534 = vadd.f32 %v2532, %v2533
    %v2535 = vtanh.pop %v2534
    %v2536 = vmul.f32 %v2530, %v2535
    %v2537 = vld [vmem:[#allocation2 + $0x80] sm:$0xff]
    %v2538 = vld [vmem:[#allocation2 + $0x88] sm:$0xff]
    %v2539 = vld [vmem:[#allocation2 + $0x90] sm:$0xff]
    %v2540 = vld [vmem:[#allocation2 + $0x98] sm:$0xff]
    %2541 = vmatpush.msra.mxu0 %v1933
    %2542 = vmatpush.msra.mxu0 %v1929
    %2543 = vmatpush.msra.mxu0 %v1925
    %2544 = vmatpush.msra.mxu0 %v1921
    %2545 = vmatpush.msra.mxu0 %v1917
    %2546 = vmatpush.msra.mxu0 %v1913
    %2547 = vmatpush.msra.mxu0 %v1909
    %2548 = vmatpush.msra.mxu0 %v1905
    %2549 = vmatpush.msra.mxu0 %v1901
    %2550 = vmatpush.msra.mxu0 %v1897
    %2551 = vmatpush.msra.mxu0 %v1893
    %2552 = vmatpush.msra.mxu0 %v1889
    %2553 = vmatpush.msra.mxu0 %v1885
    %2554 = vmatpush.msra.mxu0 %v1881
    %2555 = vmatpush.msra.mxu0 %v1877
    %2556 = vmatpush.msra.mxu0 %v1873
    %2557 = vmatmul.f32.gmra.mxu0 %v2536
    %v2558 = vpop.f32.mrf.mxu0
    %v2559 = vadd.f32 0.0, %v2558
    %2560 = vdwg.mxu0
    %2561 = vmatpush.msra.mxu0 %v1934
    %2562 = vmatpush.msra.mxu0 %v1930
    %2563 = vmatpush.msra.mxu0 %v1926
    %2564 = vmatpush.msra.mxu0 %v1922
    %2565 = vmatpush.msra.mxu0 %v1918
    %2566 = vmatpush.msra.mxu0 %v1914
    %2567 = vmatpush.msra.mxu0 %v1910
    %2568 = vmatpush.msra.mxu0 %v1906
    %2569 = vmatpush.msra.mxu0 %v1902
    %2570 = vmatpush.msra.mxu0 %v1898
    %2571 = vmatpush.msra.mxu0 %v1894
    %2572 = vmatpush.msra.mxu0 %v1890
    %2573 = vmatpush.msra.mxu0 %v1886
    %2574 = vmatpush.msra.mxu0 %v1882
    %2575 = vmatpush.msra.mxu0 %v1878
    %2576 = vmatpush.msra.mxu0 %v1874
    %2577 = vmatmul.f32.gmra.mxu0 %v2536
    %v2578 = vpop.f32.mrf.mxu0
    %v2579 = vadd.f32 0.0, %v2578
    %2580 = vdwg.mxu0
    %2581 = vmatpush.msra.mxu0 %v1935
    %2582 = vmatpush.msra.mxu0 %v1931
    %2583 = vmatpush.msra.mxu0 %v1927
    %2584 = vmatpush.msra.mxu0 %v1923
    %2585 = vmatpush.msra.mxu0 %v1919
    %2586 = vmatpush.msra.mxu0 %v1915
    %2587 = vmatpush.msra.mxu0 %v1911
    %2588 = vmatpush.msra.mxu0 %v1907
    %2589 = vmatpush.msra.mxu0 %v1903
    %2590 = vmatpush.msra.mxu0 %v1899
    %2591 = vmatpush.msra.mxu0 %v1895
    %2592 = vmatpush.msra.mxu0 %v1891
    %2593 = vmatpush.msra.mxu0 %v1887
    %2594 = vmatpush.msra.mxu0 %v1883
    %2595 = vmatpush.msra.mxu0 %v1879
    %2596 = vmatpush.msra.mxu0 %v1875
    %2597 = vmatmul.f32.gmra.mxu0 %v2536
    %v2598 = vpop.f32.mrf.mxu0
    %v2599 = vadd.f32 0.0, %v2598
    %2600 = vdwg.mxu0
    %2601 = vmatpush.msra.mxu0 %v1936
    %2602 = vmatpush.msra.mxu0 %v1932
    %2603 = vmatpush.msra.mxu0 %v1928
    %2604 = vmatpush.msra.mxu0 %v1924
    %2605 = vmatpush.msra.mxu0 %v1920
    %2606 = vmatpush.msra.mxu0 %v1916
    %2607 = vmatpush.msra.mxu0 %v1912
    %2608 = vmatpush.msra.mxu0 %v1908
    %2609 = vmatpush.msra.mxu0 %v1904
    %2610 = vmatpush.msra.mxu0 %v1900
    %2611 = vmatpush.msra.mxu0 %v1896
    %2612 = vmatpush.msra.mxu0 %v1892
    %2613 = vmatpush.msra.mxu0 %v1888
    %2614 = vmatpush.msra.mxu0 %v1884
    %2615 = vmatpush.msra.mxu0 %v1880
    %2616 = vmatpush.msra.mxu0 %v1876
    %2617 = vmatmul.f32.gmra.mxu0 %v2536
    %v2618 = vpop.f32.mrf.mxu0
    %v2619 = vadd.f32 0.0, %v2618
    %2620 = vdwg.mxu0
    %v2621 = vadd.f32 %v2537, %v2559
    %v2622 = vadd.f32 %v2538, %v2579
    %v2623 = vadd.f32 %v2539, %v2599
    %v2624 = vadd.f32 %v2540, %v2619
    %v2625 = vsub.f32 0.0, %v2621
    %v2626 = vsub.f32 0.0, %v2622
    %v2627 = vsub.f32 0.0, %v2623
    %v2628 = vmul.f32 %v2625, 1.442695
    %v2629 = vpow.pop %v2628
    %v2630 = vmul.f32 %v2626, 1.442695
    %v2631 = vpow.pop %v2630
    %v2632 = vmul.f32 %v2627, 1.442695
    %v2633 = vpow.pop %v2632
    %v2634 = vadd.f32 %v2629, 1.0
    %v2635 = vadd.f32 %v2631, 1.0
    %v2636 = vadd.f32 %v2633, 1.0
    %v2637 = vrcp.pop %v2634
    %v2638 = vmul.f32 %v2634, %v2637
    %v2639 = vsub.f32 1.0, %v2638
    %v2640 = vmul.f32 %v2637, %v2639
    %v2641 = vadd.f32 %v2637, %v2640
    %vm2642 = vweird.f32 %v2634
    %vm2643 = vweird.f32 %v2637
    %vm2644 = vmor %vm2642, %vm2643
    %v2645 = vsel %vm2644, %v2637, %v2641
    %v2646 = vand.u32 2147483647, %v2634
    %vm2647 = vcmp.eq.f32.partialorder %v2646, 8.507059e+37
    %v2648 = vand.u32 %v2634, 2147483648
    %v2649 = vor.u32 1.1754944e-38, %v2648
    %v2650 = vsel %vm2647, %v2649, %v2645
    %v2651 = vmul.f32 1.0, %v2650
    %v2652 = vrcp.pop %v2635
    %v2653 = vmul.f32 %v2635, %v2652
    %v2654 = vsub.f32 1.0, %v2653
    %v2655 = vmul.f32 %v2652, %v2654
    %v2656 = vadd.f32 %v2652, %v2655
    %vm2657 = vweird.f32 %v2635
    %vm2658 = vweird.f32 %v2652
    %vm2659 = vmor %vm2657, %vm2658
    %v2660 = vsel %vm2659, %v2652, %v2656
    %v2661 = vand.u32 2147483647, %v2635
    %vm2662 = vcmp.eq.f32.partialorder %v2661, 8.507059e+37
    %v2663 = vand.u32 %v2635, 2147483648
    %v2664 = vor.u32 1.1754944e-38, %v2663
    %v2665 = vsel %vm2662, %v2664, %v2660
    %v2666 = vmul.f32 1.0, %v2665
    %v2667 = vrcp.pop %v2636
    %v2668 = vmul.f32 %v2636, %v2667
    %v2669 = vsub.f32 1.0, %v2668
    %v2670 = vmul.f32 %v2667, %v2669
    %v2671 = vadd.f32 %v2667, %v2670
    %vm2672 = vweird.f32 %v2636
    %vm2673 = vweird.f32 %v2667
    %vm2674 = vmor %vm2672, %vm2673
    %v2675 = vsel %vm2674, %v2667, %v2671
    %v2676 = vand.u32 2147483647, %v2636
    %vm2677 = vcmp.eq.f32.partialorder %v2676, 8.507059e+37
    %v2678 = vand.u32 %v2636, 2147483648
    %v2679 = vor.u32 1.1754944e-38, %v2678
    %v2680 = vsel %vm2677, %v2679, %v2675
    %v2681 = vmul.f32 1.0, %v2680
    %v2682 = vtanh.pop %v2624
    %v2683 = vmul.f32 %v2666, %v2534
    %v2684 = vmul.f32 %v2651, %v2682
    %v2685 = vadd.f32 %v2683, %v2684
    %v2686 = vtanh.pop %v2685
    %v2687 = vmul.f32 %v2681, %v2686
    %v2688 = vld [vmem:[#allocation2 + $0xa0] sm:$0xff]
    %v2689 = vld [vmem:[#allocation2 + $0xa8] sm:$0xff]
    %v2690 = vld [vmem:[#allocation2 + $0xb0] sm:$0xff]
    %v2691 = vld [vmem:[#allocation2 + $0xb8] sm:$0xff]
    %2692 = vmatpush.msra.mxu0 %v1933
    %2693 = vmatpush.msra.mxu0 %v1929
    %2694 = vmatpush.msra.mxu0 %v1925
    %2695 = vmatpush.msra.mxu0 %v1921
    %2696 = vmatpush.msra.mxu0 %v1917
    %2697 = vmatpush.msra.mxu0 %v1913
    %2698 = vmatpush.msra.mxu0 %v1909
    %2699 = vmatpush.msra.mxu0 %v1905
    %2700 = vmatpush.msra.mxu0 %v1901
    %2701 = vmatpush.msra.mxu0 %v1897
    %2702 = vmatpush.msra.mxu0 %v1893
    %2703 = vmatpush.msra.mxu0 %v1889
    %2704 = vmatpush.msra.mxu0 %v1885
    %2705 = vmatpush.msra.mxu0 %v1881
    %2706 = vmatpush.msra.mxu0 %v1877
    %2707 = vmatpush.msra.mxu0 %v1873
    %2708 = vmatmul.f32.gmra.mxu0 %v2687
    %v2709 = vpop.f32.mrf.mxu0
    %v2710 = vadd.f32 0.0, %v2709
    %2711 = vdwg.mxu0
    %2712 = vmatpush.msra.mxu0 %v1934
    %2713 = vmatpush.msra.mxu0 %v1930
    %2714 = vmatpush.msra.mxu0 %v1926
    %2715 = vmatpush.msra.mxu0 %v1922
    %2716 = vmatpush.msra.mxu0 %v1918
    %2717 = vmatpush.msra.mxu0 %v1914
    %2718 = vmatpush.msra.mxu0 %v1910
    %2719 = vmatpush.msra.mxu0 %v1906
    %2720 = vmatpush.msra.mxu0 %v1902
    %2721 = vmatpush.msra.mxu0 %v1898
    %2722 = vmatpush.msra.mxu0 %v1894
    %2723 = vmatpush.msra.mxu0 %v1890
    %2724 = vmatpush.msra.mxu0 %v1886
    %2725 = vmatpush.msra.mxu0 %v1882
    %2726 = vmatpush.msra.mxu0 %v1878
    %2727 = vmatpush.msra.mxu0 %v1874
    %2728 = vmatmul.f32.gmra.mxu0 %v2687
    %v2729 = vpop.f32.mrf.mxu0
    %v2730 = vadd.f32 0.0, %v2729
    %2731 = vdwg.mxu0
    %2732 = vmatpush.msra.mxu0 %v1935
    %2733 = vmatpush.msra.mxu0 %v1931
    %2734 = vmatpush.msra.mxu0 %v1927
    %2735 = vmatpush.msra.mxu0 %v1923
    %2736 = vmatpush.msra.mxu0 %v1919
    %2737 = vmatpush.msra.mxu0 %v1915
    %2738 = vmatpush.msra.mxu0 %v1911
    %2739 = vmatpush.msra.mxu0 %v1907
    %2740 = vmatpush.msra.mxu0 %v1903
    %2741 = vmatpush.msra.mxu0 %v1899
    %2742 = vmatpush.msra.mxu0 %v1895
    %2743 = vmatpush.msra.mxu0 %v1891
    %2744 = vmatpush.msra.mxu0 %v1887
    %2745 = vmatpush.msra.mxu0 %v1883
    %2746 = vmatpush.msra.mxu0 %v1879
    %2747 = vmatpush.msra.mxu0 %v1875
    %2748 = vmatmul.f32.gmra.mxu0 %v2687
    %v2749 = vpop.f32.mrf.mxu0
    %v2750 = vadd.f32 0.0, %v2749
    %2751 = vdwg.mxu0
    %2752 = vmatpush.msra.mxu0 %v1936
    %2753 = vmatpush.msra.mxu0 %v1932
    %2754 = vmatpush.msra.mxu0 %v1928
    %2755 = vmatpush.msra.mxu0 %v1924
    %2756 = vmatpush.msra.mxu0 %v1920
    %2757 = vmatpush.msra.mxu0 %v1916
    %2758 = vmatpush.msra.mxu0 %v1912
    %2759 = vmatpush.msra.mxu0 %v1908
    %2760 = vmatpush.msra.mxu0 %v1904
    %2761 = vmatpush.msra.mxu0 %v1900
    %2762 = vmatpush.msra.mxu0 %v1896
    %2763 = vmatpush.msra.mxu0 %v1892
    %2764 = vmatpush.msra.mxu0 %v1888
    %2765 = vmatpush.msra.mxu0 %v1884
    %2766 = vmatpush.msra.mxu0 %v1880
    %2767 = vmatpush.msra.mxu0 %v1876
    %2768 = vmatmul.f32.gmra.mxu0 %v2687
    %v2769 = vpop.f32.mrf.mxu0
    %v2770 = vadd.f32 0.0, %v2769
    %2771 = vdwg.mxu0
    %v2772 = vadd.f32 %v2688, %v2710
    %v2773 = vadd.f32 %v2689, %v2730
    %v2774 = vadd.f32 %v2690, %v2750
    %v2775 = vadd.f32 %v2691, %v2770
    %v2776 = vsub.f32 0.0, %v2772
    %v2777 = vsub.f32 0.0, %v2773
    %v2778 = vsub.f32 0.0, %v2774
    %v2779 = vmul.f32 %v2776, 1.442695
    %v2780 = vpow.pop %v2779
    %v2781 = vmul.f32 %v2777, 1.442695
    %v2782 = vpow.pop %v2781
    %v2783 = vmul.f32 %v2778, 1.442695
    %v2784 = vpow.pop %v2783
    %v2785 = vadd.f32 %v2780, 1.0
    %v2786 = vadd.f32 %v2782, 1.0
    %v2787 = vadd.f32 %v2784, 1.0
    %v2788 = vrcp.pop %v2785
    %v2789 = vmul.f32 %v2785, %v2788
    %v2790 = vsub.f32 1.0, %v2789
    %v2791 = vmul.f32 %v2788, %v2790
    %v2792 = vadd.f32 %v2788, %v2791
    %vm2793 = vweird.f32 %v2785
    %vm2794 = vweird.f32 %v2788
    %vm2795 = vmor %vm2793, %vm2794
    %v2796 = vsel %vm2795, %v2788, %v2792
    %v2797 = vand.u32 2147483647, %v2785
    %vm2798 = vcmp.eq.f32.partialorder %v2797, 8.507059e+37
    %v2799 = vand.u32 %v2785, 2147483648
    %v2800 = vor.u32 1.1754944e-38, %v2799
    %v2801 = vsel %vm2798, %v2800, %v2796
    %v2802 = vmul.f32 1.0, %v2801
    %v2803 = vrcp.pop %v2786
    %v2804 = vmul.f32 %v2786, %v2803
    %v2805 = vsub.f32 1.0, %v2804
    %v2806 = vmul.f32 %v2803, %v2805
    %v2807 = vadd.f32 %v2803, %v2806
    %vm2808 = vweird.f32 %v2786
    %vm2809 = vweird.f32 %v2803
    %vm2810 = vmor %vm2808, %vm2809
    %v2811 = vsel %vm2810, %v2803, %v2807
    %v2812 = vand.u32 2147483647, %v2786
    %vm2813 = vcmp.eq.f32.partialorder %v2812, 8.507059e+37
    %v2814 = vand.u32 %v2786, 2147483648
    %v2815 = vor.u32 1.1754944e-38, %v2814
    %v2816 = vsel %vm2813, %v2815, %v2811
    %v2817 = vmul.f32 1.0, %v2816
    %v2818 = vrcp.pop %v2787
    %v2819 = vmul.f32 %v2787, %v2818
    %v2820 = vsub.f32 1.0, %v2819
    %v2821 = vmul.f32 %v2818, %v2820
    %v2822 = vadd.f32 %v2818, %v2821
    %vm2823 = vweird.f32 %v2787
    %vm2824 = vweird.f32 %v2818
    %vm2825 = vmor %vm2823, %vm2824
    %v2826 = vsel %vm2825, %v2818, %v2822
    %v2827 = vand.u32 2147483647, %v2787
    %vm2828 = vcmp.eq.f32.partialorder %v2827, 8.507059e+37
    %v2829 = vand.u32 %v2787, 2147483648
    %v2830 = vor.u32 1.1754944e-38, %v2829
    %v2831 = vsel %vm2828, %v2830, %v2826
    %v2832 = vmul.f32 1.0, %v2831
    %v2833 = vtanh.pop %v2775
    %v2834 = vmul.f32 %v2817, %v2685
    %v2835 = vmul.f32 %v2802, %v2833
    %v2836 = vadd.f32 %v2834, %v2835
    %v2837 = vtanh.pop %v2836
    %v2838 = vmul.f32 %v2832, %v2837
    %v2839 = vld [vmem:[#allocation2 + $0xc0] sm:$0xff]
    %v2840 = vld [vmem:[#allocation2 + $0xc8] sm:$0xff]
    %v2841 = vld [vmem:[#allocation2 + $0xd0] sm:$0xff]
    %v2842 = vld [vmem:[#allocation2 + $0xd8] sm:$0xff]
    %2843 = vmatpush.msra.mxu0 %v1933
    %2844 = vmatpush.msra.mxu0 %v1929
    %2845 = vmatpush.msra.mxu0 %v1925
    %2846 = vmatpush.msra.mxu0 %v1921
    %2847 = vmatpush.msra.mxu0 %v1917
    %2848 = vmatpush.msra.mxu0 %v1913
    %2849 = vmatpush.msra.mxu0 %v1909
    %2850 = vmatpush.msra.mxu0 %v1905
    %2851 = vmatpush.msra.mxu0 %v1901
    %2852 = vmatpush.msra.mxu0 %v1897
    %2853 = vmatpush.msra.mxu0 %v1893
    %2854 = vmatpush.msra.mxu0 %v1889
    %2855 = vmatpush.msra.mxu0 %v1885
    %2856 = vmatpush.msra.mxu0 %v1881
    %2857 = vmatpush.msra.mxu0 %v1877
    %2858 = vmatpush.msra.mxu0 %v1873
    %2859 = vmatmul.f32.gmra.mxu0 %v2838
    %v2860 = vpop.f32.mrf.mxu0
    %v2861 = vadd.f32 0.0, %v2860
    %2862 = vdwg.mxu0
    %2863 = vmatpush.msra.mxu0 %v1934
    %2864 = vmatpush.msra.mxu0 %v1930
    %2865 = vmatpush.msra.mxu0 %v1926
    %2866 = vmatpush.msra.mxu0 %v1922
    %2867 = vmatpush.msra.mxu0 %v1918
    %2868 = vmatpush.msra.mxu0 %v1914
    %2869 = vmatpush.msra.mxu0 %v1910
    %2870 = vmatpush.msra.mxu0 %v1906
    %2871 = vmatpush.msra.mxu0 %v1902
    %2872 = vmatpush.msra.mxu0 %v1898
    %2873 = vmatpush.msra.mxu0 %v1894
    %2874 = vmatpush.msra.mxu0 %v1890
    %2875 = vmatpush.msra.mxu0 %v1886
    %2876 = vmatpush.msra.mxu0 %v1882
    %2877 = vmatpush.msra.mxu0 %v1878
    %2878 = vmatpush.msra.mxu0 %v1874
    %2879 = vmatmul.f32.gmra.mxu0 %v2838
    %v2880 = vpop.f32.mrf.mxu0
    %v2881 = vadd.f32 0.0, %v2880
    %2882 = vdwg.mxu0
    %2883 = vmatpush.msra.mxu0 %v1935
    %2884 = vmatpush.msra.mxu0 %v1931
    %2885 = vmatpush.msra.mxu0 %v1927
    %2886 = vmatpush.msra.mxu0 %v1923
    %2887 = vmatpush.msra.mxu0 %v1919
    %2888 = vmatpush.msra.mxu0 %v1915
    %2889 = vmatpush.msra.mxu0 %v1911
    %2890 = vmatpush.msra.mxu0 %v1907
    %2891 = vmatpush.msra.mxu0 %v1903
    %2892 = vmatpush.msra.mxu0 %v1899
    %2893 = vmatpush.msra.mxu0 %v1895
    %2894 = vmatpush.msra.mxu0 %v1891
    %2895 = vmatpush.msra.mxu0 %v1887
    %2896 = vmatpush.msra.mxu0 %v1883
    %2897 = vmatpush.msra.mxu0 %v1879
    %2898 = vmatpush.msra.mxu0 %v1875
    %2899 = vmatmul.f32.gmra.mxu0 %v2838
    %v2900 = vpop.f32.mrf.mxu0
    %v2901 = vadd.f32 0.0, %v2900
    %2902 = vdwg.mxu0
    %2903 = vmatpush.msra.mxu0 %v1936
    %2904 = vmatpush.msra.mxu0 %v1932
    %2905 = vmatpush.msra.mxu0 %v1928
    %2906 = vmatpush.msra.mxu0 %v1924
    %2907 = vmatpush.msra.mxu0 %v1920
    %2908 = vmatpush.msra.mxu0 %v1916
    %2909 = vmatpush.msra.mxu0 %v1912
    %2910 = vmatpush.msra.mxu0 %v1908
    %2911 = vmatpush.msra.mxu0 %v1904
    %2912 = vmatpush.msra.mxu0 %v1900
    %2913 = vmatpush.msra.mxu0 %v1896
    %2914 = vmatpush.msra.mxu0 %v1892
    %2915 = vmatpush.msra.mxu0 %v1888
    %2916 = vmatpush.msra.mxu0 %v1884
    %2917 = vmatpush.msra.mxu0 %v1880
    %2918 = vmatpush.msra.mxu0 %v1876
    %2919 = vmatmul.f32.gmra.mxu0 %v2838
    %v2920 = vpop.f32.mrf.mxu0
    %v2921 = vadd.f32 0.0, %v2920
    %2922 = vdwg.mxu0
    %v2923 = vadd.f32 %v2839, %v2861
    %v2924 = vadd.f32 %v2840, %v2881
    %v2925 = vadd.f32 %v2841, %v2901
    %v2926 = vadd.f32 %v2842, %v2921
    %v2927 = vsub.f32 0.0, %v2923
    %v2928 = vsub.f32 0.0, %v2924
    %v2929 = vsub.f32 0.0, %v2925
    %v2930 = vmul.f32 %v2927, 1.442695
    %v2931 = vpow.pop %v2930
    %v2932 = vmul.f32 %v2928, 1.442695
    %v2933 = vpow.pop %v2932
    %v2934 = vmul.f32 %v2929, 1.442695
    %v2935 = vpow.pop %v2934
    %v2936 = vadd.f32 %v2931, 1.0
    %v2937 = vadd.f32 %v2933, 1.0
    %v2938 = vadd.f32 %v2935, 1.0
    %v2939 = vrcp.pop %v2936
    %v2940 = vmul.f32 %v2936, %v2939
    %v2941 = vsub.f32 1.0, %v2940
    %v2942 = vmul.f32 %v2939, %v2941
    %v2943 = vadd.f32 %v2939, %v2942
    %vm2944 = vweird.f32 %v2936
    %vm2945 = vweird.f32 %v2939
    %vm2946 = vmor %vm2944, %vm2945
    %v2947 = vsel %vm2946, %v2939, %v2943
    %v2948 = vand.u32 2147483647, %v2936
    %vm2949 = vcmp.eq.f32.partialorder %v2948, 8.507059e+37
    %v2950 = vand.u32 %v2936, 2147483648
    %v2951 = vor.u32 1.1754944e-38, %v2950
    %v2952 = vsel %vm2949, %v2951, %v2947
    %v2953 = vmul.f32 1.0, %v2952
    %v2954 = vrcp.pop %v2937
    %v2955 = vmul.f32 %v2937, %v2954
    %v2956 = vsub.f32 1.0, %v2955
    %v2957 = vmul.f32 %v2954, %v2956
    %v2958 = vadd.f32 %v2954, %v2957
    %vm2959 = vweird.f32 %v2937
    %vm2960 = vweird.f32 %v2954
    %vm2961 = vmor %vm2959, %vm2960
    %v2962 = vsel %vm2961, %v2954, %v2958
    %v2963 = vand.u32 2147483647, %v2937
    %vm2964 = vcmp.eq.f32.partialorder %v2963, 8.507059e+37
    %v2965 = vand.u32 %v2937, 2147483648
    %v2966 = vor.u32 1.1754944e-38, %v2965
    %v2967 = vsel %vm2964, %v2966, %v2962
    %v2968 = vmul.f32 1.0, %v2967
    %v2969 = vrcp.pop %v2938
    %v2970 = vmul.f32 %v2938, %v2969
    %v2971 = vsub.f32 1.0, %v2970
    %v2972 = vmul.f32 %v2969, %v2971
    %v2973 = vadd.f32 %v2969, %v2972
    %vm2974 = vweird.f32 %v2938
    %vm2975 = vweird.f32 %v2969
    %vm2976 = vmor %vm2974, %vm2975
    %v2977 = vsel %vm2976, %v2969, %v2973
    %v2978 = vand.u32 2147483647, %v2938
    %vm2979 = vcmp.eq.f32.partialorder %v2978, 8.507059e+37
    %v2980 = vand.u32 %v2938, 2147483648
    %v2981 = vor.u32 1.1754944e-38, %v2980
    %v2982 = vsel %vm2979, %v2981, %v2977
    %v2983 = vmul.f32 1.0, %v2982
    %v2984 = vtanh.pop %v2926
    %v2985 = vmul.f32 %v2968, %v2836
    %v2986 = vmul.f32 %v2953, %v2984
    %v2987 = vadd.f32 %v2985, %v2986
    %v2988 = vtanh.pop %v2987
    %v2989 = vmul.f32 %v2983, %v2988
    %v2990 = vld [vmem:[#allocation2 + $0xe0] sm:$0xff]
    %v2991 = vld [vmem:[#allocation2 + $0xe8] sm:$0xff]
    %v2992 = vld [vmem:[#allocation2 + $0xf0] sm:$0xff]
    %v2993 = vld [vmem:[#allocation2 + $0xf8] sm:$0xff]
    %2994 = vmatpush.msra.mxu0 %v1933
    %2995 = vmatpush.msra.mxu0 %v1929
    %2996 = vmatpush.msra.mxu0 %v1925
    %2997 = vmatpush.msra.mxu0 %v1921
    %2998 = vmatpush.msra.mxu0 %v1917
    %2999 = vmatpush.msra.mxu0 %v1913
    %3000 = vmatpush.msra.mxu0 %v1909
    %3001 = vmatpush.msra.mxu0 %v1905
    %3002 = vmatpush.msra.mxu0 %v1901
    %3003 = vmatpush.msra.mxu0 %v1897
    %3004 = vmatpush.msra.mxu0 %v1893
    %3005 = vmatpush.msra.mxu0 %v1889
    %3006 = vmatpush.msra.mxu0 %v1885
    %3007 = vmatpush.msra.mxu0 %v1881
    %3008 = vmatpush.msra.mxu0 %v1877
    %3009 = vmatpush.msra.mxu0 %v1873
    %3010 = vmatmul.f32.gmra.mxu0 %v2989
    %v3011 = vpop.f32.mrf.mxu0
    %v3012 = vadd.f32 0.0, %v3011
    %3013 = vdwg.mxu0
    %3014 = vmatpush.msra.mxu0 %v1934
    %3015 = vmatpush.msra.mxu0 %v1930
    %3016 = vmatpush.msra.mxu0 %v1926
    %3017 = vmatpush.msra.mxu0 %v1922
    %3018 = vmatpush.msra.mxu0 %v1918
    %3019 = vmatpush.msra.mxu0 %v1914
    %3020 = vmatpush.msra.mxu0 %v1910
    %3021 = vmatpush.msra.mxu0 %v1906
    %3022 = vmatpush.msra.mxu0 %v1902
    %3023 = vmatpush.msra.mxu0 %v1898
    %3024 = vmatpush.msra.mxu0 %v1894
    %3025 = vmatpush.msra.mxu0 %v1890
    %3026 = vmatpush.msra.mxu0 %v1886
    %3027 = vmatpush.msra.mxu0 %v1882
    %3028 = vmatpush.msra.mxu0 %v1878
    %3029 = vmatpush.msra.mxu0 %v1874
    %3030 = vmatmul.f32.gmra.mxu0 %v2989
    %v3031 = vpop.f32.mrf.mxu0
    %v3032 = vadd.f32 0.0, %v3031
    %3033 = vdwg.mxu0
    %3034 = vmatpush.msra.mxu0 %v1935
    %3035 = vmatpush.msra.mxu0 %v1931
    %3036 = vmatpush.msra.mxu0 %v1927
    %3037 = vmatpush.msra.mxu0 %v1923
    %3038 = vmatpush.msra.mxu0 %v1919
    %3039 = vmatpush.msra.mxu0 %v1915
    %3040 = vmatpush.msra.mxu0 %v1911
    %3041 = vmatpush.msra.mxu0 %v1907
    %3042 = vmatpush.msra.mxu0 %v1903
    %3043 = vmatpush.msra.mxu0 %v1899
    %3044 = vmatpush.msra.mxu0 %v1895
    %3045 = vmatpush.msra.mxu0 %v1891
    %3046 = vmatpush.msra.mxu0 %v1887
    %3047 = vmatpush.msra.mxu0 %v1883
    %3048 = vmatpush.msra.mxu0 %v1879
    %3049 = vmatpush.msra.mxu0 %v1875
    %3050 = vmatmul.f32.gmra.mxu0 %v2989
    %v3051 = vpop.f32.mrf.mxu0
    %v3052 = vadd.f32 0.0, %v3051
    %3053 = vdwg.mxu0
    %3054 = vmatpush.msra.mxu0 %v1936
    %3055 = vmatpush.msra.mxu0 %v1932
    %3056 = vmatpush.msra.mxu0 %v1928
    %3057 = vmatpush.msra.mxu0 %v1924
    %3058 = vmatpush.msra.mxu0 %v1920
    %3059 = vmatpush.msra.mxu0 %v1916
    %3060 = vmatpush.msra.mxu0 %v1912
    %3061 = vmatpush.msra.mxu0 %v1908
    %3062 = vmatpush.msra.mxu0 %v1904
    %3063 = vmatpush.msra.mxu0 %v1900
    %3064 = vmatpush.msra.mxu0 %v1896
    %3065 = vmatpush.msra.mxu0 %v1892
    %3066 = vmatpush.msra.mxu0 %v1888
    %3067 = vmatpush.msra.mxu0 %v1884
    %3068 = vmatpush.msra.mxu0 %v1880
    %3069 = vmatpush.msra.mxu0 %v1876
    %3070 = vmatmul.f32.gmra.mxu0 %v2989
    %v3071 = vpop.f32.mrf.mxu0
    %v3072 = vadd.f32 0.0, %v3071
    %3073 = vdwg.mxu0
    %v3074 = vadd.f32 %v2990, %v3012
    %v3075 = vadd.f32 %v2991, %v3032
    %v3076 = vadd.f32 %v2992, %v3052
    %v3077 = vadd.f32 %v2993, %v3072
    %v3078 = vsub.f32 0.0, %v3074
    %v3079 = vsub.f32 0.0, %v3075
    %v3080 = vsub.f32 0.0, %v3076
    %v3081 = vmul.f32 %v3078, 1.442695
    %v3082 = vpow.pop %v3081
    %v3083 = vmul.f32 %v3079, 1.442695
    %v3084 = vpow.pop %v3083
    %v3085 = vmul.f32 %v3080, 1.442695
    %v3086 = vpow.pop %v3085
    %v3087 = vadd.f32 %v3082, 1.0
    %v3088 = vadd.f32 %v3084, 1.0
    %v3089 = vadd.f32 %v3086, 1.0
    %v3090 = vrcp.pop %v3087
    %v3091 = vmul.f32 %v3087, %v3090
    %v3092 = vsub.f32 1.0, %v3091
    %v3093 = vmul.f32 %v3090, %v3092
    %v3094 = vadd.f32 %v3090, %v3093
    %vm3095 = vweird.f32 %v3087
    %vm3096 = vweird.f32 %v3090
    %vm3097 = vmor %vm3095, %vm3096
    %v3098 = vsel %vm3097, %v3090, %v3094
    %v3099 = vand.u32 2147483647, %v3087
    %vm3100 = vcmp.eq.f32.partialorder %v3099, 8.507059e+37
    %v3101 = vand.u32 %v3087, 2147483648
    %v3102 = vor.u32 1.1754944e-38, %v3101
    %v3103 = vsel %vm3100, %v3102, %v3098
    %v3104 = vmul.f32 1.0, %v3103
    %v3105 = vrcp.pop %v3088
    %v3106 = vmul.f32 %v3088, %v3105
    %v3107 = vsub.f32 1.0, %v3106
    %v3108 = vmul.f32 %v3105, %v3107
    %v3109 = vadd.f32 %v3105, %v3108
    %vm3110 = vweird.f32 %v3088
    %vm3111 = vweird.f32 %v3105
    %vm3112 = vmor %vm3110, %vm3111
    %v3113 = vsel %vm3112, %v3105, %v3109
    %v3114 = vand.u32 2147483647, %v3088
    %vm3115 = vcmp.eq.f32.partialorder %v3114, 8.507059e+37
    %v3116 = vand.u32 %v3088, 2147483648
    %v3117 = vor.u32 1.1754944e-38, %v3116
    %v3118 = vsel %vm3115, %v3117, %v3113
    %v3119 = vmul.f32 1.0, %v3118
    %v3120 = vrcp.pop %v3089
    %v3121 = vmul.f32 %v3089, %v3120
    %v3122 = vsub.f32 1.0, %v3121
    %v3123 = vmul.f32 %v3120, %v3122
    %v3124 = vadd.f32 %v3120, %v3123
    %vm3125 = vweird.f32 %v3089
    %vm3126 = vweird.f32 %v3120
    %vm3127 = vmor %vm3125, %vm3126
    %v3128 = vsel %vm3127, %v3120, %v3124
    %v3129 = vand.u32 2147483647, %v3089
    %vm3130 = vcmp.eq.f32.partialorder %v3129, 8.507059e+37
    %v3131 = vand.u32 %v3089, 2147483648
    %v3132 = vor.u32 1.1754944e-38, %v3131
    %v3133 = vsel %vm3130, %v3132, %v3128
    %v3134 = vmul.f32 1.0, %v3133
    %v3135 = vtanh.pop %v3077
    %v3136 = vmul.f32 %v3119, %v2987
    %v3137 = vmul.f32 %v3104, %v3135
    %v3138 = vadd.f32 %v3136, %v3137
    %v3139 = vtanh.pop %v3138
    %v3140 = vmul.f32 %v3134, %v3139
    %v3141 = vld [vmem:[#allocation5] sm:$0xff]
    %v3142 = vld [vmem:[#allocation5 + $0x8] sm:$0xff]
    %v3143 = vld [vmem:[#allocation5 + $0x10] sm:$0xff]
    %v3144 = vld [vmem:[#allocation5 + $0x18] sm:$0xff]
    %v3145 = vld [vmem:[#allocation5 + $0x20] sm:$0xff]
    %v3146 = vld [vmem:[#allocation5 + $0x28] sm:$0xff]
    %v3147 = vld [vmem:[#allocation5 + $0x30] sm:$0xff]
    %v3148 = vld [vmem:[#allocation5 + $0x38] sm:$0xff]
    %v3149 = vld [vmem:[#allocation5 + $0x40] sm:$0xff]
    %v3150 = vld [vmem:[#allocation5 + $0x48] sm:$0xff]
    %v3151 = vld [vmem:[#allocation5 + $0x50] sm:$0xff]
    %v3152 = vld [vmem:[#allocation5 + $0x58] sm:$0xff]
    %v3153 = vld [vmem:[#allocation5 + $0x60] sm:$0xff]
    %v3154 = vld [vmem:[#allocation5 + $0x68] sm:$0xff]
    %v3155 = vld [vmem:[#allocation5 + $0x70] sm:$0xff]
    %v3156 = vld [vmem:[#allocation5 + $0x78] sm:$0xff]
    %v3157 = vld [vmem:[#allocation5 + $0x80] sm:$0x1]
    %v3158 = vperm.slane %v3157, 0
    %3159 = vmatpush.msra.mxu0 %v3156
    %3160 = vmatpush.msra.mxu0 %v3155
    %3161 = vmatpush.msra.mxu0 %v3154
    %3162 = vmatpush.msra.mxu0 %v3153
    %3163 = vmatpush.msra.mxu0 %v3152
    %3164 = vmatpush.msra.mxu0 %v3151
    %3165 = vmatpush.msra.mxu0 %v3150
    %3166 = vmatpush.msra.mxu0 %v3149
    %3167 = vmatpush.msra.mxu0 %v3148
    %3168 = vmatpush.msra.mxu0 %v3147
    %3169 = vmatpush.msra.mxu0 %v3146
    %3170 = vmatpush.msra.mxu0 %v3145
    %3171 = vmatpush.msra.mxu0 %v3144
    %3172 = vmatpush.msra.mxu0 %v3143
    %3173 = vmatpush.msra.mxu0 %v3142
    %3174 = vmatpush.msra.mxu0 %v3141
    %3175 = vmatmul.f32.gmra.mxu0 %v3140
    %v3176 = vpop.f32.mrf.mxu0
    %v3177 = vadd.f32 %v3158, %v3176
    %3178 = vdwg.mxu0
    %3179 = vst [vmem:[%s3] sm:$0xff] %v3177
    // Predicated region
    $region22: #{model_forward.1} parent=1 // pred_check
      _
    $region23: #{model_forward.1} parent=1 // pred_check_branch
      %3181 = sbr.rel (0) target = $region25
    $region24: #{model_forward.1} parent=1 // pred_region
      _
    $region25: #{model_forward.1} parent=1 // pred_fallthru
      _
    // Predicated region
    $region26: #{model_forward.1} parent=1 // pred_check
      _
    $region27: #{model_forward.1} parent=1 // pred_check_branch
      %3183 = sbr.rel (0) target = $region29
    $region28: #{model_forward.1} parent=1 // pred_region
      _
    $region29: #{model_forward.1} parent=1 // pred_fallthru
      _
    %3184 = vsyncpa [#allocation4], 1
    %3185 = vsyncpa [#allocation6], 1

</llo_original>
